<compile_context>
chip_gen: v7x
topology: tpu7x:2x2x1
jax: 0.10.0
libtpu: 0.0.40
codegen_flags: <defaults>
</compile_context>

<pallas_src>
import functools
import math

import jax
import jax.numpy as jnp
from jax.experimental import pallas as pl
from jax.experimental.pallas import tpu as pltpu


def _kan_kernel(x_ref, grid_ref, w_ref, fbias_ref, out_ref, *,
                spline_order, fourier_gridsize, feat_group):
    # Per grid step (one feature group of TN features, one batch tile TB):
    #   x_ref:     (1, TN, TB)      inputs, batch on lanes
    #   grid_ref:  (1, Gext, TN)    knots, knot index on sublanes
    #   w_ref:     (1, TN, K, D)    [spline | cos | sin | base] weights, D on lanes
    #   fbias_ref: (1, 1, TN*D)     fourier bias, flattened feature-major
    #   out_ref:   (TB, TN*D)       lane-dense output slab
    x_all = x_ref[0].astype(jnp.float32)        # (TN, TB)
    g_all = grid_ref[0].astype(jnp.float32)     # (Gext, TN)
    w_all = w_ref[0].astype(jnp.float32)        # (TN, K, D)

    y_parts = []
    for j in range(feat_group):                 # static unroll over features in the group
        x = x_all[j:j + 1, :]                   # (1, TB)
        gcol = g_all[:, j:j + 1]                # (Gext, 1)

        # ---- B-spline bases (Cox-de Boor), knot index on sublanes, batch on lanes ----
        bases = jnp.logical_and(x >= gcol[:-1, :],
                                x < gcol[1:, :]).astype(jnp.float32)   # (Gext-1, TB)
        for k in range(1, spline_order + 1):
            # reciprocals on tiny (seg, 1) tensors; the (seg, TB) ops are multiplies only
            rden_l = 1.0 / (gcol[k:-1, :] - gcol[:-(k + 1), :])        # (seg, 1)
            rden_r = 1.0 / (gcol[k + 1:, :] - gcol[1:-k, :])           # (seg, 1)
            left = (x - gcol[:-(k + 1), :]) * rden_l                   # (seg, TB)
            right = (gcol[k + 1:, :] - x) * rden_r                     # (seg, TB)
            bases = left * bases[:-1, :] + right * bases[1:, :]
        # bases: (grid_size + spline_order, TB)

        # ---- Fourier harmonics via angle-addition recurrence (2 transcendentals) ----
        c1 = jnp.cos(x)                          # (1, TB)
        s1 = jnp.sin(x)
        two_c1 = 2.0 * c1
        cos_rows = [c1]
        sin_rows = [s1]
        c_km1 = jnp.ones_like(x)
        s_km1 = jnp.zeros_like(x)
        c_k, s_k = c1, s1
        for _ in range(fourier_gridsize - 1):
            c_nxt = two_c1 * c_k - c_km1
            s_nxt = two_c1 * s_k - s_km1
            cos_rows.append(c_nxt)
            sin_rows.append(s_nxt)
            c_km1, s_km1, c_k, s_k = c_k, s_k, c_nxt, s_nxt

        # ---- base branch folded into the same contraction ----
        silu = x * jax.nn.sigmoid(x)             # (1, TB)

        # ---- single MXU contraction over the concatenated basis ----
        fb = jnp.concatenate([bases] + cos_rows + sin_rows + [silu], axis=0)  # (K, TB)
        y_parts.append(jnp.dot(fb.T, w_all[j],
                               preferred_element_type=jnp.float32))           # (TB, D)

    y = y_parts[0] if feat_group == 1 else jnp.concatenate(y_parts, axis=1)   # (TB, TN*D)
    y = y + fbias_ref[0].astype(jnp.float32)                                   # (1, TN*D)
    out_ref[...] = y.astype(out_ref.dtype)


def kan_embeddings_forward(x, params, *, grid_size, spline_order,
                           fourier_gridsize, batch_tile=None):
    B, N = x.shape
    D = params["base_weight"].shape[1]
    TB = batch_tile if batch_tile is not None else (B if B <= 128 else 128)
    assert B % TB == 0, f"batch {B} must be divisible by batch tile {TB}"

    n_coef = grid_size + spline_order
    K = n_coef + 2 * fourier_gridsize + 1
    gext = params["grid"].shape[1]

    # Smallest feature-group TN whose output slab TN*D is a multiple of 128
    # (lane-dense, unmasked stores); fall back to all features otherwise.
    TN = N
    for cand in range(1, N + 1):
        if N % cand == 0 and (cand * D) % 128 == 0:
            TN = cand
            break
    NG = N // TN

    # ---- one-time parameter layout plumbing (plain JAX, outside the kernel) ----
    f32 = jnp.float32
    ssw = params["spline_weight"] * params["spline_scaler"][:, :, None]      # (N, D, I)
    w_cat = jnp.concatenate([
        jnp.swapaxes(ssw, 1, 2),                                             # (N, I,  D)
        jnp.swapaxes(params["fourier_coeffs"][0], 1, 2),                     # (N, Gf, D)
        jnp.swapaxes(params["fourier_coeffs"][1], 1, 2),                     # (N, Gf, D)
        params["base_weight"][:, None, :],                                   # (N, 1,  D)
    ], axis=1).astype(f32)                                                    # (N, K, D)
    w_g = w_cat.reshape(NG, TN, K, D)
    x_g = x.T.reshape(NG, TN, B)                                              # batch on lanes
    grid_g = params["grid"].reshape(NG, TN, gext).transpose(0, 2, 1)          # (NG, Gext, TN)
    fbias_g = params["fourier_bias"].reshape(NG, 1, TN * D).astype(f32)       # (NG, 1, TN*D)

    kernel = functools.partial(_kan_kernel, spline_order=spline_order,
                               fourier_gridsize=fourier_gridsize,
                               feat_group=TN)

    out_flat = pl.pallas_call(
        kernel,
        out_shape=jax.ShapeDtypeStruct((B, N * D), x.dtype),
        grid_spec=pltpu.PrefetchScalarGridSpec(
            num_scalar_prefetch=0,
            grid=(NG, B // TB),            # feature groups outer, batch tiles inner
            in_specs=[
                pl.BlockSpec((1, TN, TB), lambda ng, b: (ng, 0, b)),
                pl.BlockSpec((1, gext, TN), lambda ng, b: (ng, 0, 0)),
                pl.BlockSpec((1, TN, K, D), lambda ng, b: (ng, 0, 0, 0)),
                pl.BlockSpec((1, 1, TN * D), lambda ng, b: (ng, 0, 0)),
            ],
            out_specs=pl.BlockSpec((TB, TN * D), lambda ng, b: (b, ng)),
        ),
        compiler_params=pltpu.CompilerParams(
            dimension_semantics=("parallel", "parallel"),
            vmem_limit_bytes=32 * 1024 * 1024),
    )(x_g, grid_g, w_g, fbias_g)

    return out_flat.reshape(B, N, D)             # free metadata reshape


def init_params(key, n_features, d_embedding, grid_size, spline_order,
                fourier_gridsize, grid_range=(-1.0, 1.0)):
    """Deterministic synthetic init (shapes match the PyTorch module)."""
    k1, k2, k3, k4 = jax.random.split(key, 4)
    h = (grid_range[1] - grid_range[0]) / grid_size
    grid_1d = (jnp.arange(-spline_order, grid_size + spline_order + 1,
                          dtype=jnp.float32) * h + grid_range[0])
    grid = jnp.broadcast_to(grid_1d, (n_features, grid_1d.shape[0]))

    base_weight = (jax.random.uniform(k1, (n_features, d_embedding),
                                      minval=-1.0, maxval=1.0)
                   / math.sqrt(n_features)).astype(jnp.float32)
    # TODO(synk): PyTorch init runs curve2coeff (torch.linalg.lstsq) on noise; we use a
    # deterministic random spline_weight of the same shape instead.
    spline_weight = (0.1 * jax.random.normal(
        k2, (n_features, d_embedding, grid_size + spline_order))).astype(jnp.float32)
    spline_scaler = (jax.random.uniform(k3, (n_features, d_embedding),
                                        minval=-1.0, maxval=1.0)
                     / math.sqrt(n_features)).astype(jnp.float32)
    fourier_coeffs = (jax.random.normal(
        k4, (2, n_features, d_embedding, fourier_gridsize))
        / (math.sqrt(n_features) * math.sqrt(fourier_gridsize))).astype(jnp.float32)
    fourier_bias = jnp.zeros((n_features, d_embedding), jnp.float32)
    return dict(grid=grid, base_weight=base_weight, spline_weight=spline_weight,
                spline_scaler=spline_scaler, fourier_coeffs=fourier_coeffs,
                fourier_bias=fourier_bias)


def reference_forward(x, params, *, grid_size, spline_order, fourier_gridsize):
    """Pure-JAX reference mirroring the PyTorch forward."""
    grid = params["grid"]
    silu = x * jax.nn.sigmoid(x)
    base_out = silu[:, :, None] * params["base_weight"][None]

    xg = x[:, :, None]
    g = grid[None]
    bases = jnp.logical_and(xg >= g[:, :, :-1], xg < g[:, :, 1:]).astype(x.dtype)
    for k in range(1, spline_order + 1):
        bases = ((xg - g[:, :, : -(k + 1)]) / (g[:, :, k:-1] - g[:, :, : -(k + 1)])
                 * bases[:, :, :-1]
                 + (g[:, :, k + 1:] - xg) / (g[:, :, k + 1:] - g[:, :, 1:-k])
                 * bases[:, :, 1:])
    ssw = params["spline_weight"] * params["spline_scaler"][:, :, None]
    spline_out = jnp.einsum("bni,ndi->bnd", bases, ssw)

    kvec = jnp.arange(1, fourier_gridsize + 1, dtype=x.dtype)
    xk = x[:, :, None] * kvec[None, None, :]
    fourier_out = (jnp.sum(jnp.cos(xk)[:, :, None, :] * params["fourier_coeffs"][0][None], -1)
                   + jnp.sum(jnp.sin(xk)[:, :, None, :] * params["fourier_coeffs"][1][None], -1)
                   + params["fourier_bias"][None])
    return base_out + spline_out + fourier_out


if __name__ == "__main__":
    B, N, D = 256, 16, 32
    GRID_SIZE, SPLINE_ORDER, FOURIER_GRIDSIZE = 5, 3, 10

    key = jax.random.PRNGKey(0)
    kx, kp = jax.random.split(key)
    x = jax.random.uniform(kx, (B, N), minval=-1.0, maxval=1.0, dtype=jnp.float32)
    params = init_params(kp, N, D, GRID_SIZE, SPLINE_ORDER, FOURIER_GRIDSIZE)

    out = kan_embeddings_forward(x, params, grid_size=GRID_SIZE,
                                 spline_order=SPLINE_ORDER,
                                 fourier_gridsize=FOURIER_GRIDSIZE)
    out = jax.block_until_ready(out)

    ref = reference_forward(x, params, grid_size=GRID_SIZE,
                            spline_order=SPLINE_ORDER,
                            fourier_gridsize=FOURIER_GRIDSIZE)
    assert out.shape == (B, N, D)
    max_err = float(jnp.max(jnp.abs(out - ref)))
    assert jnp.allclose(out, ref, atol=1e-4, rtol=1e-4), max_err
    print("KERNEL_OK")
</pallas_src>

<mosaic_0001>
module attributes {stable_mosaic.version = 11 : i64} {
  func.func @_kan_kernel(%arg0: i32, %arg1: i32, %arg2: memref<1x4x128xf32, #tpu.memory_space<vmem>>, %arg3: memref<1x12x4xf32, #tpu.memory_space<vmem>>, %arg4: memref<1x4x29x32xf32, #tpu.memory_space<vmem>>, %arg5: memref<1x1x128xf32, #tpu.memory_space<vmem>>, %arg6: memref<128x128xf32, #tpu.memory_space<vmem>>) attributes {dimension_semantics = [#tpu.dimension_semantics<parallel>, #tpu.dimension_semantics<parallel>], iteration_bounds = array<i64: 4, 2>, scalar_prefetch = 0 : i64, scratch_operands = 0 : i64, tpu.core_type = #tpu.core_type<tc>, window_params = [{transform_indices = @transform_0, window_bounds = array<i64: 1, 4, 128>}, {transform_indices = @transform_1, window_bounds = array<i64: 1, 12, 4>}, {transform_indices = @transform_2, window_bounds = array<i64: 1, 4, 29, 32>}, {transform_indices = @transform_3, window_bounds = array<i64: 1, 1, 128>}, {transform_indices = @transform_4, window_bounds = array<i64: 128, 128>}]} {
    %c0 = arith.constant 0 : index
    %c0_0 = arith.constant 0 : index
    %c0_1 = arith.constant 0 : index
    %0 = vector.load %arg2[%c0, %c0_0, %c0_1] : memref<1x4x128xf32, #tpu.memory_space<vmem>>, vector<1x4x128xf32>
    %1 = vector.shape_cast %0 : vector<1x4x128xf32> to vector<4x128xf32>
    %c0_2 = arith.constant 0 : index
    %c0_3 = arith.constant 0 : index
    %c0_4 = arith.constant 0 : index
    %2 = vector.load %arg3[%c0_2, %c0_3, %c0_4] : memref<1x12x4xf32, #tpu.memory_space<vmem>>, vector<1x12x4xf32>
    %3 = vector.shape_cast %2 : vector<1x12x4xf32> to vector<12x4xf32>
    %c0_5 = arith.constant 0 : index
    %c0_6 = arith.constant 0 : index
    %c0_7 = arith.constant 0 : index
    %c0_8 = arith.constant 0 : index
    %4 = vector.load %arg4[%c0_5, %c0_6, %c0_7, %c0_8] : memref<1x4x29x32xf32, #tpu.memory_space<vmem>>, vector<1x4x29x32xf32>
    %5 = vector.shape_cast %4 : vector<1x4x29x32xf32> to vector<4x29x32xf32>
    %6 = vector.extract_strided_slice %1 {offsets = [0, 0], sizes = [1, 128], strides = [1, 1]} : vector<4x128xf32> to vector<1x128xf32>
    %7 = vector.extract_strided_slice %3 {offsets = [0, 0], sizes = [12, 1], strides = [1, 1]} : vector<12x4xf32> to vector<12x1xf32>
    %8 = vector.extract_strided_slice %7 {offsets = [0, 0], sizes = [11, 1], strides = [1, 1]} : vector<12x1xf32> to vector<11x1xf32>
    %9 = vector.broadcast %6 : vector<1x128xf32> to vector<11x128xf32>
    %10 = vector.broadcast %8 : vector<11x1xf32> to vector<11x128xf32>
    %11 = arith.cmpf oge, %9, %10 : vector<11x128xf32>
    %12 = vector.extract_strided_slice %7 {offsets = [1, 0], sizes = [11, 1], strides = [1, 1]} : vector<12x1xf32> to vector<11x1xf32>
    %13 = vector.broadcast %6 : vector<1x128xf32> to vector<11x128xf32>
    %14 = vector.broadcast %12 : vector<11x1xf32> to vector<11x128xf32>
    %15 = arith.cmpf olt, %13, %14 : vector<11x128xf32>
    %16 = arith.andi %11, %15 : vector<11x128xi1>
    %17 = arith.extui %16 : vector<11x128xi1> to vector<11x128xi32>
    %18 = arith.sitofp %17 : vector<11x128xi32> to vector<11x128xf32>
    %19 = vector.extract_strided_slice %7 {offsets = [1, 0], sizes = [10, 1], strides = [1, 1]} : vector<12x1xf32> to vector<10x1xf32>
    %20 = vector.extract_strided_slice %7 {offsets = [0, 0], sizes = [10, 1], strides = [1, 1]} : vector<12x1xf32> to vector<10x1xf32>
    %21 = arith.subf %19, %20 : vector<10x1xf32>
    %cst = arith.constant 1.000000e+00 : f32
    %22 = vector.broadcast %cst : f32 to vector<10x1xf32>
    %23 = arith.divf %22, %21 : vector<10x1xf32>
    %24 = vector.extract_strided_slice %7 {offsets = [2, 0], sizes = [10, 1], strides = [1, 1]} : vector<12x1xf32> to vector<10x1xf32>
    %25 = vector.extract_strided_slice %7 {offsets = [1, 0], sizes = [10, 1], strides = [1, 1]} : vector<12x1xf32> to vector<10x1xf32>
    %26 = arith.subf %24, %25 : vector<10x1xf32>
    %cst_9 = arith.constant 1.000000e+00 : f32
    %27 = vector.broadcast %cst_9 : f32 to vector<10x1xf32>
    %28 = arith.divf %27, %26 : vector<10x1xf32>
    %29 = vector.extract_strided_slice %7 {offsets = [0, 0], sizes = [10, 1], strides = [1, 1]} : vector<12x1xf32> to vector<10x1xf32>
    %30 = vector.broadcast %6 : vector<1x128xf32> to vector<10x128xf32>
    %31 = vector.broadcast %29 : vector<10x1xf32> to vector<10x128xf32>
    %32 = arith.subf %30, %31 : vector<10x128xf32>
    %33 = vector.broadcast %23 : vector<10x1xf32> to vector<10x128xf32>
    %34 = arith.mulf %32, %33 : vector<10x128xf32>
    %35 = vector.extract_strided_slice %7 {offsets = [2, 0], sizes = [10, 1], strides = [1, 1]} : vector<12x1xf32> to vector<10x1xf32>
    %36 = vector.broadcast %35 : vector<10x1xf32> to vector<10x128xf32>
    %37 = vector.broadcast %6 : vector<1x128xf32> to vector<10x128xf32>
    %38 = arith.subf %36, %37 : vector<10x128xf32>
    %39 = vector.broadcast %28 : vector<10x1xf32> to vector<10x128xf32>
    %40 = arith.mulf %38, %39 : vector<10x128xf32>
    %41 = vector.extract_strided_slice %18 {offsets = [0, 0], sizes = [10, 128], strides = [1, 1]} : vector<11x128xf32> to vector<10x128xf32>
    %42 = arith.mulf %34, %41 : vector<10x128xf32>
    %43 = vector.extract_strided_slice %18 {offsets = [1, 0], sizes = [10, 128], strides = [1, 1]} : vector<11x128xf32> to vector<10x128xf32>
    %44 = arith.mulf %40, %43 : vector<10x128xf32>
    %45 = arith.addf %42, %44 : vector<10x128xf32>
    %46 = vector.extract_strided_slice %7 {offsets = [2, 0], sizes = [9, 1], strides = [1, 1]} : vector<12x1xf32> to vector<9x1xf32>
    %47 = vector.extract_strided_slice %7 {offsets = [0, 0], sizes = [9, 1], strides = [1, 1]} : vector<12x1xf32> to vector<9x1xf32>
    %48 = arith.subf %46, %47 : vector<9x1xf32>
    %cst_10 = arith.constant 1.000000e+00 : f32
    %49 = vector.broadcast %cst_10 : f32 to vector<9x1xf32>
    %50 = arith.divf %49, %48 : vector<9x1xf32>
    %51 = vector.extract_strided_slice %7 {offsets = [3, 0], sizes = [9, 1], strides = [1, 1]} : vector<12x1xf32> to vector<9x1xf32>
    %52 = vector.extract_strided_slice %7 {offsets = [1, 0], sizes = [9, 1], strides = [1, 1]} : vector<12x1xf32> to vector<9x1xf32>
    %53 = arith.subf %51, %52 : vector<9x1xf32>
    %cst_11 = arith.constant 1.000000e+00 : f32
    %54 = vector.broadcast %cst_11 : f32 to vector<9x1xf32>
    %55 = arith.divf %54, %53 : vector<9x1xf32>
    %56 = vector.extract_strided_slice %7 {offsets = [0, 0], sizes = [9, 1], strides = [1, 1]} : vector<12x1xf32> to vector<9x1xf32>
    %57 = vector.broadcast %6 : vector<1x128xf32> to vector<9x128xf32>
    %58 = vector.broadcast %56 : vector<9x1xf32> to vector<9x128xf32>
    %59 = arith.subf %57, %58 : vector<9x128xf32>
    %60 = vector.broadcast %50 : vector<9x1xf32> to vector<9x128xf32>
    %61 = arith.mulf %59, %60 : vector<9x128xf32>
    %62 = vector.extract_strided_slice %7 {offsets = [3, 0], sizes = [9, 1], strides = [1, 1]} : vector<12x1xf32> to vector<9x1xf32>
    %63 = vector.broadcast %62 : vector<9x1xf32> to vector<9x128xf32>
    %64 = vector.broadcast %6 : vector<1x128xf32> to vector<9x128xf32>
    %65 = arith.subf %63, %64 : vector<9x128xf32>
    %66 = vector.broadcast %55 : vector<9x1xf32> to vector<9x128xf32>
    %67 = arith.mulf %65, %66 : vector<9x128xf32>
    %68 = vector.extract_strided_slice %45 {offsets = [0, 0], sizes = [9, 128], strides = [1, 1]} : vector<10x128xf32> to vector<9x128xf32>
    %69 = arith.mulf %61, %68 : vector<9x128xf32>
    %70 = vector.extract_strided_slice %45 {offsets = [1, 0], sizes = [9, 128], strides = [1, 1]} : vector<10x128xf32> to vector<9x128xf32>
    %71 = arith.mulf %67, %70 : vector<9x128xf32>
    %72 = arith.addf %69, %71 : vector<9x128xf32>
    %73 = vector.extract_strided_slice %7 {offsets = [3, 0], sizes = [8, 1], strides = [1, 1]} : vector<12x1xf32> to vector<8x1xf32>
    %74 = vector.extract_strided_slice %7 {offsets = [0, 0], sizes = [8, 1], strides = [1, 1]} : vector<12x1xf32> to vector<8x1xf32>
    %75 = arith.subf %73, %74 : vector<8x1xf32>
    %cst_12 = arith.constant 1.000000e+00 : f32
    %76 = vector.broadcast %cst_12 : f32 to vector<8x1xf32>
    %77 = arith.divf %76, %75 : vector<8x1xf32>
    %78 = vector.extract_strided_slice %7 {offsets = [4, 0], sizes = [8, 1], strides = [1, 1]} : vector<12x1xf32> to vector<8x1xf32>
    %79 = vector.extract_strided_slice %7 {offsets = [1, 0], sizes = [8, 1], strides = [1, 1]} : vector<12x1xf32> to vector<8x1xf32>
    %80 = arith.subf %78, %79 : vector<8x1xf32>
    %cst_13 = arith.constant 1.000000e+00 : f32
    %81 = vector.broadcast %cst_13 : f32 to vector<8x1xf32>
    %82 = arith.divf %81, %80 : vector<8x1xf32>
    %83 = vector.extract_strided_slice %7 {offsets = [0, 0], sizes = [8, 1], strides = [1, 1]} : vector<12x1xf32> to vector<8x1xf32>
    %84 = vector.broadcast %6 : vector<1x128xf32> to vector<8x128xf32>
    %85 = vector.broadcast %83 : vector<8x1xf32> to vector<8x128xf32>
    %86 = arith.subf %84, %85 : vector<8x128xf32>
    %87 = vector.broadcast %77 : vector<8x1xf32> to vector<8x128xf32>
    %88 = arith.mulf %86, %87 : vector<8x128xf32>
    %89 = vector.extract_strided_slice %7 {offsets = [4, 0], sizes = [8, 1], strides = [1, 1]} : vector<12x1xf32> to vector<8x1xf32>
    %90 = vector.broadcast %89 : vector<8x1xf32> to vector<8x128xf32>
    %91 = vector.broadcast %6 : vector<1x128xf32> to vector<8x128xf32>
    %92 = arith.subf %90, %91 : vector<8x128xf32>
    %93 = vector.broadcast %82 : vector<8x1xf32> to vector<8x128xf32>
    %94 = arith.mulf %92, %93 : vector<8x128xf32>
    %95 = vector.extract_strided_slice %72 {offsets = [0, 0], sizes = [8, 128], strides = [1, 1]} : vector<9x128xf32> to vector<8x128xf32>
    %96 = arith.mulf %88, %95 : vector<8x128xf32>
    %97 = vector.extract_strided_slice %72 {offsets = [1, 0], sizes = [8, 128], strides = [1, 1]} : vector<9x128xf32> to vector<8x128xf32>
    %98 = arith.mulf %94, %97 : vector<8x128xf32>
    %99 = arith.addf %96, %98 : vector<8x128xf32>
    %100 = math.cos %6 : vector<1x128xf32>
    %101 = math.sin %6 : vector<1x128xf32>
    %cst_14 = arith.constant 2.000000e+00 : f32
    %102 = vector.broadcast %cst_14 : f32 to vector<1x128xf32>
    %103 = arith.mulf %102, %100 : vector<1x128xf32>
    %cst_15 = arith.constant 1.000000e+00 : f32
    %104 = vector.broadcast %cst_15 : f32 to vector<1x128xf32>
    %cst_16 = arith.constant 0.000000e+00 : f32
    %105 = vector.broadcast %cst_16 : f32 to vector<1x128xf32>
    %106 = arith.mulf %103, %100 : vector<1x128xf32>
    %107 = arith.subf %106, %104 : vector<1x128xf32>
    %108 = arith.mulf %103, %101 : vector<1x128xf32>
    %109 = arith.subf %108, %105 : vector<1x128xf32>
    %110 = arith.mulf %103, %107 : vector<1x128xf32>
    %111 = arith.subf %110, %100 : vector<1x128xf32>
    %112 = arith.mulf %103, %109 : vector<1x128xf32>
    %113 = arith.subf %112, %101 : vector<1x128xf32>
    %114 = arith.mulf %103, %111 : vector<1x128xf32>
    %115 = arith.subf %114, %107 : vector<1x128xf32>
    %116 = arith.mulf %103, %113 : vector<1x128xf32>
    %117 = arith.subf %116, %109 : vector<1x128xf32>
    %118 = arith.mulf %103, %115 : vector<1x128xf32>
    %119 = arith.subf %118, %111 : vector<1x128xf32>
    %120 = arith.mulf %103, %117 : vector<1x128xf32>
    %121 = arith.subf %120, %113 : vector<1x128xf32>
    %122 = arith.mulf %103, %119 : vector<1x128xf32>
    %123 = arith.subf %122, %115 : vector<1x128xf32>
    %124 = arith.mulf %103, %121 : vector<1x128xf32>
    %125 = arith.subf %124, %117 : vector<1x128xf32>
    %126 = arith.mulf %103, %123 : vector<1x128xf32>
    %127 = arith.subf %126, %119 : vector<1x128xf32>
    %128 = arith.mulf %103, %125 : vector<1x128xf32>
    %129 = arith.subf %128, %121 : vector<1x128xf32>
    %130 = arith.mulf %103, %127 : vector<1x128xf32>
    %131 = arith.subf %130, %123 : vector<1x128xf32>
    %132 = arith.mulf %103, %129 : vector<1x128xf32>
    %133 = arith.subf %132, %125 : vector<1x128xf32>
    %134 = arith.mulf %103, %131 : vector<1x128xf32>
    %135 = arith.subf %134, %127 : vector<1x128xf32>
    %136 = arith.mulf %103, %133 : vector<1x128xf32>
    %137 = arith.subf %136, %129 : vector<1x128xf32>
    %138 = arith.mulf %103, %135 : vector<1x128xf32>
    %139 = arith.subf %138, %131 : vector<1x128xf32>
    %140 = arith.mulf %103, %137 : vector<1x128xf32>
    %141 = arith.subf %140, %133 : vector<1x128xf32>
    %142 = arith.negf %6 : vector<1x128xf32>
    %143 = math.exp %142 : vector<1x128xf32>
    %cst_17 = arith.constant 1.000000e+00 : f32
    %144 = vector.broadcast %cst_17 : f32 to vector<1x128xf32>
    %145 = arith.addf %144, %143 : vector<1x128xf32>
    %146 = arith.divf %144, %145 : vector<1x128xf32>
    %147 = arith.mulf %6, %146 : vector<1x128xf32>
    %148 = tpu.concatenate %99, %100, %107, %111, %115, %119, %123, %127, %131, %135, %139, %101, %109, %113, %117, %121 in 0 : vector<8x128xf32>, vector<1x128xf32>, vector<1x128xf32>, vector<1x128xf32>, vector<1x128xf32>, vector<1x128xf32>, vector<1x128xf32>, vector<1x128xf32>, vector<1x128xf32>, vector<1x128xf32>, vector<1x128xf32>, vector<1x128xf32>, vector<1x128xf32>, vector<1x128xf32>, vector<1x128xf32>, vector<1x128xf32> -> vector<23x128xf32>
    %149 = tpu.concatenate %125, %129, %133, %137, %141, %147 in 0 : vector<1x128xf32>, vector<1x128xf32>, vector<1x128xf32>, vector<1x128xf32>, vector<1x128xf32>, vector<1x128xf32> -> vector<6x128xf32>
    %150 = tpu.concatenate %148, %149 in 0 : vector<23x128xf32>, vector<6x128xf32> -> vector<29x128xf32>
    %151 = tpu.transpose %150, [1, 0] : vector<29x128xf32> -> vector<128x29xf32>
    %152 = vector.extract_strided_slice %5 {offsets = [0, 0, 0], sizes = [1, 29, 32], strides = [1, 1, 1]} : vector<4x29x32xf32> to vector<1x29x32xf32>
    %153 = vector.shape_cast %152 : vector<1x29x32xf32> to vector<29x32xf32>
    %cst_18 = arith.constant dense<0.000000e+00> : vector<128x32xf32>
    %154 = tpu.matmul %151, %153, %cst_18 {dimension_numbers = #tpu.dot_dimension_numbers<[1], [0], [0], [1], [0, 0, 1, 1], [], []>} : vector<128x29xf32>, vector<29x32xf32>, vector<128x32xf32> -> vector<128x32xf32>
    %155 = vector.extract_strided_slice %1 {offsets = [1, 0], sizes = [1, 128], strides = [1, 1]} : vector<4x128xf32> to vector<1x128xf32>
    %156 = vector.extract_strided_slice %3 {offsets = [0, 1], sizes = [12, 1], strides = [1, 1]} : vector<12x4xf32> to vector<12x1xf32>
    %157 = vector.extract_strided_slice %156 {offsets = [0, 0], sizes = [11, 1], strides = [1, 1]} : vector<12x1xf32> to vector<11x1xf32>
    %158 = vector.broadcast %155 : vector<1x128xf32> to vector<11x128xf32>
    %159 = vector.broadcast %157 : vector<11x1xf32> to vector<11x128xf32>
    %160 = arith.cmpf oge, %158, %159 : vector<11x128xf32>
    %161 = vector.extract_strided_slice %156 {offsets = [1, 0], sizes = [11, 1], strides = [1, 1]} : vector<12x1xf32> to vector<11x1xf32>
    %162 = vector.broadcast %155 : vector<1x128xf32> to vector<11x128xf32>
    %163 = vector.broadcast %161 : vector<11x1xf32> to vector<11x128xf32>
    %164 = arith.cmpf olt, %162, %163 : vector<11x128xf32>
    %165 = arith.andi %160, %164 : vector<11x128xi1>
    %166 = arith.extui %165 : vector<11x128xi1> to vector<11x128xi32>
    %167 = arith.sitofp %166 : vector<11x128xi32> to vector<11x128xf32>
    %168 = vector.extract_strided_slice %156 {offsets = [1, 0], sizes = [10, 1], strides = [1, 1]} : vector<12x1xf32> to vector<10x1xf32>
    %169 = vector.extract_strided_slice %156 {offsets = [0, 0], sizes = [10, 1], strides = [1, 1]} : vector<12x1xf32> to vector<10x1xf32>
    %170 = arith.subf %168, %169 : vector<10x1xf32>
    %cst_19 = arith.constant 1.000000e+00 : f32
    %171 = vector.broadcast %cst_19 : f32 to vector<10x1xf32>
    %172 = arith.divf %171, %170 : vector<10x1xf32>
    %173 = vector.extract_strided_slice %156 {offsets = [2, 0], sizes = [10, 1], strides = [1, 1]} : vector<12x1xf32> to vector<10x1xf32>
    %174 = vector.extract_strided_slice %156 {offsets = [1, 0], sizes = [10, 1], strides = [1, 1]} : vector<12x1xf32> to vector<10x1xf32>
    %175 = arith.subf %173, %174 : vector<10x1xf32>
    %cst_20 = arith.constant 1.000000e+00 : f32
    %176 = vector.broadcast %cst_20 : f32 to vector<10x1xf32>
    %177 = arith.divf %176, %175 : vector<10x1xf32>
    %178 = vector.extract_strided_slice %156 {offsets = [0, 0], sizes = [10, 1], strides = [1, 1]} : vector<12x1xf32> to vector<10x1xf32>
    %179 = vector.broadcast %155 : vector<1x128xf32> to vector<10x128xf32>
    %180 = vector.broadcast %178 : vector<10x1xf32> to vector<10x128xf32>
    %181 = arith.subf %179, %180 : vector<10x128xf32>
    %182 = vector.broadcast %172 : vector<10x1xf32> to vector<10x128xf32>
    %183 = arith.mulf %181, %182 : vector<10x128xf32>
    %184 = vector.extract_strided_slice %156 {offsets = [2, 0], sizes = [10, 1], strides = [1, 1]} : vector<12x1xf32> to vector<10x1xf32>
    %185 = vector.broadcast %184 : vector<10x1xf32> to vector<10x128xf32>
    %186 = vector.broadcast %155 : vector<1x128xf32> to vector<10x128xf32>
    %187 = arith.subf %185, %186 : vector<10x128xf32>
    %188 = vector.broadcast %177 : vector<10x1xf32> to vector<10x128xf32>
    %189 = arith.mulf %187, %188 : vector<10x128xf32>
    %190 = vector.extract_strided_slice %167 {offsets = [0, 0], sizes = [10, 128], strides = [1, 1]} : vector<11x128xf32> to vector<10x128xf32>
    %191 = arith.mulf %183, %190 : vector<10x128xf32>
    %192 = vector.extract_strided_slice %167 {offsets = [1, 0], sizes = [10, 128], strides = [1, 1]} : vector<11x128xf32> to vector<10x128xf32>
    %193 = arith.mulf %189, %192 : vector<10x128xf32>
    %194 = arith.addf %191, %193 : vector<10x128xf32>
    %195 = vector.extract_strided_slice %156 {offsets = [2, 0], sizes = [9, 1], strides = [1, 1]} : vector<12x1xf32> to vector<9x1xf32>
    %196 = vector.extract_strided_slice %156 {offsets = [0, 0], sizes = [9, 1], strides = [1, 1]} : vector<12x1xf32> to vector<9x1xf32>
    %197 = arith.subf %195, %196 : vector<9x1xf32>
    %cst_21 = arith.constant 1.000000e+00 : f32
    %198 = vector.broadcast %cst_21 : f32 to vector<9x1xf32>
    %199 = arith.divf %198, %197 : vector<9x1xf32>
    %200 = vector.extract_strided_slice %156 {offsets = [3, 0], sizes = [9, 1], strides = [1, 1]} : vector<12x1xf32> to vector<9x1xf32>
    %201 = vector.extract_strided_slice %156 {offsets = [1, 0], sizes = [9, 1], strides = [1, 1]} : vector<12x1xf32> to vector<9x1xf32>
    %202 = arith.subf %200, %201 : vector<9x1xf32>
    %cst_22 = arith.constant 1.000000e+00 : f32
    %203 = vector.broadcast %cst_22 : f32 to vector<9x1xf32>
    %204 = arith.divf %203, %202 : vector<9x1xf32>
    %205 = vector.extract_strided_slice %156 {offsets = [0, 0], sizes = [9, 1], strides = [1, 1]} : vector<12x1xf32> to vector<9x1xf32>
    %206 = vector.broadcast %155 : vector<1x128xf32> to vector<9x128xf32>
    %207 = vector.broadcast %205 : vector<9x1xf32> to vector<9x128xf32>
    %208 = arith.subf %206, %207 : vector<9x128xf32>
    %209 = vector.broadcast %199 : vector<9x1xf32> to vector<9x128xf32>
    %210 = arith.mulf %208, %209 : vector<9x128xf32>
    %211 = vector.extract_strided_slice %156 {offsets = [3, 0], sizes = [9, 1], strides = [1, 1]} : vector<12x1xf32> to vector<9x1xf32>
    %212 = vector.broadcast %211 : vector<9x1xf32> to vector<9x128xf32>
    %213 = vector.broadcast %155 : vector<1x128xf32> to vector<9x128xf32>
    %214 = arith.subf %212, %213 : vector<9x128xf32>
    %215 = vector.broadcast %204 : vector<9x1xf32> to vector<9x128xf32>
    %216 = arith.mulf %214, %215 : vector<9x128xf32>
    %217 = vector.extract_strided_slice %194 {offsets = [0, 0], sizes = [9, 128], strides = [1, 1]} : vector<10x128xf32> to vector<9x128xf32>
    %218 = arith.mulf %210, %217 : vector<9x128xf32>
    %219 = vector.extract_strided_slice %194 {offsets = [1, 0], sizes = [9, 128], strides = [1, 1]} : vector<10x128xf32> to vector<9x128xf32>
    %220 = arith.mulf %216, %219 : vector<9x128xf32>
    %221 = arith.addf %218, %220 : vector<9x128xf32>
    %222 = vector.extract_strided_slice %156 {offsets = [3, 0], sizes = [8, 1], strides = [1, 1]} : vector<12x1xf32> to vector<8x1xf32>
    %223 = vector.extract_strided_slice %156 {offsets = [0, 0], sizes = [8, 1], strides = [1, 1]} : vector<12x1xf32> to vector<8x1xf32>
    %224 = arith.subf %222, %223 : vector<8x1xf32>
    %cst_23 = arith.constant 1.000000e+00 : f32
    %225 = vector.broadcast %cst_23 : f32 to vector<8x1xf32>
    %226 = arith.divf %225, %224 : vector<8x1xf32>
    %227 = vector.extract_strided_slice %156 {offsets = [4, 0], sizes = [8, 1], strides = [1, 1]} : vector<12x1xf32> to vector<8x1xf32>
    %228 = vector.extract_strided_slice %156 {offsets = [1, 0], sizes = [8, 1], strides = [1, 1]} : vector<12x1xf32> to vector<8x1xf32>
    %229 = arith.subf %227, %228 : vector<8x1xf32>
    %cst_24 = arith.constant 1.000000e+00 : f32
    %230 = vector.broadcast %cst_24 : f32 to vector<8x1xf32>
    %231 = arith.divf %230, %229 : vector<8x1xf32>
    %232 = vector.extract_strided_slice %156 {offsets = [0, 0], sizes = [8, 1], strides = [1, 1]} : vector<12x1xf32> to vector<8x1xf32>
    %233 = vector.broadcast %155 : vector<1x128xf32> to vector<8x128xf32>
    %234 = vector.broadcast %232 : vector<8x1xf32> to vector<8x128xf32>
    %235 = arith.subf %233, %234 : vector<8x128xf32>
    %236 = vector.broadcast %226 : vector<8x1xf32> to vector<8x128xf32>
    %237 = arith.mulf %235, %236 : vector<8x128xf32>
    %238 = vector.extract_strided_slice %156 {offsets = [4, 0], sizes = [8, 1], strides = [1, 1]} : vector<12x1xf32> to vector<8x1xf32>
    %239 = vector.broadcast %238 : vector<8x1xf32> to vector<8x128xf32>
    %240 = vector.broadcast %155 : vector<1x128xf32> to vector<8x128xf32>
    %241 = arith.subf %239, %240 : vector<8x128xf32>
    %242 = vector.broadcast %231 : vector<8x1xf32> to vector<8x128xf32>
    %243 = arith.mulf %241, %242 : vector<8x128xf32>
    %244 = vector.extract_strided_slice %221 {offsets = [0, 0], sizes = [8, 128], strides = [1, 1]} : vector<9x128xf32> to vector<8x128xf32>
    %245 = arith.mulf %237, %244 : vector<8x128xf32>
    %246 = vector.extract_strided_slice %221 {offsets = [1, 0], sizes = [8, 128], strides = [1, 1]} : vector<9x128xf32> to vector<8x128xf32>
    %247 = arith.mulf %243, %246 : vector<8x128xf32>
    %248 = arith.addf %245, %247 : vector<8x128xf32>
    %249 = math.cos %155 : vector<1x128xf32>
    %250 = math.sin %155 : vector<1x128xf32>
    %cst_25 = arith.constant 2.000000e+00 : f32
    %251 = vector.broadcast %cst_25 : f32 to vector<1x128xf32>
    %252 = arith.mulf %251, %249 : vector<1x128xf32>
    %cst_26 = arith.constant 1.000000e+00 : f32
    %253 = vector.broadcast %cst_26 : f32 to vector<1x128xf32>
    %cst_27 = arith.constant 0.000000e+00 : f32
    %254 = vector.broadcast %cst_27 : f32 to vector<1x128xf32>
    %255 = arith.mulf %252, %249 : vector<1x128xf32>
    %256 = arith.subf %255, %253 : vector<1x128xf32>
    %257 = arith.mulf %252, %250 : vector<1x128xf32>
    %258 = arith.subf %257, %254 : vector<1x128xf32>
    %259 = arith.mulf %252, %256 : vector<1x128xf32>
    %260 = arith.subf %259, %249 : vector<1x128xf32>
    %261 = arith.mulf %252, %258 : vector<1x128xf32>
    %262 = arith.subf %261, %250 : vector<1x128xf32>
    %263 = arith.mulf %252, %260 : vector<1x128xf32>
    %264 = arith.subf %263, %256 : vector<1x128xf32>
    %265 = arith.mulf %252, %262 : vector<1x128xf32>
    %266 = arith.subf %265, %258 : vector<1x128xf32>
    %267 = arith.mulf %252, %264 : vector<1x128xf32>
    %268 = arith.subf %267, %260 : vector<1x128xf32>
    %269 = arith.mulf %252, %266 : vector<1x128xf32>
    %270 = arith.subf %269, %262 : vector<1x128xf32>
    %271 = arith.mulf %252, %268 : vector<1x128xf32>
    %272 = arith.subf %271, %264 : vector<1x128xf32>
    %273 = arith.mulf %252, %270 : vector<1x128xf32>
    %274 = arith.subf %273, %266 : vector<1x128xf32>
    %275 = arith.mulf %252, %272 : vector<1x128xf32>
    %276 = arith.subf %275, %268 : vector<1x128xf32>
    %277 = arith.mulf %252, %274 : vector<1x128xf32>
    %278 = arith.subf %277, %270 : vector<1x128xf32>
    %279 = arith.mulf %252, %276 : vector<1x128xf32>
    %280 = arith.subf %279, %272 : vector<1x128xf32>
    %281 = arith.mulf %252, %278 : vector<1x128xf32>
    %282 = arith.subf %281, %274 : vector<1x128xf32>
    %283 = arith.mulf %252, %280 : vector<1x128xf32>
    %284 = arith.subf %283, %276 : vector<1x128xf32>
    %285 = arith.mulf %252, %282 : vector<1x128xf32>
    %286 = arith.subf %285, %278 : vector<1x128xf32>
    %287 = arith.mulf %252, %284 : vector<1x128xf32>
    %288 = arith.subf %287, %280 : vector<1x128xf32>
    %289 = arith.mulf %252, %286 : vector<1x128xf32>
    %290 = arith.subf %289, %282 : vector<1x128xf32>
    %291 = arith.negf %155 : vector<1x128xf32>
    %292 = math.exp %291 : vector<1x128xf32>
    %cst_28 = arith.constant 1.000000e+00 : f32
    %293 = vector.broadcast %cst_28 : f32 to vector<1x128xf32>
    %294 = arith.addf %293, %292 : vector<1x128xf32>
    %295 = arith.divf %293, %294 : vector<1x128xf32>
    %296 = arith.mulf %155, %295 : vector<1x128xf32>
    %297 = tpu.concatenate %248, %249, %256, %260, %264, %268, %272, %276, %280, %284, %288, %250, %258, %262, %266, %270 in 0 : vector<8x128xf32>, vector<1x128xf32>, vector<1x128xf32>, vector<1x128xf32>, vector<1x128xf32>, vector<1x128xf32>, vector<1x128xf32>, vector<1x128xf32>, vector<1x128xf32>, vector<1x128xf32>, vector<1x128xf32>, vector<1x128xf32>, vector<1x128xf32>, vector<1x128xf32>, vector<1x128xf32>, vector<1x128xf32> -> vector<23x128xf32>
    %298 = tpu.concatenate %274, %278, %282, %286, %290, %296 in 0 : vector<1x128xf32>, vector<1x128xf32>, vector<1x128xf32>, vector<1x128xf32>, vector<1x128xf32>, vector<1x128xf32> -> vector<6x128xf32>
    %299 = tpu.concatenate %297, %298 in 0 : vector<23x128xf32>, vector<6x128xf32> -> vector<29x128xf32>
    %300 = tpu.transpose %299, [1, 0] : vector<29x128xf32> -> vector<128x29xf32>
    %301 = vector.extract_strided_slice %5 {offsets = [1, 0, 0], sizes = [1, 29, 32], strides = [1, 1, 1]} : vector<4x29x32xf32> to vector<1x29x32xf32>
    %302 = vector.shape_cast %301 : vector<1x29x32xf32> to vector<29x32xf32>
    %cst_29 = arith.constant dense<0.000000e+00> : vector<128x32xf32>
    %303 = tpu.matmul %300, %302, %cst_29 {dimension_numbers = #tpu.dot_dimension_numbers<[1], [0], [0], [1], [0, 0, 1, 1], [], []>} : vector<128x29xf32>, vector<29x32xf32>, vector<128x32xf32> -> vector<128x32xf32>
    %304 = vector.extract_strided_slice %1 {offsets = [2, 0], sizes = [1, 128], strides = [1, 1]} : vector<4x128xf32> to vector<1x128xf32>
    %305 = vector.extract_strided_slice %3 {offsets = [0, 2], sizes = [12, 1], strides = [1, 1]} : vector<12x4xf32> to vector<12x1xf32>
    %306 = vector.extract_strided_slice %305 {offsets = [0, 0], sizes = [11, 1], strides = [1, 1]} : vector<12x1xf32> to vector<11x1xf32>
    %307 = vector.broadcast %304 : vector<1x128xf32> to vector<11x128xf32>
    %308 = vector.broadcast %306 : vector<11x1xf32> to vector<11x128xf32>
    %309 = arith.cmpf oge, %307, %308 : vector<11x128xf32>
    %310 = vector.extract_strided_slice %305 {offsets = [1, 0], sizes = [11, 1], strides = [1, 1]} : vector<12x1xf32> to vector<11x1xf32>
    %311 = vector.broadcast %304 : vector<1x128xf32> to vector<11x128xf32>
    %312 = vector.broadcast %310 : vector<11x1xf32> to vector<11x128xf32>
    %313 = arith.cmpf olt, %311, %312 : vector<11x128xf32>
    %314 = arith.andi %309, %313 : vector<11x128xi1>
    %315 = arith.extui %314 : vector<11x128xi1> to vector<11x128xi32>
    %316 = arith.sitofp %315 : vector<11x128xi32> to vector<11x128xf32>
    %317 = vector.extract_strided_slice %305 {offsets = [1, 0], sizes = [10, 1], strides = [1, 1]} : vector<12x1xf32> to vector<10x1xf32>
    %318 = vector.extract_strided_slice %305 {offsets = [0, 0], sizes = [10, 1], strides = [1, 1]} : vector<12x1xf32> to vector<10x1xf32>
    %319 = arith.subf %317, %318 : vector<10x1xf32>
    %cst_30 = arith.constant 1.000000e+00 : f32
    %320 = vector.broadcast %cst_30 : f32 to vector<10x1xf32>
    %321 = arith.divf %320, %319 : vector<10x1xf32>
    %322 = vector.extract_strided_slice %305 {offsets = [2, 0], sizes = [10, 1], strides = [1, 1]} : vector<12x1xf32> to vector<10x1xf32>
    %323 = vector.extract_strided_slice %305 {offsets = [1, 0], sizes = [10, 1], strides = [1, 1]} : vector<12x1xf32> to vector<10x1xf32>
    %324 = arith.subf %322, %323 : vector<10x1xf32>
    %cst_31 = arith.constant 1.000000e+00 : f32
    %325 = vector.broadcast %cst_31 : f32 to vector<10x1xf32>
    %326 = arith.divf %325, %324 : vector<10x1xf32>
    %327 = vector.extract_strided_slice %305 {offsets = [0, 0], sizes = [10, 1], strides = [1, 1]} : vector<12x1xf32> to vector<10x1xf32>
    %328 = vector.broadcast %304 : vector<1x128xf32> to vector<10x128xf32>
    %329 = vector.broadcast %327 : vector<10x1xf32> to vector<10x128xf32>
    %330 = arith.subf %328, %329 : vector<10x128xf32>
    %331 = vector.broadcast %321 : vector<10x1xf32> to vector<10x128xf32>
    %332 = arith.mulf %330, %331 : vector<10x128xf32>
    %333 = vector.extract_strided_slice %305 {offsets = [2, 0], sizes = [10, 1], strides = [1, 1]} : vector<12x1xf32> to vector<10x1xf32>
    %334 = vector.broadcast %333 : vector<10x1xf32> to vector<10x128xf32>
    %335 = vector.broadcast %304 : vector<1x128xf32> to vector<10x128xf32>
    %336 = arith.subf %334, %335 : vector<10x128xf32>
    %337 = vector.broadcast %326 : vector<10x1xf32> to vector<10x128xf32>
    %338 = arith.mulf %336, %337 : vector<10x128xf32>
    %339 = vector.extract_strided_slice %316 {offsets = [0, 0], sizes = [10, 128], strides = [1, 1]} : vector<11x128xf32> to vector<10x128xf32>
    %340 = arith.mulf %332, %339 : vector<10x128xf32>
    %341 = vector.extract_strided_slice %316 {offsets = [1, 0], sizes = [10, 128], strides = [1, 1]} : vector<11x128xf32> to vector<10x128xf32>
    %342 = arith.mulf %338, %341 : vector<10x128xf32>
    %343 = arith.addf %340, %342 : vector<10x128xf32>
    %344 = vector.extract_strided_slice %305 {offsets = [2, 0], sizes = [9, 1], strides = [1, 1]} : vector<12x1xf32> to vector<9x1xf32>
    %345 = vector.extract_strided_slice %305 {offsets = [0, 0], sizes = [9, 1], strides = [1, 1]} : vector<12x1xf32> to vector<9x1xf32>
    %346 = arith.subf %344, %345 : vector<9x1xf32>
    %cst_32 = arith.constant 1.000000e+00 : f32
    %347 = vector.broadcast %cst_32 : f32 to vector<9x1xf32>
    %348 = arith.divf %347, %346 : vector<9x1xf32>
    %349 = vector.extract_strided_slice %305 {offsets = [3, 0], sizes = [9, 1], strides = [1, 1]} : vector<12x1xf32> to vector<9x1xf32>
    %350 = vector.extract_strided_slice %305 {offsets = [1, 0], sizes = [9, 1], strides = [1, 1]} : vector<12x1xf32> to vector<9x1xf32>
    %351 = arith.subf %349, %350 : vector<9x1xf32>
    %cst_33 = arith.constant 1.000000e+00 : f32
    %352 = vector.broadcast %cst_33 : f32 to vector<9x1xf32>
    %353 = arith.divf %352, %351 : vector<9x1xf32>
    %354 = vector.extract_strided_slice %305 {offsets = [0, 0], sizes = [9, 1], strides = [1, 1]} : vector<12x1xf32> to vector<9x1xf32>
    %355 = vector.broadcast %304 : vector<1x128xf32> to vector<9x128xf32>
    %356 = vector.broadcast %354 : vector<9x1xf32> to vector<9x128xf32>
    %357 = arith.subf %355, %356 : vector<9x128xf32>
    %358 = vector.broadcast %348 : vector<9x1xf32> to vector<9x128xf32>
    %359 = arith.mulf %357, %358 : vector<9x128xf32>
    %360 = vector.extract_strided_slice %305 {offsets = [3, 0], sizes = [9, 1], strides = [1, 1]} : vector<12x1xf32> to vector<9x1xf32>
    %361 = vector.broadcast %360 : vector<9x1xf32> to vector<9x128xf32>
    %362 = vector.broadcast %304 : vector<1x128xf32> to vector<9x128xf32>
    %363 = arith.subf %361, %362 : vector<9x128xf32>
    %364 = vector.broadcast %353 : vector<9x1xf32> to vector<9x128xf32>
    %365 = arith.mulf %363, %364 : vector<9x128xf32>
    %366 = vector.extract_strided_slice %343 {offsets = [0, 0], sizes = [9, 128], strides = [1, 1]} : vector<10x128xf32> to vector<9x128xf32>
    %367 = arith.mulf %359, %366 : vector<9x128xf32>
    %368 = vector.extract_strided_slice %343 {offsets = [1, 0], sizes = [9, 128], strides = [1, 1]} : vector<10x128xf32> to vector<9x128xf32>
    %369 = arith.mulf %365, %368 : vector<9x128xf32>
    %370 = arith.addf %367, %369 : vector<9x128xf32>
    %371 = vector.extract_strided_slice %305 {offsets = [3, 0], sizes = [8, 1], strides = [1, 1]} : vector<12x1xf32> to vector<8x1xf32>
    %372 = vector.extract_strided_slice %305 {offsets = [0, 0], sizes = [8, 1], strides = [1, 1]} : vector<12x1xf32> to vector<8x1xf32>
    %373 = arith.subf %371, %372 : vector<8x1xf32>
    %cst_34 = arith.constant 1.000000e+00 : f32
    %374 = vector.broadcast %cst_34 : f32 to vector<8x1xf32>
    %375 = arith.divf %374, %373 : vector<8x1xf32>
    %376 = vector.extract_strided_slice %305 {offsets = [4, 0], sizes = [8, 1], strides = [1, 1]} : vector<12x1xf32> to vector<8x1xf32>
    %377 = vector.extract_strided_slice %305 {offsets = [1, 0], sizes = [8, 1], strides = [1, 1]} : vector<12x1xf32> to vector<8x1xf32>
    %378 = arith.subf %376, %377 : vector<8x1xf32>
    %cst_35 = arith.constant 1.000000e+00 : f32
    %379 = vector.broadcast %cst_35 : f32 to vector<8x1xf32>
    %380 = arith.divf %379, %378 : vector<8x1xf32>
    %381 = vector.extract_strided_slice %305 {offsets = [0, 0], sizes = [8, 1], strides = [1, 1]} : vector<12x1xf32> to vector<8x1xf32>
    %382 = vector.broadcast %304 : vector<1x128xf32> to vector<8x128xf32>
    %383 = vector.broadcast %381 : vector<8x1xf32> to vector<8x128xf32>
    %384 = arith.subf %382, %383 : vector<8x128xf32>
    %385 = vector.broadcast %375 : vector<8x1xf32> to vector<8x128xf32>
    %386 = arith.mulf %384, %385 : vector<8x128xf32>
    %387 = vector.extract_strided_slice %305 {offsets = [4, 0], sizes = [8, 1], strides = [1, 1]} : vector<12x1xf32> to vector<8x1xf32>
    %388 = vector.broadcast %387 : vector<8x1xf32> to vector<8x128xf32>
    %389 = vector.broadcast %304 : vector<1x128xf32> to vector<8x128xf32>
    %390 = arith.subf %388, %389 : vector<8x128xf32>
    %391 = vector.broadcast %380 : vector<8x1xf32> to vector<8x128xf32>
    %392 = arith.mulf %390, %391 : vector<8x128xf32>
    %393 = vector.extract_strided_slice %370 {offsets = [0, 0], sizes = [8, 128], strides = [1, 1]} : vector<9x128xf32> to vector<8x128xf32>
    %394 = arith.mulf %386, %393 : vector<8x128xf32>
    %395 = vector.extract_strided_slice %370 {offsets = [1, 0], sizes = [8, 128], strides = [1, 1]} : vector<9x128xf32> to vector<8x128xf32>
    %396 = arith.mulf %392, %395 : vector<8x128xf32>
    %397 = arith.addf %394, %396 : vector<8x128xf32>
    %398 = math.cos %304 : vector<1x128xf32>
    %399 = math.sin %304 : vector<1x128xf32>
    %cst_36 = arith.constant 2.000000e+00 : f32
    %400 = vector.broadcast %cst_36 : f32 to vector<1x128xf32>
    %401 = arith.mulf %400, %398 : vector<1x128xf32>
    %cst_37 = arith.constant 1.000000e+00 : f32
    %402 = vector.broadcast %cst_37 : f32 to vector<1x128xf32>
    %cst_38 = arith.constant 0.000000e+00 : f32
    %403 = vector.broadcast %cst_38 : f32 to vector<1x128xf32>
    %404 = arith.mulf %401, %398 : vector<1x128xf32>
    %405 = arith.subf %404, %402 : vector<1x128xf32>
    %406 = arith.mulf %401, %399 : vector<1x128xf32>
    %407 = arith.subf %406, %403 : vector<1x128xf32>
    %408 = arith.mulf %401, %405 : vector<1x128xf32>
    %409 = arith.subf %408, %398 : vector<1x128xf32>
    %410 = arith.mulf %401, %407 : vector<1x128xf32>
    %411 = arith.subf %410, %399 : vector<1x128xf32>
    %412 = arith.mulf %401, %409 : vector<1x128xf32>
    %413 = arith.subf %412, %405 : vector<1x128xf32>
    %414 = arith.mulf %401, %411 : vector<1x128xf32>
    %415 = arith.subf %414, %407 : vector<1x128xf32>
    %416 = arith.mulf %401, %413 : vector<1x128xf32>
    %417 = arith.subf %416, %409 : vector<1x128xf32>
    %418 = arith.mulf %401, %415 : vector<1x128xf32>
    %419 = arith.subf %418, %411 : vector<1x128xf32>
    %420 = arith.mulf %401, %417 : vector<1x128xf32>
    %421 = arith.subf %420, %413 : vector<1x128xf32>
    %422 = arith.mulf %401, %419 : vector<1x128xf32>
    %423 = arith.subf %422, %415 : vector<1x128xf32>
    %424 = arith.mulf %401, %421 : vector<1x128xf32>
    %425 = arith.subf %424, %417 : vector<1x128xf32>
    %426 = arith.mulf %401, %423 : vector<1x128xf32>
    %427 = arith.subf %426, %419 : vector<1x128xf32>
    %428 = arith.mulf %401, %425 : vector<1x128xf32>
    %429 = arith.subf %428, %421 : vector<1x128xf32>
    %430 = arith.mulf %401, %427 : vector<1x128xf32>
    %431 = arith.subf %430, %423 : vector<1x128xf32>
    %432 = arith.mulf %401, %429 : vector<1x128xf32>
    %433 = arith.subf %432, %425 : vector<1x128xf32>
    %434 = arith.mulf %401, %431 : vector<1x128xf32>
    %435 = arith.subf %434, %427 : vector<1x128xf32>
    %436 = arith.mulf %401, %433 : vector<1x128xf32>
    %437 = arith.subf %436, %429 : vector<1x128xf32>
    %438 = arith.mulf %401, %435 : vector<1x128xf32>
    %439 = arith.subf %438, %431 : vector<1x128xf32>
    %440 = arith.negf %304 : vector<1x128xf32>
    %441 = math.exp %440 : vector<1x128xf32>
    %cst_39 = arith.constant 1.000000e+00 : f32
    %442 = vector.broadcast %cst_39 : f32 to vector<1x128xf32>
    %443 = arith.addf %442, %441 : vector<1x128xf32>
    %444 = arith.divf %442, %443 : vector<1x128xf32>
    %445 = arith.mulf %304, %444 : vector<1x128xf32>
    %446 = tpu.concatenate %397, %398, %405, %409, %413, %417, %421, %425, %429, %433, %437, %399, %407, %411, %415, %419 in 0 : vector<8x128xf32>, vector<1x128xf32>, vector<1x128xf32>, vector<1x128xf32>, vector<1x128xf32>, vector<1x128xf32>, vector<1x128xf32>, vector<1x128xf32>, vector<1x128xf32>, vector<1x128xf32>, vector<1x128xf32>, vector<1x128xf32>, vector<1x128xf32>, vector<1x128xf32>, vector<1x128xf32>, vector<1x128xf32> -> vector<23x128xf32>
    %447 = tpu.concatenate %423, %427, %431, %435, %439, %445 in 0 : vector<1x128xf32>, vector<1x128xf32>, vector<1x128xf32>, vector<1x128xf32>, vector<1x128xf32>, vector<1x128xf32> -> vector<6x128xf32>
    %448 = tpu.concatenate %446, %447 in 0 : vector<23x128xf32>, vector<6x128xf32> -> vector<29x128xf32>
    %449 = tpu.transpose %448, [1, 0] : vector<29x128xf32> -> vector<128x29xf32>
    %450 = vector.extract_strided_slice %5 {offsets = [2, 0, 0], sizes = [1, 29, 32], strides = [1, 1, 1]} : vector<4x29x32xf32> to vector<1x29x32xf32>
    %451 = vector.shape_cast %450 : vector<1x29x32xf32> to vector<29x32xf32>
    %cst_40 = arith.constant dense<0.000000e+00> : vector<128x32xf32>
    %452 = tpu.matmul %449, %451, %cst_40 {dimension_numbers = #tpu.dot_dimension_numbers<[1], [0], [0], [1], [0, 0, 1, 1], [], []>} : vector<128x29xf32>, vector<29x32xf32>, vector<128x32xf32> -> vector<128x32xf32>
    %453 = vector.extract_strided_slice %1 {offsets = [3, 0], sizes = [1, 128], strides = [1, 1]} : vector<4x128xf32> to vector<1x128xf32>
    %454 = vector.extract_strided_slice %3 {offsets = [0, 3], sizes = [12, 1], strides = [1, 1]} : vector<12x4xf32> to vector<12x1xf32>
    %455 = vector.extract_strided_slice %454 {offsets = [0, 0], sizes = [11, 1], strides = [1, 1]} : vector<12x1xf32> to vector<11x1xf32>
    %456 = vector.broadcast %453 : vector<1x128xf32> to vector<11x128xf32>
    %457 = vector.broadcast %455 : vector<11x1xf32> to vector<11x128xf32>
    %458 = arith.cmpf oge, %456, %457 : vector<11x128xf32>
    %459 = vector.extract_strided_slice %454 {offsets = [1, 0], sizes = [11, 1], strides = [1, 1]} : vector<12x1xf32> to vector<11x1xf32>
    %460 = vector.broadcast %453 : vector<1x128xf32> to vector<11x128xf32>
    %461 = vector.broadcast %459 : vector<11x1xf32> to vector<11x128xf32>
    %462 = arith.cmpf olt, %460, %461 : vector<11x128xf32>
    %463 = arith.andi %458, %462 : vector<11x128xi1>
    %464 = arith.extui %463 : vector<11x128xi1> to vector<11x128xi32>
    %465 = arith.sitofp %464 : vector<11x128xi32> to vector<11x128xf32>
    %466 = vector.extract_strided_slice %454 {offsets = [1, 0], sizes = [10, 1], strides = [1, 1]} : vector<12x1xf32> to vector<10x1xf32>
    %467 = vector.extract_strided_slice %454 {offsets = [0, 0], sizes = [10, 1], strides = [1, 1]} : vector<12x1xf32> to vector<10x1xf32>
    %468 = arith.subf %466, %467 : vector<10x1xf32>
    %cst_41 = arith.constant 1.000000e+00 : f32
    %469 = vector.broadcast %cst_41 : f32 to vector<10x1xf32>
    %470 = arith.divf %469, %468 : vector<10x1xf32>
    %471 = vector.extract_strided_slice %454 {offsets = [2, 0], sizes = [10, 1], strides = [1, 1]} : vector<12x1xf32> to vector<10x1xf32>
    %472 = vector.extract_strided_slice %454 {offsets = [1, 0], sizes = [10, 1], strides = [1, 1]} : vector<12x1xf32> to vector<10x1xf32>
    %473 = arith.subf %471, %472 : vector<10x1xf32>
    %cst_42 = arith.constant 1.000000e+00 : f32
    %474 = vector.broadcast %cst_42 : f32 to vector<10x1xf32>
    %475 = arith.divf %474, %473 : vector<10x1xf32>
    %476 = vector.extract_strided_slice %454 {offsets = [0, 0], sizes = [10, 1], strides = [1, 1]} : vector<12x1xf32> to vector<10x1xf32>
    %477 = vector.broadcast %453 : vector<1x128xf32> to vector<10x128xf32>
    %478 = vector.broadcast %476 : vector<10x1xf32> to vector<10x128xf32>
    %479 = arith.subf %477, %478 : vector<10x128xf32>
    %480 = vector.broadcast %470 : vector<10x1xf32> to vector<10x128xf32>
    %481 = arith.mulf %479, %480 : vector<10x128xf32>
    %482 = vector.extract_strided_slice %454 {offsets = [2, 0], sizes = [10, 1], strides = [1, 1]} : vector<12x1xf32> to vector<10x1xf32>
    %483 = vector.broadcast %482 : vector<10x1xf32> to vector<10x128xf32>
    %484 = vector.broadcast %453 : vector<1x128xf32> to vector<10x128xf32>
    %485 = arith.subf %483, %484 : vector<10x128xf32>
    %486 = vector.broadcast %475 : vector<10x1xf32> to vector<10x128xf32>
    %487 = arith.mulf %485, %486 : vector<10x128xf32>
    %488 = vector.extract_strided_slice %465 {offsets = [0, 0], sizes = [10, 128], strides = [1, 1]} : vector<11x128xf32> to vector<10x128xf32>
    %489 = arith.mulf %481, %488 : vector<10x128xf32>
    %490 = vector.extract_strided_slice %465 {offsets = [1, 0], sizes = [10, 128], strides = [1, 1]} : vector<11x128xf32> to vector<10x128xf32>
    %491 = arith.mulf %487, %490 : vector<10x128xf32>
    %492 = arith.addf %489, %491 : vector<10x128xf32>
    %493 = vector.extract_strided_slice %454 {offsets = [2, 0], sizes = [9, 1], strides = [1, 1]} : vector<12x1xf32> to vector<9x1xf32>
    %494 = vector.extract_strided_slice %454 {offsets = [0, 0], sizes = [9, 1], strides = [1, 1]} : vector<12x1xf32> to vector<9x1xf32>
    %495 = arith.subf %493, %494 : vector<9x1xf32>
    %cst_43 = arith.constant 1.000000e+00 : f32
    %496 = vector.broadcast %cst_43 : f32 to vector<9x1xf32>
    %497 = arith.divf %496, %495 : vector<9x1xf32>
    %498 = vector.extract_strided_slice %454 {offsets = [3, 0], sizes = [9, 1], strides = [1, 1]} : vector<12x1xf32> to vector<9x1xf32>
    %499 = vector.extract_strided_slice %454 {offsets = [1, 0], sizes = [9, 1], strides = [1, 1]} : vector<12x1xf32> to vector<9x1xf32>
    %500 = arith.subf %498, %499 : vector<9x1xf32>
    %cst_44 = arith.constant 1.000000e+00 : f32
    %501 = vector.broadcast %cst_44 : f32 to vector<9x1xf32>
    %502 = arith.divf %501, %500 : vector<9x1xf32>
    %503 = vector.extract_strided_slice %454 {offsets = [0, 0], sizes = [9, 1], strides = [1, 1]} : vector<12x1xf32> to vector<9x1xf32>
    %504 = vector.broadcast %453 : vector<1x128xf32> to vector<9x128xf32>
    %505 = vector.broadcast %503 : vector<9x1xf32> to vector<9x128xf32>
    %506 = arith.subf %504, %505 : vector<9x128xf32>
    %507 = vector.broadcast %497 : vector<9x1xf32> to vector<9x128xf32>
    %508 = arith.mulf %506, %507 : vector<9x128xf32>
    %509 = vector.extract_strided_slice %454 {offsets = [3, 0], sizes = [9, 1], strides = [1, 1]} : vector<12x1xf32> to vector<9x1xf32>
    %510 = vector.broadcast %509 : vector<9x1xf32> to vector<9x128xf32>
    %511 = vector.broadcast %453 : vector<1x128xf32> to vector<9x128xf32>
    %512 = arith.subf %510, %511 : vector<9x128xf32>
    %513 = vector.broadcast %502 : vector<9x1xf32> to vector<9x128xf32>
    %514 = arith.mulf %512, %513 : vector<9x128xf32>
    %515 = vector.extract_strided_slice %492 {offsets = [0, 0], sizes = [9, 128], strides = [1, 1]} : vector<10x128xf32> to vector<9x128xf32>
    %516 = arith.mulf %508, %515 : vector<9x128xf32>
    %517 = vector.extract_strided_slice %492 {offsets = [1, 0], sizes = [9, 128], strides = [1, 1]} : vector<10x128xf32> to vector<9x128xf32>
    %518 = arith.mulf %514, %517 : vector<9x128xf32>
    %519 = arith.addf %516, %518 : vector<9x128xf32>
    %520 = vector.extract_strided_slice %454 {offsets = [3, 0], sizes = [8, 1], strides = [1, 1]} : vector<12x1xf32> to vector<8x1xf32>
    %521 = vector.extract_strided_slice %454 {offsets = [0, 0], sizes = [8, 1], strides = [1, 1]} : vector<12x1xf32> to vector<8x1xf32>
    %522 = arith.subf %520, %521 : vector<8x1xf32>
    %cst_45 = arith.constant 1.000000e+00 : f32
    %523 = vector.broadcast %cst_45 : f32 to vector<8x1xf32>
    %524 = arith.divf %523, %522 : vector<8x1xf32>
    %525 = vector.extract_strided_slice %454 {offsets = [4, 0], sizes = [8, 1], strides = [1, 1]} : vector<12x1xf32> to vector<8x1xf32>
    %526 = vector.extract_strided_slice %454 {offsets = [1, 0], sizes = [8, 1], strides = [1, 1]} : vector<12x1xf32> to vector<8x1xf32>
    %527 = arith.subf %525, %526 : vector<8x1xf32>
    %cst_46 = arith.constant 1.000000e+00 : f32
    %528 = vector.broadcast %cst_46 : f32 to vector<8x1xf32>
    %529 = arith.divf %528, %527 : vector<8x1xf32>
    %530 = vector.extract_strided_slice %454 {offsets = [0, 0], sizes = [8, 1], strides = [1, 1]} : vector<12x1xf32> to vector<8x1xf32>
    %531 = vector.broadcast %453 : vector<1x128xf32> to vector<8x128xf32>
    %532 = vector.broadcast %530 : vector<8x1xf32> to vector<8x128xf32>
    %533 = arith.subf %531, %532 : vector<8x128xf32>
    %534 = vector.broadcast %524 : vector<8x1xf32> to vector<8x128xf32>
    %535 = arith.mulf %533, %534 : vector<8x128xf32>
    %536 = vector.extract_strided_slice %454 {offsets = [4, 0], sizes = [8, 1], strides = [1, 1]} : vector<12x1xf32> to vector<8x1xf32>
    %537 = vector.broadcast %536 : vector<8x1xf32> to vector<8x128xf32>
    %538 = vector.broadcast %453 : vector<1x128xf32> to vector<8x128xf32>
    %539 = arith.subf %537, %538 : vector<8x128xf32>
    %540 = vector.broadcast %529 : vector<8x1xf32> to vector<8x128xf32>
    %541 = arith.mulf %539, %540 : vector<8x128xf32>
    %542 = vector.extract_strided_slice %519 {offsets = [0, 0], sizes = [8, 128], strides = [1, 1]} : vector<9x128xf32> to vector<8x128xf32>
    %543 = arith.mulf %535, %542 : vector<8x128xf32>
    %544 = vector.extract_strided_slice %519 {offsets = [1, 0], sizes = [8, 128], strides = [1, 1]} : vector<9x128xf32> to vector<8x128xf32>
    %545 = arith.mulf %541, %544 : vector<8x128xf32>
    %546 = arith.addf %543, %545 : vector<8x128xf32>
    %547 = math.cos %453 : vector<1x128xf32>
    %548 = math.sin %453 : vector<1x128xf32>
    %cst_47 = arith.constant 2.000000e+00 : f32
    %549 = vector.broadcast %cst_47 : f32 to vector<1x128xf32>
    %550 = arith.mulf %549, %547 : vector<1x128xf32>
    %cst_48 = arith.constant 1.000000e+00 : f32
    %551 = vector.broadcast %cst_48 : f32 to vector<1x128xf32>
    %cst_49 = arith.constant 0.000000e+00 : f32
    %552 = vector.broadcast %cst_49 : f32 to vector<1x128xf32>
    %553 = arith.mulf %550, %547 : vector<1x128xf32>
    %554 = arith.subf %553, %551 : vector<1x128xf32>
    %555 = arith.mulf %550, %548 : vector<1x128xf32>
    %556 = arith.subf %555, %552 : vector<1x128xf32>
    %557 = arith.mulf %550, %554 : vector<1x128xf32>
    %558 = arith.subf %557, %547 : vector<1x128xf32>
    %559 = arith.mulf %550, %556 : vector<1x128xf32>
    %560 = arith.subf %559, %548 : vector<1x128xf32>
    %561 = arith.mulf %550, %558 : vector<1x128xf32>
    %562 = arith.subf %561, %554 : vector<1x128xf32>
    %563 = arith.mulf %550, %560 : vector<1x128xf32>
    %564 = arith.subf %563, %556 : vector<1x128xf32>
    %565 = arith.mulf %550, %562 : vector<1x128xf32>
    %566 = arith.subf %565, %558 : vector<1x128xf32>
    %567 = arith.mulf %550, %564 : vector<1x128xf32>
    %568 = arith.subf %567, %560 : vector<1x128xf32>
    %569 = arith.mulf %550, %566 : vector<1x128xf32>
    %570 = arith.subf %569, %562 : vector<1x128xf32>
    %571 = arith.mulf %550, %568 : vector<1x128xf32>
    %572 = arith.subf %571, %564 : vector<1x128xf32>
    %573 = arith.mulf %550, %570 : vector<1x128xf32>
    %574 = arith.subf %573, %566 : vector<1x128xf32>
    %575 = arith.mulf %550, %572 : vector<1x128xf32>
    %576 = arith.subf %575, %568 : vector<1x128xf32>
    %577 = arith.mulf %550, %574 : vector<1x128xf32>
    %578 = arith.subf %577, %570 : vector<1x128xf32>
    %579 = arith.mulf %550, %576 : vector<1x128xf32>
    %580 = arith.subf %579, %572 : vector<1x128xf32>
    %581 = arith.mulf %550, %578 : vector<1x128xf32>
    %582 = arith.subf %581, %574 : vector<1x128xf32>
    %583 = arith.mulf %550, %580 : vector<1x128xf32>
    %584 = arith.subf %583, %576 : vector<1x128xf32>
    %585 = arith.mulf %550, %582 : vector<1x128xf32>
    %586 = arith.subf %585, %578 : vector<1x128xf32>
    %587 = arith.mulf %550, %584 : vector<1x128xf32>
    %588 = arith.subf %587, %580 : vector<1x128xf32>
    %589 = arith.negf %453 : vector<1x128xf32>
    %590 = math.exp %589 : vector<1x128xf32>
    %cst_50 = arith.constant 1.000000e+00 : f32
    %591 = vector.broadcast %cst_50 : f32 to vector<1x128xf32>
    %592 = arith.addf %591, %590 : vector<1x128xf32>
    %593 = arith.divf %591, %592 : vector<1x128xf32>
    %594 = arith.mulf %453, %593 : vector<1x128xf32>
    %595 = tpu.concatenate %546, %547, %554, %558, %562, %566, %570, %574, %578, %582, %586, %548, %556, %560, %564, %568 in 0 : vector<8x128xf32>, vector<1x128xf32>, vector<1x128xf32>, vector<1x128xf32>, vector<1x128xf32>, vector<1x128xf32>, vector<1x128xf32>, vector<1x128xf32>, vector<1x128xf32>, vector<1x128xf32>, vector<1x128xf32>, vector<1x128xf32>, vector<1x128xf32>, vector<1x128xf32>, vector<1x128xf32>, vector<1x128xf32> -> vector<23x128xf32>
    %596 = tpu.concatenate %572, %576, %580, %584, %588, %594 in 0 : vector<1x128xf32>, vector<1x128xf32>, vector<1x128xf32>, vector<1x128xf32>, vector<1x128xf32>, vector<1x128xf32> -> vector<6x128xf32>
    %597 = tpu.concatenate %595, %596 in 0 : vector<23x128xf32>, vector<6x128xf32> -> vector<29x128xf32>
    %598 = tpu.transpose %597, [1, 0] : vector<29x128xf32> -> vector<128x29xf32>
    %599 = vector.extract_strided_slice %5 {offsets = [3, 0, 0], sizes = [1, 29, 32], strides = [1, 1, 1]} : vector<4x29x32xf32> to vector<1x29x32xf32>
    %600 = vector.shape_cast %599 : vector<1x29x32xf32> to vector<29x32xf32>
    %cst_51 = arith.constant dense<0.000000e+00> : vector<128x32xf32>
    %601 = tpu.matmul %598, %600, %cst_51 {dimension_numbers = #tpu.dot_dimension_numbers<[1], [0], [0], [1], [0, 0, 1, 1], [], []>} : vector<128x29xf32>, vector<29x32xf32>, vector<128x32xf32> -> vector<128x32xf32>
    %602 = tpu.concatenate %154, %303, %452, %601 in 1 : vector<128x32xf32>, vector<128x32xf32>, vector<128x32xf32>, vector<128x32xf32> -> vector<128x128xf32>
    %c0_52 = arith.constant 0 : index
    %c0_53 = arith.constant 0 : index
    %c0_54 = arith.constant 0 : index
    %603 = vector.load %arg5[%c0_52, %c0_53, %c0_54] : memref<1x1x128xf32, #tpu.memory_space<vmem>>, vector<1x1x128xf32>
    %604 = vector.shape_cast %603 : vector<1x1x128xf32> to vector<1x128xf32>
    %605 = vector.broadcast %604 : vector<1x128xf32> to vector<128x128xf32>
    %606 = arith.addf %602, %605 : vector<128x128xf32>
    %c0_55 = arith.constant 0 : index
    %c0_56 = arith.constant 0 : index
    %607 = vector.load %arg6[%c0_55, %c0_56] : memref<128x128xf32, #tpu.memory_space<vmem>>, vector<128x128xf32>
    tpu.vector_store %arg6[%c0_55, %c0_56], %606 {strides = array<i32>} : memref<128x128xf32, #tpu.memory_space<vmem>>, vector<128x128xf32>,
    return
  }
  func.func @transform_0(%arg0: i32, %arg1: i32) -> (i32, i32, i32) {
    %c0_i32 = arith.constant 0 : i32
    %c0_i32_0 = arith.constant 0 : i32
    return %arg0, %c0_i32, %arg1 : i32, i32, i32
  }
  func.func @transform_1(%arg0: i32, %arg1: i32) -> (i32, i32, i32) {
    %c0_i32 = arith.constant 0 : i32
    %c0_i32_0 = arith.constant 0 : i32
    %c0_i32_1 = arith.constant 0 : i32
    return %arg0, %c0_i32, %c0_i32_0 : i32, i32, i32
  }
  func.func @transform_2(%arg0: i32, %arg1: i32) -> (i32, i32, i32, i32) {
    %c0_i32 = arith.constant 0 : i32
    %c0_i32_0 = arith.constant 0 : i32
    %c0_i32_1 = arith.constant 0 : i32
    %c0_i32_2 = arith.constant 0 : i32
    return %arg0, %c0_i32, %c0_i32_0, %c0_i32_1 : i32, i32, i32, i32
  }
  func.func @transform_3(%arg0: i32, %arg1: i32) -> (i32, i32, i32) {
    %c0_i32 = arith.constant 0 : i32
    %c0_i32_0 = arith.constant 0 : i32
    %c0_i32_1 = arith.constant 0 : i32
    return %arg0, %c0_i32, %c0_i32_0 : i32, i32, i32
  }
  func.func @transform_4(%arg0: i32, %arg1: i32) -> (i32, i32) {
    %c0_i32 = arith.constant 0 : i32
    return %arg1, %arg0 : i32, i32
  }
}

</mosaic_0001>

<llo_original>
// kernel: tpu_custom_call.1
$region0: #{tpu_custom_call.1}
  #allocation0 [shape = 'u32[]', space=smem, size = 0x4, offset = 0x4, fixed_abs, tag = 'smem constant byte address 0x4 - core index']
  #allocation1 [shape = 'u32[144,128]{1,0:T(1,128)}', space=vmem, size = 0x12000, scoped, tag = 'internal scratch']
  %s0 = inlined_call_operand.vmem [shape: f32[4,4,256], index: 0, kind: input, shape index: {}]
  %s1 = inlined_call_operand.vmem [shape: f32[4,12,4], index: 1, kind: input, shape index: {}]
  %s2 = inlined_call_operand.vmem [shape: f32[4,4,29,32], index: 2, kind: input, shape index: {}]
  %s3 = inlined_call_operand.vmem [shape: f32[4,1,128], index: 3, kind: input, shape index: {}]
  %s4 = inlined_call_operand.hbm [shape: f32[256,512], index: 4, kind: output, shape index: {}]
  %s5 = sld [smem:[#allocation0]]
  $region49: #{tpu_custom_call.1} parent=0
    _
  %s7 = ssub.s32 1, %s5
  %s8 = scalar_select 0, %s7, %s5
  $region1: #{tpu_custom_call.1} parent=0
    #allocation2 [shape = 'u8[131072]{0}', space=vmem, size = 0x20000, scoped, tag = 'output window, operand 0']
    #allocation3 [shape = 's32[2]{0}', space=sflag, size = 0x8, scoped, tag = 'scoped memory for tpu_custom_call.1']
    %9 = vsyncpa [#allocation3], 0
    %s10 = scalar_lea.sflag [#allocation3], 1
    %11 = vsyncpa %s10, 0
    loop: start=0, step=1, limit=10
    $region2: #{tpu_custom_call.1} parent=1 // loop_pre_header
      _
    $region3: #{tpu_custom_call.1} parent=1 // loop_header
      %s13 = sphi 0, %s17
      %p14 = scmp.ge.s32.totalorder %s13, 10
      %s20 = sphi 0, %s32
      %s21 = sphi 0, %s28
      %s22 = sphi 0, %s20
      %s23 = sphi 0, %s21
      %s24 = sphi 0, %s22
      %s25 = sphi 0, %s23
      %s37 = sphi 0, %s39
      %s40 = sphi 0, %s37
      %s41 = sphi 0, %s40
      %s57 = sphi 0, %s41
      %s63 = sphi 0, %s65
      %s66 = sphi 0, %s63
      %s67 = sphi 0, %s66
      %s83 = sphi 0, %s67
      %s89 = sphi 0, %s91
      %s92 = sphi 0, %s89
      %s93 = sphi 0, %s92
      %s109 = sphi 0, %s93
      %s115 = sphi 0, %s117
      %s118 = sphi 0, %s115
      %s119 = sphi 0, %s118
      %s135 = sphi 0, %s119
      %s143 = sphi 0, %s145
      %s146 = sphi 0, %s143
      %s147 = sphi 0, %s146
      %s163 = sphi 0, %s147
    $region4: #{tpu_custom_call.1} parent=1 // loop_header_branch
      %16 = sbr.rel (%p14) target = $region8
    $region5: #{tpu_custom_call.1} parent=1 // loop_body
      %s18 = ssub.s32 %s13, 1
      %s19 = ssub.s32 %s13, 2
      %s26 = sadd.s32 1, %s21
      %p27 = scmp.ge.s32.totalorder %s26, 2
      %s28 = scalar_select %p27, 0, %s26
      %s29 = sadd.s32 1, %s20
      %s30 = scalar_select %p27, %s29, %s20
      %p31 = scmp.ge.s32.totalorder %s30, 4
      %s32 = scalar_select %p31, 0, %s30
      %s33 = ssub.s32 %s20, %s32
      %s34 = ssub.s32 %s21, %s28
      %s35 = sor.u32 %s33, %s34
      %p36 = scmp.eq.s32.totalorder %s35, 0
      %s38 = sadd.s32 %s37, 1
      %s39 = scalar_select %p36, %s37, %s38
      %p42 = pneg %p36
      %p43 = scmp.eq.s32.totalorder %s13, 7
      %p44 = por %p42, %p43
      %p45 = scmp.ne.s32.totalorder %s37, %s40
      %p46 = scmp.eq.s32.totalorder %s13, 0
      %p47 = por %p45, %p46
      %p48 = scmp.ne.s32.totalorder %s37, %s40
      %p49 = scmp.eq.s32.totalorder %s18, 7
      %p50 = por %p48, %p49
      %p51 = scmp.ne.s32.totalorder %s40, %s41
      %p52 = scmp.eq.s32.totalorder %s18, 0
      %p53 = por %p51, %p52
      %p54 = scmp.ne.s32.totalorder %s40, %s41
      %p55 = scmp.eq.s32.totalorder %s19, 7
      %p56 = por %p54, %p55
      %p58 = scmp.ne.s32.totalorder %s41, %s57
      %p59 = scmp.eq.s32.totalorder %s19, 0
      %p60 = por %p58, %p59
      %s61 = ssub.s32 %s20, %s32
      %p62 = scmp.eq.s32.totalorder %s61, 0
      %s64 = sadd.s32 %s63, 1
      %s65 = scalar_select %p62, %s63, %s64
      %p68 = pneg %p62
      %p69 = scmp.eq.s32.totalorder %s13, 7
      %p70 = por %p68, %p69
      %p71 = scmp.ne.s32.totalorder %s63, %s66
      %p72 = scmp.eq.s32.totalorder %s13, 0
      %p73 = por %p71, %p72
      %p74 = scmp.ne.s32.totalorder %s63, %s66
      %p75 = scmp.eq.s32.totalorder %s18, 7
      %p76 = por %p74, %p75
      %p77 = scmp.ne.s32.totalorder %s66, %s67
      %p78 = scmp.eq.s32.totalorder %s18, 0
      %p79 = por %p77, %p78
      %p80 = scmp.ne.s32.totalorder %s66, %s67
      %p81 = scmp.eq.s32.totalorder %s19, 7
      %p82 = por %p80, %p81
      %p84 = scmp.ne.s32.totalorder %s67, %s83
      %p85 = scmp.eq.s32.totalorder %s19, 0
      %p86 = por %p84, %p85
      %s87 = ssub.s32 %s20, %s32
      %p88 = scmp.eq.s32.totalorder %s87, 0
      %s90 = sadd.s32 %s89, 1
      %s91 = scalar_select %p88, %s89, %s90
      %p94 = pneg %p88
      %p95 = scmp.eq.s32.totalorder %s13, 7
      %p96 = por %p94, %p95
      %p97 = scmp.ne.s32.totalorder %s89, %s92
      %p98 = scmp.eq.s32.totalorder %s13, 0
      %p99 = por %p97, %p98
      %p100 = scmp.ne.s32.totalorder %s89, %s92
      %p101 = scmp.eq.s32.totalorder %s18, 7
      %p102 = por %p100, %p101
      %p103 = scmp.ne.s32.totalorder %s92, %s93
      %p104 = scmp.eq.s32.totalorder %s18, 0
      %p105 = por %p103, %p104
      %p106 = scmp.ne.s32.totalorder %s92, %s93
      %p107 = scmp.eq.s32.totalorder %s19, 7
      %p108 = por %p106, %p107
      %p110 = scmp.ne.s32.totalorder %s93, %s109
      %p111 = scmp.eq.s32.totalorder %s19, 0
      %p112 = por %p110, %p111
      %s113 = ssub.s32 %s20, %s32
      %p114 = scmp.eq.s32.totalorder %s113, 0
      %s116 = sadd.s32 %s115, 1
      %s117 = scalar_select %p114, %s115, %s116
      %p120 = pneg %p114
      %p121 = scmp.eq.s32.totalorder %s13, 7
      %p122 = por %p120, %p121
      %p123 = scmp.ne.s32.totalorder %s115, %s118
      %p124 = scmp.eq.s32.totalorder %s13, 0
      %p125 = por %p123, %p124
      %p126 = scmp.ne.s32.totalorder %s115, %s118
      %p127 = scmp.eq.s32.totalorder %s18, 7
      %p128 = por %p126, %p127
      %p129 = scmp.ne.s32.totalorder %s118, %s119
      %p130 = scmp.eq.s32.totalorder %s18, 0
      %p131 = por %p129, %p130
      %p132 = scmp.ne.s32.totalorder %s118, %s119
      %p133 = scmp.eq.s32.totalorder %s19, 7
      %p134 = por %p132, %p133
      %p136 = scmp.ne.s32.totalorder %s119, %s135
      %p137 = scmp.eq.s32.totalorder %s19, 0
      %p138 = por %p136, %p137
      %s139 = ssub.s32 %s21, %s28
      %s140 = ssub.s32 %s20, %s32
      %s141 = sor.u32 %s139, %s140
      %p142 = scmp.eq.s32.totalorder %s141, 0
      %s144 = sadd.s32 %s143, 1
      %s145 = scalar_select %p142, %s143, %s144
      %p148 = pneg %p142
      %p149 = scmp.eq.s32.totalorder %s13, 7
      %p150 = por %p148, %p149
      %p151 = scmp.ne.s32.totalorder %s143, %s146
      %p152 = scmp.eq.s32.totalorder %s13, 0
      %p153 = por %p151, %p152
      %p154 = scmp.ne.s32.totalorder %s143, %s146
      %p155 = scmp.eq.s32.totalorder %s18, 7
      %p156 = por %p154, %p155
      %p157 = scmp.ne.s32.totalorder %s146, %s147
      %p158 = scmp.eq.s32.totalorder %s18, 0
      %p159 = por %p157, %p158
      %p160 = scmp.ne.s32.totalorder %s146, %s147
      %p161 = scmp.eq.s32.totalorder %s19, 7
      %p162 = por %p160, %p161
      %p164 = scmp.ne.s32.totalorder %s147, %s163
      %p165 = scmp.eq.s32.totalorder %s19, 0
      %p166 = por %p164, %p165
      %p167 = scmp.le.s32.totalorder 1, %s13
      %p168 = scmp.lt.s32.totalorder %s13, 9
      %p169 = pnand %p167, %p168
      %p170 = pneg %p169
      // Predicated region
      $region9: #{tpu_custom_call.1} parent=5 // pred_check
        _
      $region10: #{tpu_custom_call.1} parent=5 // pred_check_branch
        %172 = sbr.rel (%p169) target = $region12
      $region11: #{tpu_custom_call.1} parent=5 // pred_region
        %s173 = ssub.s32 %s13, 1
      $region12: #{tpu_custom_call.1} parent=5 // pred_fallthru
        _
      %p174 = scmp.lt.s32.totalorder %s13, 8
      // Predicated region
      $region13: #{tpu_custom_call.1} parent=5 // pred_check
        %p175 = pneg %p174
      $region14: #{tpu_custom_call.1} parent=5 // pred_check_branch
        %177 = sbr.rel (%p175) target = $region16
      $region15: #{tpu_custom_call.1} parent=5 // pred_region
        // Predicated region
        $region17: #{tpu_custom_call.1} parent=15 // pred_check
          %p178 = pneg %p47
        $region18: #{tpu_custom_call.1} parent=15 // pred_check_branch
          %180 = sbr.rel (%p178) target = $region20
        $region19: #{tpu_custom_call.1} parent=15 // pred_region
          %p181 = scmp.lt.s32.totalorder %s20, 3
          %s182 = scalar_select %p181, %s20, 3
          %p183 = scmp.lt.s32.totalorder %s21, 1
          %s184 = scalar_select %p183, %s21, 1
          %s185 = smul.addr %s182, 2
          %s186 = sadd.s32 %s184, %s185
          %s187 = smul.addr %s186, 4
          %s188 = scalar_lea.vmem %s0, %s187
        $region20: #{tpu_custom_call.1} parent=15 // pred_fallthru
          _
        // Predicated region
        $region21: #{tpu_custom_call.1} parent=15 // pred_check
          %p189 = pneg %p73
        $region22: #{tpu_custom_call.1} parent=15 // pred_check_branch
          %191 = sbr.rel (%p189) target = $region24
        $region23: #{tpu_custom_call.1} parent=15 // pred_region
          %p192 = scmp.lt.s32.totalorder %s20, 3
          %s193 = scalar_select %p192, %s20, 3
          %s194 = smul.addr %s193, 2
          %s195 = smul.addr %s194, 8
          %s196 = scalar_lea.vmem %s1, %s195
        $region24: #{tpu_custom_call.1} parent=15 // pred_fallthru
          _
        // Predicated region
        $region25: #{tpu_custom_call.1} parent=15 // pred_check
          %p197 = pneg %p99
        $region26: #{tpu_custom_call.1} parent=15 // pred_check_branch
          %199 = sbr.rel (%p197) target = $region28
        $region27: #{tpu_custom_call.1} parent=15 // pred_region
          %p200 = scmp.lt.s32.totalorder %s20, 3
          %s201 = scalar_select %p200, %s20, 3
          %s202 = smul.addr %s201, 16
          %s203 = smul.addr %s202, 8
          %s204 = scalar_lea.vmem %s2, %s203
        $region28: #{tpu_custom_call.1} parent=15 // pred_fallthru
          _
        // Predicated region
        $region29: #{tpu_custom_call.1} parent=15 // pred_check
          %p205 = pneg %p125
        $region30: #{tpu_custom_call.1} parent=15 // pred_check_branch
          %207 = sbr.rel (%p205) target = $region32
        $region31: #{tpu_custom_call.1} parent=15 // pred_region
          %p208 = scmp.lt.s32.totalorder %s20, 3
          %s209 = scalar_select %p208, %s20, 3
          %s210 = scalar_lea.vmem %s3, %s209
        $region32: #{tpu_custom_call.1} parent=15 // pred_fallthru
          _
      $region16: #{tpu_custom_call.1} parent=5 // pred_fallthru
        _
      %p211 = scmp.le.s32.totalorder 1, %s13
      %p212 = scmp.lt.s32.totalorder %s13, 9
      %p213 = pnand %p211, %p212
      %p214 = pneg %p213
      // Predicated region
      $region33: #{tpu_custom_call.1} parent=5 // pred_check
        _
      $region34: #{tpu_custom_call.1} parent=5 // pred_check_branch
        %216 = sbr.rel (%p213) target = $region36
      $region35: #{tpu_custom_call.1} parent=5 // pred_region
        %s217 = ssub.s32 %s13, 1
        %p218 = scmp.lt.s32.totalorder %s22, 3
        %s219 = scalar_select %p218, %s22, 3
        %p220 = scmp.lt.s32.totalorder %s23, 1
        %s221 = scalar_select %p220, %s23, 1
        %s222 = smul.addr %s219, 2
        %s223 = sadd.s32 %s221, %s222
        %s224 = smul.addr %s223, 4
        %s225 = scalar_lea.vmem %s0, %s224
        %p226 = pneg %p53
        %p227 = pneg %p50
        %p228 = scmp.lt.s32.totalorder %s22, 3
        %s229 = scalar_select %p228, %s22, 3
        %s230 = smul.addr %s229, 2
        %s231 = smul.addr %s230, 8
        %s232 = scalar_lea.vmem %s1, %s231
        %p233 = pneg %p79
        %p234 = pneg %p76
        %p235 = scmp.lt.s32.totalorder %s22, 3
        %s236 = scalar_select %p235, %s22, 3
        %s237 = smul.addr %s236, 16
        %s238 = smul.addr %s237, 8
        %s239 = scalar_lea.vmem %s2, %s238
        %p240 = pneg %p105
        %p241 = pneg %p102
        %p242 = scmp.lt.s32.totalorder %s22, 3
        %s243 = scalar_select %p242, %s22, 3
        %s244 = scalar_lea.vmem %s3, %s243
        %p245 = pneg %p131
        %p246 = pneg %p128
        %p247 = pneg %p159
        %p248 = pneg %p156
        %s249 = sand.u32 %s146, 1
        %s250 = scalar_lea.sflag [#allocation3], %s249
        %s251 = sand.u32 %s146, 1
        %s252 = smul.addr %s251, 128
        %s253 = scalar_lea.vmem [#allocation2], %s252
        %p254 = scmp.lt.s32.totalorder %s22, 3
        %s255 = scalar_select %p254, %s22, 3
        %p256 = scmp.lt.s32.totalorder %s23, 1
        %s257 = scalar_select %p256, %s23, 1
        %s258 = smul.addr %s255, 2
        %s259 = sadd.s32 %s257, %s258
        %s260 = smul.addr %s259, 4
        %s261 = scalar_lea.vmem %s0, %s260
        %p262 = scmp.lt.s32.totalorder %s22, 3
        %s263 = scalar_select %p262, %s22, 3
        %s264 = smul.addr %s263, 2
        %s265 = smul.addr %s264, 8
        %s266 = scalar_lea.vmem %s1, %s265
        %p267 = scmp.lt.s32.totalorder %s22, 3
        %s268 = scalar_select %p267, %s22, 3
        %s269 = smul.addr %s268, 16
        %s270 = smul.addr %s269, 8
        %s271 = scalar_lea.vmem %s2, %s270
        %p272 = scmp.lt.s32.totalorder %s22, 3
        %s273 = scalar_select %p272, %s22, 3
        %s274 = scalar_lea.vmem %s3, %s273
        %s275 = smul.u32 16, %s23
        %v276 = vld [vmem:[%s261] sm:$0xf]
        %v277 = vld [vmem:[%s266] sm:$0xff]
        %v278 = vld [vmem:[%s266 + $0x8] sm:$0xf]
        %v279 = vld [vmem:[%s271] sm:$0xff]
        %v280 = vld [vmem:[%s271 + $0x8] sm:$0xff]
        %v281 = vld [vmem:[%s271 + $0x10] sm:$0xff]
        %v282 = vld [vmem:[%s271 + $0x18] sm:$0x1f]
        %v283 = vld [vmem:[%s271 + $0x20] sm:$0xff]
        %v284 = vld [vmem:[%s271 + $0x28] sm:$0xff]
        %v285 = vld [vmem:[%s271 + $0x30] sm:$0xff]
        %v286 = vld [vmem:[%s271 + $0x38] sm:$0x1f]
        %v287 = vld [vmem:[%s271 + $0x40] sm:$0xff]
        %v288 = vld [vmem:[%s271 + $0x48] sm:$0xff]
        %v289 = vld [vmem:[%s271 + $0x50] sm:$0xff]
        %v290 = vld [vmem:[%s271 + $0x58] sm:$0x1f]
        %v291 = vld [vmem:[%s271 + $0x60] sm:$0xff]
        %v292 = vld [vmem:[%s271 + $0x68] sm:$0xff]
        %v293 = vld [vmem:[%s271 + $0x70] sm:$0xff]
        %v294 = vld [vmem:[%s271 + $0x78] sm:$0x1f]
        %v295 = vlaneseq
        %v296 = vshrl.u32 %v295, 7
        %v297 = vsub.s32 0, %v296
        %v298 = vrot.slane %v276, %v297
        %300 = vset.pattern.permute.xlu0 0
        %301 = vperm.xlu0 %300, %v277
        %v302 = vpop.permute.xlu0 %301
        %305 = vset.pattern.permute.xlu0 0
        %306 = vperm.xlu0 %305, %v278
        %v307 = vpop.permute.xlu0 %306
        %vm309 = vcmp.ge.f32.partialorder %v298, %v302
        %vm310 = vcmp.ge.f32.partialorder %v298, %v307
        %vm311 = vcmp.lt.f32.partialorder %v298, %v302
        %vm312 = vcmp.lt.f32.partialorder %v298, %v307
        %v313 = vsel %vm311, 1, 0
        %v314 = vsel %vm312, 1, 0
        %vm315 = vcmask 1046528
        %v316 = vrot.slane %v313, 1
        %v317 = vrot.slane %v314, 1
        %v318 = vsel %vm315, %v316, %v317
        %vm319 = vcmp.ne.s32.totalorder %v318, 0
        %vm320 = vcmp.ne.s32.totalorder %v317, 0
        %vm321 = vmand %vm309, %vm319
        %vm322 = vmand %vm310, %vm320
        %v323 = vsel %vm321, 1, 0
        %v324 = vsel %vm322, 1, 0
        %v325 = vcvt.s32.f32 %v323
        %v326 = vcvt.s32.f32 %v324
        %vm327 = vcmask 1040384
        %v328 = vrot.slane %v277, 7
        %v329 = vrot.slane %v278, 7
        %v330 = vsel %vm327, %v328, %v329
        %v333 = vsub.f32 %v277, %v328
        %v334 = vsub.f32 %v278, %v330
        %v335 = vrcp.pop %v333
        %v336 = vmul.f32 1.0, %v335
        %v337 = vrcp.pop %v334
        %v338 = vmul.f32 1.0, %v337
        %v339 = vsub.f32 %v298, %v302
        %v340 = vsub.f32 %v298, %v307
        %342 = vset.pattern.permute.xlu0 0
        %343 = vperm.xlu0 %342, %v336
        %v344 = vpop.permute.xlu0 %343
        %346 = vset.pattern.permute.xlu0 0
        %347 = vperm.xlu0 %346, %v338
        %v348 = vpop.permute.xlu0 %347
        %v349 = vrot.slane %v344, 1
        %v350 = vrot.slane %v348, 1
        %v351 = vsel %vm315, %v349, %v350
        %v354 = vmul.f32 %v339, %v351
        %v355 = vmul.f32 %v340, %v350
        %v356 = vsub.f32 %v302, %v298
        %v357 = vsub.f32 %v307, %v298
        %v360 = vmul.f32 %v356, %v344
        %v361 = vmul.f32 %v357, %v348
        %v362 = vmul.f32 %v354, %v325
        %v363 = vmul.f32 %v355, %v326
        %v366 = vrot.slane %v325, 7
        %v367 = vrot.slane %v326, 7
        %v368 = vsel %vm327, %v366, %v367
        %v371 = vmul.f32 %v360, %v366
        %v372 = vmul.f32 %v361, %v368
        %vm375 = vcmask 1045504
        %v376 = vrot.slane %v371, 2
        %v377 = vrot.slane %v372, 2
        %v378 = vsel %vm375, %v376, %v377
        %v381 = vadd.f32 %v362, %v378
        %v382 = vadd.f32 %v363, %v377
        %vm383 = vcmask 1041408
        %v384 = vrot.slane %v277, 6
        %v385 = vrot.slane %v278, 6
        %v386 = vsel %vm383, %v384, %v385
        %v389 = vsub.f32 %v277, %v384
        %v390 = vsub.f32 %v278, %v386
        %v391 = vrcp.pop %v389
        %v392 = vmul.f32 1.0, %v391
        %v393 = vrcp.pop %v390
        %v394 = vmul.f32 1.0, %v393
        %396 = vset.pattern.permute.xlu0 0
        %397 = vperm.xlu0 %396, %v392
        %v398 = vpop.permute.xlu0 %397
        %400 = vset.pattern.permute.xlu0 0
        %401 = vperm.xlu0 %400, %v394
        %v402 = vpop.permute.xlu0 %401
        %v403 = vrot.slane %v398, 2
        %v404 = vrot.slane %v402, 2
        %v405 = vsel %vm375, %v403, %v404
        %v408 = vmul.f32 %v339, %v405
        %v409 = vmul.f32 %v340, %v404
        %v412 = vmul.f32 %v356, %v398
        %v413 = vmul.f32 %v357, %v402
        %v414 = vmul.f32 %v408, %v381
        %v415 = vmul.f32 %v409, %v382
        %v418 = vrot.slane %v381, 6
        %v419 = vrot.slane %v382, 6
        %v420 = vsel %vm383, %v418, %v419
        %v423 = vmul.f32 %v412, %v418
        %v424 = vmul.f32 %v413, %v420
        %vm427 = vcmask 1044480
        %v428 = vrot.slane %v423, 3
        %v429 = vrot.slane %v424, 3
        %v430 = vsel %vm427, %v428, %v429
        %v433 = vadd.f32 %v414, %v430
        %v434 = vadd.f32 %v415, %v429
        %v435 = vrot.slane %v277, 5
        %v437 = vsub.f32 %v277, %v435
        %v438 = vsub.f32 %v278, %v435
        %v439 = vrcp.pop %v437
        %v440 = vmul.f32 1.0, %v439
        %v441 = vrcp.pop %v438
        %v442 = vmul.f32 1.0, %v441
        %vm443 = vcmask 1042432
        %v444 = vrot.slane %v278, 5
        %v445 = vsel %vm443, %v435, %v444
        %v447 = vsub.f32 %v278, %v445
        %v448 = vrcp.pop %v447
        %v449 = vmul.f32 1.0, %v448
        %451 = vset.pattern.permute.xlu0 0
        %452 = vperm.xlu0 %451, %v440
        %v453 = vpop.permute.xlu0 %452
        %455 = vset.pattern.permute.xlu0 0
        %456 = vperm.xlu0 %455, %v442
        %v457 = vpop.permute.xlu0 %456
        %v458 = vrot.slane %v453, 3
        %v459 = vrot.slane %v457, 3
        %v460 = vsel %vm427, %v458, %v459
        %v462 = vmul.f32 %v339, %v460
        %465 = vset.pattern.permute.xlu0 0
        %466 = vperm.xlu0 %465, %v449
        %v467 = vpop.permute.xlu0 %466
        %v469 = vmul.f32 %v356, %v453
        %v470 = vmul.f32 %v357, %v467
        %v471 = vmul.f32 %v462, %v433
        %v474 = vrot.slane %v433, 5
        %v475 = vrot.slane %v434, 5
        %v476 = vsel %vm443, %v474, %v475
        %v479 = vmul.f32 %v469, %v474
        %v480 = vmul.f32 %v470, %v476
        %vm483 = vcmask 1043456
        %v484 = vrot.slane %v479, 4
        %v485 = vrot.slane %v480, 4
        %v486 = vsel %vm483, %v484, %v485
        %v488 = vadd.f32 %v471, %v486
        %v489 = vand.u32 2147483647, %v276
        %vm490 = vcmp.le.f32.partialorder %v489, 0.7853982
        %vm491 = vcmp.lt.s32.totalorder %v276, 0
        %v492 = vand.u32 %v276, 2139095040
        %v493 = vshrl.u32 %v492, 23
        %v494 = vsub.s32 %v493, 127
        %v495 = vand.u32 2147483647, %v276
        %v496 = vand.u32 %v495, 8388607
        %v497 = vor.u32 %v496, 8388608
        %v498 = vsub.s32 0, %v497
        %v499 = vadd.s32 %v494, 1
        %vm500 = vcmp.gt.s32.totalorder %v499, 0
        %v501 = vsel %vm500, %v499, 0
        %v502 = vshrl.u32 %v501, 5
        %v503 = vand.u32 %v501, 31
        %v504 = vsub.s32 32, %v503
        %v505 = vshrl.u32 683565275, %v504
        %v506 = vshll.u32 683565275, %v503
        %v507 = vshrl.u32 2475754826, %v504
        %v508 = vor.u32 %v506, %v507
        %v509 = vshll.u32 2475754826, %v503
        %v510 = vshrl.u32 2131351028, %v504
        %v511 = vor.u32 %v509, %v510
        %v512 = vshll.u32 2131351028, %v503
        %v513 = vshrl.u32 2102212464, %v504
        %v514 = vor.u32 %v512, %v513
        %v515 = vshll.u32 2102212464, %v503
        %v516 = vshrl.u32 920167782, %v504
        %v517 = vor.u32 %v515, %v516
        %v518 = vshll.u32 920167782, %v503
        %v519 = vshrl.u32 1326507024, %v504
        %v520 = vor.u32 %v518, %v519
        %vm521 = vcmp.lt.s32.totalorder %v502, 1
        %vm522 = vcmp.lt.s32.totalorder %v502, 2
        %vm523 = vcmp.lt.s32.totalorder %v502, 3
        %vm524 = vcmp.lt.s32.totalorder %v502, 4
        %v525 = vsel %vm521, %v505, %v508
        %v526 = vsel %vm524, %v514, 2102212464
        %v527 = vsel %vm523, %v511, %v526
        %v528 = vsel %vm522, %v525, %v527
        %v529 = vsel %vm521, %v508, %v511
        %v530 = vsel %vm524, %v517, 920167782
        %v531 = vsel %vm523, %v514, %v530
        %v532 = vsel %vm522, %v529, %v531
        %v533 = vsel %vm521, %v511, %v514
        %v534 = vsel %vm524, %v520, 1326507024
        %v535 = vsel %vm523, %v517, %v534
        %v536 = vsel %vm522, %v533, %v535
        %v537 = vshll.u32 %v497, 8
        %v538 = vmul.u32.u64.compose %v537, %v536
        %v539 = vextract.low.u32 %v538
        %v540 = vextract.high.u32 %v538
        %v541 = vmul.u32.u64.compose %v537, %v532
        %v542 = vextract.low.u32 %v541
        %v543 = vextract.high.u32 %v541
        %v544 = vmul.u32 %v537, %v528
        %v545 = vadd.s32 %v540, %v542
        %vm546 = vc.u32 %v540, %v542
        %v547 = vadd.s32 %v543, 1
        %v548 = vsel %vm546, %v547, %v543
        %v549 = vadd.s32 %v544, %v548
        %v550 = vadd.s32 %v549, 536870912
        %v551 = vshrl.u32 %v550, 30
        %v552 = vshll.u32 %v551, 30
        %v553 = vsub.s32 %v549, %v552
        %vm554 = vcmp.lt.s32.totalorder %v553, 0
        %v555 = vsub.s32 0, %v553
        %v556 = vsel %vm554, %v555, %v553
        %v557 = vclz %v556
        %v558 = vsub.s32 %v557, 2
        %vm559 = vcmp.gt.s32.totalorder 0, %v558
        %v560 = vsel %vm559, 0, %v558
        %v561 = vsub.s32 32, %v560
        %v562 = vshll.u32 %v553, %v560
        %v563 = vshrl.u32 %v545, %v561
        %v564 = vor.u32 %v562, %v563
        %v565 = vsub.s32 4294967266, %v560
        %v566 = vadd.s32 %v565, 127
        %v567 = vshll.u32 %v566, 23
        %v568 = vor.u32 4788187, %v567
        %v569 = vand.u32 2147483647, %v568
        %v571 = vcvt.s32.f32 %v564
        %v572 = vmul.f32 %v571, %v569
        %v573 = vxor.u32 %v572, 2147483648
        %v574 = vsel %vm491, %v573, %v572
        %v575 = vsub.s32 4, %v551
        %v576 = vsel %vm491, %v575, %v551
        %v577 = vsel %vm490, %v276, %v574
        %v578 = vsel %vm490, 0, %v576
        %v579 = vcosq.f32.pop %v577
        %v580 = vsinq.f32.pop %v577
        %vm581 = vweird.f32 %v276
        %v582 = vand.u32 %v578, 3
        %vm583 = vcmp.lt.s32.totalorder %v582, 2
        %vm584 = vcmp.eq.s32.totalorder %v582, 0
        %v585 = vxor.u32 %v580, 2147483648
        %v586 = vsel %vm584, %v579, %v585
        %vm587 = vcmp.eq.s32.totalorder %v582, 2
        %v588 = vxor.u32 %v579, 2147483648
        %v589 = vsel %vm587, %v588, %v580
        %v590 = vsel %vm583, %v586, %v589
        %v591 = vsel %vm581, nan, %v590
        %v592 = vand.u32 2147483647, %v276
        %vm593 = vcmp.le.f32.partialorder %v592, 0.7853982
        %vm594 = vcmp.lt.s32.totalorder %v276, 0
        %v595 = vand.u32 %v276, 2139095040
        %v596 = vshrl.u32 %v595, 23
        %v597 = vsub.s32 %v596, 127
        %v598 = vand.u32 2147483647, %v276
        %v599 = vand.u32 %v598, 8388607
        %v600 = vor.u32 %v599, 8388608
        %v601 = vsub.s32 0, %v600
        %v602 = vadd.s32 %v597, 1
        %vm603 = vcmp.gt.s32.totalorder %v602, 0
        %v604 = vsel %vm603, %v602, 0
        %v605 = vshrl.u32 %v604, 5
        %v606 = vand.u32 %v604, 31
        %v607 = vsub.s32 32, %v606
        %v608 = vshrl.u32 683565275, %v607
        %v609 = vshll.u32 683565275, %v606
        %v610 = vshrl.u32 2475754826, %v607
        %v611 = vor.u32 %v609, %v610
        %v612 = vshll.u32 2475754826, %v606
        %v613 = vshrl.u32 2131351028, %v607
        %v614 = vor.u32 %v612, %v613
        %v615 = vshll.u32 2131351028, %v606
        %v616 = vshrl.u32 2102212464, %v607
        %v617 = vor.u32 %v615, %v616
        %v618 = vshll.u32 2102212464, %v606
        %v619 = vshrl.u32 920167782, %v607
        %v620 = vor.u32 %v618, %v619
        %v621 = vshll.u32 920167782, %v606
        %v622 = vshrl.u32 1326507024, %v607
        %v623 = vor.u32 %v621, %v622
        %vm624 = vcmp.lt.s32.totalorder %v605, 1
        %vm625 = vcmp.lt.s32.totalorder %v605, 2
        %vm626 = vcmp.lt.s32.totalorder %v605, 3
        %vm627 = vcmp.lt.s32.totalorder %v605, 4
        %v628 = vsel %vm624, %v608, %v611
        %v629 = vsel %vm627, %v617, 2102212464
        %v630 = vsel %vm626, %v614, %v629
        %v631 = vsel %vm625, %v628, %v630
        %v632 = vsel %vm624, %v611, %v614
        %v633 = vsel %vm627, %v620, 920167782
        %v634 = vsel %vm626, %v617, %v633
        %v635 = vsel %vm625, %v632, %v634
        %v636 = vsel %vm624, %v614, %v617
        %v637 = vsel %vm627, %v623, 1326507024
        %v638 = vsel %vm626, %v620, %v637
        %v639 = vsel %vm625, %v636, %v638
        %v640 = vshll.u32 %v600, 8
        %v641 = vmul.u32.u64.compose %v640, %v639
        %v642 = vextract.low.u32 %v641
        %v643 = vextract.high.u32 %v641
        %v644 = vmul.u32.u64.compose %v640, %v635
        %v645 = vextract.low.u32 %v644
        %v646 = vextract.high.u32 %v644
        %v647 = vmul.u32 %v640, %v631
        %v648 = vadd.s32 %v643, %v645
        %vm649 = vc.u32 %v643, %v645
        %v650 = vadd.s32 %v646, 1
        %v651 = vsel %vm649, %v650, %v646
        %v652 = vadd.s32 %v647, %v651
        %v653 = vadd.s32 %v652, 536870912
        %v654 = vshrl.u32 %v653, 30
        %v655 = vshll.u32 %v654, 30
        %v656 = vsub.s32 %v652, %v655
        %vm657 = vcmp.lt.s32.totalorder %v656, 0
        %v658 = vsub.s32 0, %v656
        %v659 = vsel %vm657, %v658, %v656
        %v660 = vclz %v659
        %v661 = vsub.s32 %v660, 2
        %vm662 = vcmp.gt.s32.totalorder 0, %v661
        %v663 = vsel %vm662, 0, %v661
        %v664 = vsub.s32 32, %v663
        %v665 = vshll.u32 %v656, %v663
        %v666 = vshrl.u32 %v648, %v664
        %v667 = vor.u32 %v665, %v666
        %v668 = vsub.s32 4294967266, %v663
        %v669 = vadd.s32 %v668, 127
        %v670 = vshll.u32 %v669, 23
        %v671 = vor.u32 4788187, %v670
        %v672 = vand.u32 2147483647, %v671
        %v674 = vcvt.s32.f32 %v667
        %v675 = vmul.f32 %v674, %v672
        %v676 = vxor.u32 %v675, 2147483648
        %v677 = vsel %vm594, %v676, %v675
        %v678 = vsub.s32 4, %v654
        %v679 = vsel %vm594, %v678, %v654
        %v680 = vsel %vm593, %v276, %v677
        %v681 = vsel %vm593, 0, %v679
        %v682 = vcosq.f32.pop %v680
        %v683 = vsinq.f32.pop %v680
        %vm684 = vweird.f32 %v276
        %v685 = vadd.s32 %v681, 3
        %v686 = vand.u32 %v685, 3
        %vm687 = vcmp.lt.s32.totalorder %v686, 2
        %vm688 = vcmp.eq.s32.totalorder %v686, 0
        %v689 = vxor.u32 %v683, 2147483648
        %v690 = vsel %vm688, %v682, %v689
        %vm691 = vcmp.eq.s32.totalorder %v686, 2
        %v692 = vxor.u32 %v682, 2147483648
        %v693 = vsel %vm691, %v692, %v683
        %v694 = vsel %vm687, %v690, %v693
        %v695 = vsel %vm684, nan, %v694
        %v696 = vmul.f32 %v591, 2.0
        %v697 = vmul.f32 %v696, %v591
        %v698 = vsub.f32 %v697, 1.0
        %v699 = vmul.f32 %v696, %v695
        %v700 = vmul.f32 %v696, %v698
        %v701 = vsub.f32 %v700, %v591
        %v702 = vmul.f32 %v696, %v699
        %v703 = vsub.f32 %v702, %v695
        %v704 = vmul.f32 %v696, %v701
        %v705 = vsub.f32 %v704, %v698
        %v706 = vmul.f32 %v696, %v703
        %v707 = vsub.f32 %v706, %v699
        %v708 = vmul.f32 %v696, %v705
        %v709 = vsub.f32 %v708, %v701
        %v710 = vmul.f32 %v696, %v707
        %v711 = vsub.f32 %v710, %v703
        %v712 = vmul.f32 %v696, %v709
        %v713 = vsub.f32 %v712, %v705
        %v714 = vmul.f32 %v696, %v711
        %v715 = vsub.f32 %v714, %v707
        %v716 = vmul.f32 %v696, %v713
        %v717 = vsub.f32 %v716, %v709
        %v718 = vmul.f32 %v696, %v715
        %v719 = vsub.f32 %v718, %v711
        %v720 = vmul.f32 %v696, %v717
        %v721 = vsub.f32 %v720, %v713
        %v722 = vmul.f32 %v696, %v719
        %v723 = vsub.f32 %v722, %v715
        %v724 = vmul.f32 %v696, %v721
        %v725 = vsub.f32 %v724, %v717
        %v726 = vmul.f32 %v696, %v723
        %v727 = vsub.f32 %v726, %v719
        %v728 = vmul.f32 %v696, %v725
        %v729 = vsub.f32 %v728, %v721
        %v730 = vmul.f32 %v696, %v727
        %v731 = vsub.f32 %v730, %v723
        %v732 = vxor.u32 %v276, 2147483648
        %v733 = vmul.f32 %v732, 1.442695
        %v734 = vpow.pop %v733
        %v735 = vadd.f32 %v734, 1.0
        %v736 = vrcp.pop %v735
        %v737 = vmul.f32 1.0, %v736
        %v738 = vmul.f32 %v276, %v737
        %v740 = vrot.slane %v698, 7
        %v743 = vrot.slane %v701, 6
        %v746 = vrot.slane %v705, 5
        %v749 = vrot.slane %v709, 4
        %v752 = vrot.slane %v713, 3
        %v755 = vrot.slane %v717, 2
        %v758 = vrot.slane %v721, 1
        %v761 = vrot.slane %v729, 7
        %v764 = vrot.slane %v695, 6
        %v767 = vrot.slane %v699, 5
        %v770 = vrot.slane %v703, 4
        %v773 = vrot.slane %v707, 3
        %v776 = vrot.slane %v711, 2
        %v778 = vsel %vm327, %v591, %v740
        %v779 = vsel %vm383, %v778, %v743
        %v780 = vsel %vm443, %v779, %v746
        %v781 = vsel %vm483, %v780, %v749
        %v782 = vsel %vm427, %v781, %v752
        %v783 = vsel %vm375, %v782, %v755
        %v784 = vsel %vm315, %v783, %v758
        %v785 = vsel %vm327, %v725, %v761
        %v786 = vsel %vm383, %v785, %v764
        %v787 = vsel %vm443, %v786, %v767
        %v788 = vsel %vm483, %v787, %v770
        %v789 = vsel %vm427, %v788, %v773
        %v790 = vsel %vm375, %v789, %v776
        %v792 = vrot.slane %v719, 7
        %v795 = vrot.slane %v723, 6
        %v798 = vrot.slane %v727, 5
        %v801 = vrot.slane %v731, 4
        %v804 = vrot.slane %v738, 3
        %v806 = vsel %vm327, %v715, %v792
        %v807 = vsel %vm383, %v806, %v795
        %v808 = vsel %vm443, %v807, %v798
        %v809 = vsel %vm483, %v808, %v801
        %v810 = vsel %vm427, %v809, %v804
        %v812 = vrot.slane %v810, 1
        %v814 = vsel %vm315, %v790, %v812
        %815 = vxpose.xlu0.b32.start [1/16] %v488, 128
        %816 = vxpose.xlu0.b32.cont [2/16] %v784, 128
        %817 = vxpose.xlu0.b32.cont [3/16] %v814, 128
        %818 = vxpose.xlu0.b32.cont [4/16] %v812, 128
        %819 = vxpose.xlu0.b32.cont [5/16] 0.0, 128
        %820 = vxpose.xlu0.b32.cont [6/16] 0.0, 128
        %821 = vxpose.xlu0.b32.cont [7/16] 0.0, 128
        %822 = vxpose.xlu0.b32.cont [8/16] 0.0, 128
        %823 = vxpose.xlu0.b32.cont [9/16] 0.0, 128
        %824 = vxpose.xlu0.b32.cont [10/16] 0.0, 128
        %825 = vxpose.xlu0.b32.cont [11/16] 0.0, 128
        %826 = vxpose.xlu0.b32.cont [12/16] 0.0, 128
        %827 = vxpose.xlu0.b32.cont [13/16] 0.0, 128
        %828 = vxpose.xlu0.b32.cont [14/16] 0.0, 128
        %829 = vxpose.xlu0.b32.cont [15/16] 0.0, 128
        %830 = vxpose.xlu0.b32.end [16/16] 0.0, 128
        %v831 = vpop.trf.xlu0
        %v832 = vpop.trf.xlu0
        %v833 = vpop.trf.xlu0
        %v834 = vpop.trf.xlu0
        %v835 = vpop.trf.xlu0
        %v836 = vpop.trf.xlu0
        %v837 = vpop.trf.xlu0
        %v838 = vpop.trf.xlu0
        %v839 = vpop.trf.xlu0
        %v840 = vpop.trf.xlu0
        %v841 = vpop.trf.xlu0
        %v842 = vpop.trf.xlu0
        %v843 = vpop.trf.xlu0
        %v844 = vpop.trf.xlu0
        %v845 = vpop.trf.xlu0
        %v846 = vpop.trf.xlu0
        %vm847 = vcmask 236544
        %v849 = vsel %vm847, %v831, 0
        %v852 = vsel %vm847, %v832, 0
        %v855 = vsel %vm847, %v833, 0
        %v858 = vsel %vm847, %v834, 0
        %v861 = vsel %vm847, %v835, 0
        %v864 = vsel %vm847, %v836, 0
        %v867 = vsel %vm847, %v837, 0
        %v870 = vsel %vm847, %v838, 0
        %v873 = vsel %vm847, %v839, 0
        %v876 = vsel %vm847, %v840, 0
        %v879 = vsel %vm847, %v841, 0
        %v882 = vsel %vm847, %v842, 0
        %v885 = vsel %vm847, %v843, 0
        %v888 = vsel %vm847, %v844, 0
        %v891 = vsel %vm847, %v845, 0
        %v894 = vsel %vm847, %v846, 0
        %v897 = vsel %vm427, %v282, 0
        %899 = vmatprep.subr.mxu0 0.0
        %900 = vmatpush1.msra.mxu0 %v279
        %901 = vmatprep.subr.mxu0 0.0
        %902 = vmatpush1.msra.mxu0 %v280
        %903 = vmatprep.subr.mxu0 0.0
        %904 = vmatpush1.msra.mxu0 %v281
        %905 = vmatprep.subr.mxu0 0.0
        %906 = vmatpush1.msra.mxu0 %v897
        %907 = vmatprep.subr.mxu0 0.0
        %908 = vmatpush1.msra.mxu0 0.0
        %909 = vmatprep.subr.mxu0 0.0
        %910 = vmatpush1.msra.mxu0 0.0
        %911 = vmatprep.subr.mxu0 0.0
        %912 = vmatpush1.msra.mxu0 0.0
        %913 = vmatprep.subr.mxu0 0.0
        %914 = vmatpush1.msra.mxu0 0.0
        %915 = vmatprep.subr.mxu0 0.0
        %916 = vmatpush1.msra.mxu0 0.0
        %917 = vmatprep.subr.mxu0 0.0
        %918 = vmatpush1.msra.mxu0 0.0
        %919 = vmatprep.subr.mxu0 0.0
        %920 = vmatpush1.msra.mxu0 0.0
        %921 = vmatprep.subr.mxu0 0.0
        %922 = vmatpush1.msra.mxu0 0.0
        %923 = vmatprep.subr.mxu0 0.0
        %924 = vmatpush1.msra.mxu0 0.0
        %925 = vmatprep.subr.mxu0 0.0
        %926 = vmatpush1.msra.mxu0 0.0
        %927 = vmatprep.subr.mxu0 0.0
        %928 = vmatpush1.msra.mxu0 0.0
        %929 = vmatprep.subr.mxu0 0.0
        %930 = vmatpush1.msra.mxu0 0.0
        %931 = vmatprep.subr.mxu0 0.0
        %932 = vmatpush1.msra.mxu0 0.0
        %933 = vmatprep.subr.mxu0 0.0
        %934 = vmatpush1.msra.mxu0 0.0
        %935 = vmatprep.subr.mxu0 0.0
        %936 = vmatpush1.msra.mxu0 0.0
        %937 = vmatprep.subr.mxu0 0.0
        %938 = vmatpush1.msra.mxu0 0.0
        %939 = vmatprep.subr.mxu0 0.0
        %940 = vmatpush1.msra.mxu0 0.0
        %941 = vmatprep.subr.mxu0 0.0
        %942 = vmatpush1.msra.mxu0 0.0
        %943 = vmatprep.subr.mxu0 0.0
        %944 = vmatpush1.msra.mxu0 0.0
        %945 = vmatprep.subr.mxu0 0.0
        %946 = vmatpush1.msra.mxu0 0.0
        %947 = vmatprep.subr.mxu0 0.0
        %948 = vmatpush1.msra.mxu0 0.0
        %949 = vmatprep.subr.mxu0 0.0
        %950 = vmatpush1.msra.mxu0 0.0
        %951 = vmatprep.subr.mxu0 0.0
        %952 = vmatpush1.msra.mxu0 0.0
        %953 = vmatprep.subr.mxu0 0.0
        %954 = vmatpush1.msra.mxu0 0.0
        %955 = vmatprep.subr.mxu0 0.0
        %956 = vmatpush1.msra.mxu0 0.0
        %957 = vmatprep.subr.mxu0 0.0
        %958 = vmatpush1.msra.mxu0 0.0
        %959 = vmatprep.subr.mxu0 0.0
        %960 = vmatpush1.msra.mxu0 0.0
        %961 = vmatprep.subr.mxu0 0.0
        %962 = vmatpush1.msra.mxu0 0.0
        %963 = vmatprep.mubr.f32.mxu0 0.0
        %964 = vmatmul.mubr.f32.gmra.mrb[0].mxu0 %v849
        %v965 = vpop.f32.mrb[0].mxu0
        %v966 = vadd.f32 0.0, %v965
        %v967 = vpop.f32.mrb[0].mxu0
        %968 = vmatprep.mubr.f32.mxu0 0.0
        %969 = vmatmul.mubr.f32.gmra.mrb[0].mxu0 %v852
        %v970 = vpop.f32.mrb[0].mxu0
        %v971 = vadd.f32 0.0, %v970
        %v972 = vpop.f32.mrb[0].mxu0
        %973 = vmatprep.mubr.f32.mxu0 0.0
        %974 = vmatmul.mubr.f32.gmra.mrb[0].mxu0 %v855
        %v975 = vpop.f32.mrb[0].mxu0
        %v976 = vadd.f32 0.0, %v975
        %v977 = vpop.f32.mrb[0].mxu0
        %978 = vmatprep.mubr.f32.mxu0 0.0
        %979 = vmatmul.mubr.f32.gmra.mrb[0].mxu0 %v858
        %v980 = vpop.f32.mrb[0].mxu0
        %v981 = vadd.f32 0.0, %v980
        %v982 = vpop.f32.mrb[0].mxu0
        %983 = vmatprep.mubr.f32.mxu0 0.0
        %984 = vmatmul.mubr.f32.gmra.mrb[0].mxu0 %v861
        %v985 = vpop.f32.mrb[0].mxu0
        %v986 = vadd.f32 0.0, %v985
        %v987 = vpop.f32.mrb[0].mxu0
        %988 = vmatprep.mubr.f32.mxu0 0.0
        %989 = vmatmul.mubr.f32.gmra.mrb[0].mxu0 %v864
        %v990 = vpop.f32.mrb[0].mxu0
        %v991 = vadd.f32 0.0, %v990
        %v992 = vpop.f32.mrb[0].mxu0
        %993 = vmatprep.mubr.f32.mxu0 0.0
        %994 = vmatmul.mubr.f32.gmra.mrb[0].mxu0 %v867
        %v995 = vpop.f32.mrb[0].mxu0
        %v996 = vadd.f32 0.0, %v995
        %v997 = vpop.f32.mrb[0].mxu0
        %998 = vmatprep.mubr.f32.mxu0 0.0
        %999 = vmatmul.mubr.f32.gmra.mrb[0].mxu0 %v870
        %v1000 = vpop.f32.mrb[0].mxu0
        %v1001 = vadd.f32 0.0, %v1000
        %v1002 = vpop.f32.mrb[0].mxu0
        %1003 = vmatprep.mubr.f32.mxu0 0.0
        %1004 = vmatmul.mubr.f32.gmra.mrb[0].mxu0 %v873
        %v1005 = vpop.f32.mrb[0].mxu0
        %v1006 = vadd.f32 0.0, %v1005
        %v1007 = vpop.f32.mrb[0].mxu0
        %1008 = vmatprep.mubr.f32.mxu0 0.0
        %1009 = vmatmul.mubr.f32.gmra.mrb[0].mxu0 %v876
        %v1010 = vpop.f32.mrb[0].mxu0
        %v1011 = vadd.f32 0.0, %v1010
        %v1012 = vpop.f32.mrb[0].mxu0
        %1013 = vmatprep.mubr.f32.mxu0 0.0
        %1014 = vmatmul.mubr.f32.gmra.mrb[0].mxu0 %v879
        %v1015 = vpop.f32.mrb[0].mxu0
        %v1016 = vadd.f32 0.0, %v1015
        %v1017 = vpop.f32.mrb[0].mxu0
        %1018 = vmatprep.mubr.f32.mxu0 0.0
        %1019 = vmatmul.mubr.f32.gmra.mrb[0].mxu0 %v882
        %v1020 = vpop.f32.mrb[0].mxu0
        %v1021 = vadd.f32 0.0, %v1020
        %v1022 = vpop.f32.mrb[0].mxu0
        %1023 = vmatprep.mubr.f32.mxu0 0.0
        %1024 = vmatmul.mubr.f32.gmra.mrb[0].mxu0 %v885
        %v1025 = vpop.f32.mrb[0].mxu0
        %v1026 = vadd.f32 0.0, %v1025
        %v1027 = vpop.f32.mrb[0].mxu0
        %1028 = vmatprep.mubr.f32.mxu0 0.0
        %1029 = vmatmul.mubr.f32.gmra.mrb[0].mxu0 %v888
        %v1030 = vpop.f32.mrb[0].mxu0
        %v1031 = vadd.f32 0.0, %v1030
        %v1032 = vpop.f32.mrb[0].mxu0
        %1033 = vmatprep.mubr.f32.mxu0 0.0
        %1034 = vmatmul.mubr.f32.gmra.mrb[0].mxu0 %v891
        %v1035 = vpop.f32.mrb[0].mxu0
        %v1036 = vadd.f32 0.0, %v1035
        %v1037 = vpop.f32.mrb[0].mxu0
        %1038 = vmatprep.mubr.f32.mxu0 0.0
        %1039 = vmatmul.mubr.f32.gmra.mrb[0].mxu0 %v894
        %v1040 = vpop.f32.mrb[0].mxu0
        %v1041 = vadd.f32 0.0, %v1040
        %v1042 = vpop.f32.mrb[0].mxu0
        %1043 = vdwg.mxu0
        %v1044 = vlaneseq
        %v1045 = vshrl.u32 %v1044, 7
        %v1046 = vsub.s32 1, %v1045
        %v1047 = vrot.slane %v276, %v1046
        %1048 = vset.pattern.permute.xlu0 1
        %1049 = vperm.xlu0 %1048, %v277
        %v1050 = vpop.permute.xlu0 %1049
        %1052 = vset.pattern.permute.xlu0 1
        %1053 = vperm.xlu0 %1052, %v278
        %v1054 = vpop.permute.xlu0 %1053
        %vm1056 = vcmp.ge.f32.partialorder %v1047, %v1050
        %vm1057 = vcmp.ge.f32.partialorder %v1047, %v1054
        %vm1058 = vcmp.lt.f32.partialorder %v1047, %v1050
        %vm1059 = vcmp.lt.f32.partialorder %v1047, %v1054
        %v1060 = vsel %vm1058, 1, 0
        %v1061 = vsel %vm1059, 1, 0
        %v1062 = vrot.slane %v1060, 1
        %v1063 = vrot.slane %v1061, 1
        %v1064 = vsel %vm315, %v1062, %v1063
        %vm1065 = vcmp.ne.s32.totalorder %v1064, 0
        %vm1066 = vcmp.ne.s32.totalorder %v1063, 0
        %vm1067 = vmand %vm1056, %vm1065
        %vm1068 = vmand %vm1057, %vm1066
        %v1069 = vsel %vm1067, 1, 0
        %v1070 = vsel %vm1068, 1, 0
        %v1071 = vcvt.s32.f32 %v1069
        %v1072 = vcvt.s32.f32 %v1070
        %v1073 = vsub.f32 %v1047, %v1050
        %v1074 = vsub.f32 %v1047, %v1054
        %1075 = vset.pattern.permute.xlu0 1
        %1076 = vperm.xlu0 %1075, %v336
        %v1077 = vpop.permute.xlu0 %1076
        %1078 = vset.pattern.permute.xlu0 1
        %1079 = vperm.xlu0 %1078, %v338
        %v1080 = vpop.permute.xlu0 %1079
        %v1081 = vrot.slane %v1077, 1
        %v1082 = vrot.slane %v1080, 1
        %v1083 = vsel %vm315, %v1081, %v1082
        %v1086 = vmul.f32 %v1073, %v1083
        %v1087 = vmul.f32 %v1074, %v1082
        %v1088 = vsub.f32 %v1050, %v1047
        %v1089 = vsub.f32 %v1054, %v1047
        %v1092 = vmul.f32 %v1088, %v1077
        %v1093 = vmul.f32 %v1089, %v1080
        %v1094 = vmul.f32 %v1086, %v1071
        %v1095 = vmul.f32 %v1087, %v1072
        %v1098 = vrot.slane %v1071, 7
        %v1099 = vrot.slane %v1072, 7
        %v1100 = vsel %vm327, %v1098, %v1099
        %v1103 = vmul.f32 %v1092, %v1098
        %v1104 = vmul.f32 %v1093, %v1100
        %v1107 = vrot.slane %v1103, 2
        %v1108 = vrot.slane %v1104, 2
        %v1109 = vsel %vm375, %v1107, %v1108
        %v1112 = vadd.f32 %v1094, %v1109
        %v1113 = vadd.f32 %v1095, %v1108
        %1114 = vset.pattern.permute.xlu0 1
        %1115 = vperm.xlu0 %1114, %v392
        %v1116 = vpop.permute.xlu0 %1115
        %1117 = vset.pattern.permute.xlu0 1
        %1118 = vperm.xlu0 %1117, %v394
        %v1119 = vpop.permute.xlu0 %1118
        %v1120 = vrot.slane %v1116, 2
        %v1121 = vrot.slane %v1119, 2
        %v1122 = vsel %vm375, %v1120, %v1121
        %v1125 = vmul.f32 %v1073, %v1122
        %v1126 = vmul.f32 %v1074, %v1121
        %v1129 = vmul.f32 %v1088, %v1116
        %v1130 = vmul.f32 %v1089, %v1119
        %v1131 = vmul.f32 %v1125, %v1112
        %v1132 = vmul.f32 %v1126, %v1113
        %v1135 = vrot.slane %v1112, 6
        %v1136 = vrot.slane %v1113, 6
        %v1137 = vsel %vm383, %v1135, %v1136
        %v1140 = vmul.f32 %v1129, %v1135
        %v1141 = vmul.f32 %v1130, %v1137
        %v1144 = vrot.slane %v1140, 3
        %v1145 = vrot.slane %v1141, 3
        %v1146 = vsel %vm427, %v1144, %v1145
        %v1149 = vadd.f32 %v1131, %v1146
        %v1150 = vadd.f32 %v1132, %v1145
        %1151 = vset.pattern.permute.xlu0 1
        %1152 = vperm.xlu0 %1151, %v440
        %v1153 = vpop.permute.xlu0 %1152
        %1154 = vset.pattern.permute.xlu0 1
        %1155 = vperm.xlu0 %1154, %v442
        %v1156 = vpop.permute.xlu0 %1155
        %v1157 = vrot.slane %v1153, 3
        %v1158 = vrot.slane %v1156, 3
        %v1159 = vsel %vm427, %v1157, %v1158
        %v1161 = vmul.f32 %v1073, %v1159
        %1163 = vset.pattern.permute.xlu0 1
        %1164 = vperm.xlu0 %1163, %v449
        %v1165 = vpop.permute.xlu0 %1164
        %v1167 = vmul.f32 %v1088, %v1153
        %v1168 = vmul.f32 %v1089, %v1165
        %v1169 = vmul.f32 %v1161, %v1149
        %v1172 = vrot.slane %v1149, 5
        %v1173 = vrot.slane %v1150, 5
        %v1174 = vsel %vm443, %v1172, %v1173
        %v1177 = vmul.f32 %v1167, %v1172
        %v1178 = vmul.f32 %v1168, %v1174
        %v1181 = vrot.slane %v1177, 4
        %v1182 = vrot.slane %v1178, 4
        %v1183 = vsel %vm483, %v1181, %v1182
        %v1185 = vadd.f32 %v1169, %v1183
        %v1187 = vrot.slane %v591, 1
        %v1189 = vrot.slane %v701, 7
        %v1191 = vrot.slane %v705, 6
        %v1193 = vrot.slane %v709, 5
        %v1195 = vrot.slane %v713, 4
        %v1197 = vrot.slane %v717, 3
        %v1199 = vrot.slane %v721, 2
        %v1202 = vrot.slane %v725, 1
        %v1204 = vrot.slane %v695, 7
        %v1206 = vrot.slane %v699, 6
        %v1208 = vrot.slane %v703, 5
        %v1210 = vrot.slane %v707, 4
        %v1212 = vrot.slane %v711, 3
        %v1214 = vsel %vm327, %v1187, %v698
        %v1215 = vsel %vm383, %v1214, %v1189
        %v1216 = vsel %vm443, %v1215, %v1191
        %v1217 = vsel %vm483, %v1216, %v1193
        %v1218 = vsel %vm427, %v1217, %v1195
        %v1219 = vsel %vm375, %v1218, %v1197
        %v1220 = vsel %vm315, %v1219, %v1199
        %v1221 = vsel %vm327, %v1202, %v729
        %v1222 = vsel %vm383, %v1221, %v1204
        %v1223 = vsel %vm443, %v1222, %v1206
        %v1224 = vsel %vm483, %v1223, %v1208
        %v1225 = vsel %vm427, %v1224, %v1210
        %v1226 = vsel %vm375, %v1225, %v1212
        %v1228 = vrot.slane %v715, 1
        %v1230 = vrot.slane %v723, 7
        %v1232 = vrot.slane %v727, 6
        %v1234 = vrot.slane %v731, 5
        %v1236 = vrot.slane %v738, 4
        %v1238 = vsel %vm327, %v1228, %v719
        %v1239 = vsel %vm383, %v1238, %v1230
        %v1240 = vsel %vm443, %v1239, %v1232
        %v1241 = vsel %vm483, %v1240, %v1234
        %v1242 = vsel %vm427, %v1241, %v1236
        %v1244 = vrot.slane %v1242, 1
        %v1246 = vsel %vm315, %v1226, %v1244
        %1247 = vxpose.xlu0.b32.start [1/16] %v1185, 128
        %1248 = vxpose.xlu0.b32.cont [2/16] %v1220, 128
        %1249 = vxpose.xlu0.b32.cont [3/16] %v1246, 128
        %1250 = vxpose.xlu0.b32.cont [4/16] %v1244, 128
        %1251 = vxpose.xlu0.b32.cont [5/16] 0.0, 128
        %1252 = vxpose.xlu0.b32.cont [6/16] 0.0, 128
        %1253 = vxpose.xlu0.b32.cont [7/16] 0.0, 128
        %1254 = vxpose.xlu0.b32.cont [8/16] 0.0, 128
        %1255 = vxpose.xlu0.b32.cont [9/16] 0.0, 128
        %1256 = vxpose.xlu0.b32.cont [10/16] 0.0, 128
        %1257 = vxpose.xlu0.b32.cont [11/16] 0.0, 128
        %1258 = vxpose.xlu0.b32.cont [12/16] 0.0, 128
        %1259 = vxpose.xlu0.b32.cont [13/16] 0.0, 128
        %1260 = vxpose.xlu0.b32.cont [14/16] 0.0, 128
        %1261 = vxpose.xlu0.b32.cont [15/16] 0.0, 128
        %1262 = vxpose.xlu0.b32.end [16/16] 0.0, 128
        %v1263 = vpop.trf.xlu0
        %v1264 = vpop.trf.xlu0
        %v1265 = vpop.trf.xlu0
        %v1266 = vpop.trf.xlu0
        %v1267 = vpop.trf.xlu0
        %v1268 = vpop.trf.xlu0
        %v1269 = vpop.trf.xlu0
        %v1270 = vpop.trf.xlu0
        %v1271 = vpop.trf.xlu0
        %v1272 = vpop.trf.xlu0
        %v1273 = vpop.trf.xlu0
        %v1274 = vpop.trf.xlu0
        %v1275 = vpop.trf.xlu0
        %v1276 = vpop.trf.xlu0
        %v1277 = vpop.trf.xlu0
        %v1278 = vpop.trf.xlu0
        %v1280 = vsel %vm847, %v1263, 0
        %v1283 = vsel %vm847, %v1264, 0
        %v1286 = vsel %vm847, %v1265, 0
        %v1289 = vsel %vm847, %v1266, 0
        %v1292 = vsel %vm847, %v1267, 0
        %v1295 = vsel %vm847, %v1268, 0
        %v1298 = vsel %vm847, %v1269, 0
        %v1301 = vsel %vm847, %v1270, 0
        %v1304 = vsel %vm847, %v1271, 0
        %v1307 = vsel %vm847, %v1272, 0
        %v1310 = vsel %vm847, %v1273, 0
        %v1313 = vsel %vm847, %v1274, 0
        %v1316 = vsel %vm847, %v1275, 0
        %v1319 = vsel %vm847, %v1276, 0
        %v1322 = vsel %vm847, %v1277, 0
        %v1325 = vsel %vm847, %v1278, 0
        %v1328 = vsel %vm427, %v286, 0
        %1330 = vmatprep.subr.mxu0 0.0
        %1331 = vmatpush1.msra.mxu0 %v283
        %1332 = vmatprep.subr.mxu0 0.0
        %1333 = vmatpush1.msra.mxu0 %v284
        %1334 = vmatprep.subr.mxu0 0.0
        %1335 = vmatpush1.msra.mxu0 %v285
        %1336 = vmatprep.subr.mxu0 0.0
        %1337 = vmatpush1.msra.mxu0 %v1328
        %1338 = vmatprep.subr.mxu0 0.0
        %1339 = vmatpush1.msra.mxu0 0.0
        %1340 = vmatprep.subr.mxu0 0.0
        %1341 = vmatpush1.msra.mxu0 0.0
        %1342 = vmatprep.subr.mxu0 0.0
        %1343 = vmatpush1.msra.mxu0 0.0
        %1344 = vmatprep.subr.mxu0 0.0
        %1345 = vmatpush1.msra.mxu0 0.0
        %1346 = vmatprep.subr.mxu0 0.0
        %1347 = vmatpush1.msra.mxu0 0.0
        %1348 = vmatprep.subr.mxu0 0.0
        %1349 = vmatpush1.msra.mxu0 0.0
        %1350 = vmatprep.subr.mxu0 0.0
        %1351 = vmatpush1.msra.mxu0 0.0
        %1352 = vmatprep.subr.mxu0 0.0
        %1353 = vmatpush1.msra.mxu0 0.0
        %1354 = vmatprep.subr.mxu0 0.0
        %1355 = vmatpush1.msra.mxu0 0.0
        %1356 = vmatprep.subr.mxu0 0.0
        %1357 = vmatpush1.msra.mxu0 0.0
        %1358 = vmatprep.subr.mxu0 0.0
        %1359 = vmatpush1.msra.mxu0 0.0
        %1360 = vmatprep.subr.mxu0 0.0
        %1361 = vmatpush1.msra.mxu0 0.0
        %1362 = vmatprep.subr.mxu0 0.0
        %1363 = vmatpush1.msra.mxu0 0.0
        %1364 = vmatprep.subr.mxu0 0.0
        %1365 = vmatpush1.msra.mxu0 0.0
        %1366 = vmatprep.subr.mxu0 0.0
        %1367 = vmatpush1.msra.mxu0 0.0
        %1368 = vmatprep.subr.mxu0 0.0
        %1369 = vmatpush1.msra.mxu0 0.0
        %1370 = vmatprep.subr.mxu0 0.0
        %1371 = vmatpush1.msra.mxu0 0.0
        %1372 = vmatprep.subr.mxu0 0.0
        %1373 = vmatpush1.msra.mxu0 0.0
        %1374 = vmatprep.subr.mxu0 0.0
        %1375 = vmatpush1.msra.mxu0 0.0
        %1376 = vmatprep.subr.mxu0 0.0
        %1377 = vmatpush1.msra.mxu0 0.0
        %1378 = vmatprep.subr.mxu0 0.0
        %1379 = vmatpush1.msra.mxu0 0.0
        %1380 = vmatprep.subr.mxu0 0.0
        %1381 = vmatpush1.msra.mxu0 0.0
        %1382 = vmatprep.subr.mxu0 0.0
        %1383 = vmatpush1.msra.mxu0 0.0
        %1384 = vmatprep.subr.mxu0 0.0
        %1385 = vmatpush1.msra.mxu0 0.0
        %1386 = vmatprep.subr.mxu0 0.0
        %1387 = vmatpush1.msra.mxu0 0.0
        %1388 = vmatprep.subr.mxu0 0.0
        %1389 = vmatpush1.msra.mxu0 0.0
        %1390 = vmatprep.subr.mxu0 0.0
        %1391 = vmatpush1.msra.mxu0 0.0
        %1392 = vmatprep.subr.mxu0 0.0
        %1393 = vmatpush1.msra.mxu0 0.0
        %1394 = vmatprep.mubr.f32.mxu0 0.0
        %1395 = vmatmul.mubr.f32.gmra.mrb[0].mxu0 %v1280
        %v1396 = vpop.f32.mrb[0].mxu0
        %v1397 = vadd.f32 0.0, %v1396
        %v1398 = vpop.f32.mrb[0].mxu0
        %1399 = vmatprep.mubr.f32.mxu0 0.0
        %1400 = vmatmul.mubr.f32.gmra.mrb[0].mxu0 %v1283
        %v1401 = vpop.f32.mrb[0].mxu0
        %v1402 = vadd.f32 0.0, %v1401
        %v1403 = vpop.f32.mrb[0].mxu0
        %1404 = vmatprep.mubr.f32.mxu0 0.0
        %1405 = vmatmul.mubr.f32.gmra.mrb[0].mxu0 %v1286
        %v1406 = vpop.f32.mrb[0].mxu0
        %v1407 = vadd.f32 0.0, %v1406
        %v1408 = vpop.f32.mrb[0].mxu0
        %1409 = vmatprep.mubr.f32.mxu0 0.0
        %1410 = vmatmul.mubr.f32.gmra.mrb[0].mxu0 %v1289
        %v1411 = vpop.f32.mrb[0].mxu0
        %v1412 = vadd.f32 0.0, %v1411
        %v1413 = vpop.f32.mrb[0].mxu0
        %1414 = vmatprep.mubr.f32.mxu0 0.0
        %1415 = vmatmul.mubr.f32.gmra.mrb[0].mxu0 %v1292
        %v1416 = vpop.f32.mrb[0].mxu0
        %v1417 = vadd.f32 0.0, %v1416
        %v1418 = vpop.f32.mrb[0].mxu0
        %1419 = vmatprep.mubr.f32.mxu0 0.0
        %1420 = vmatmul.mubr.f32.gmra.mrb[0].mxu0 %v1295
        %v1421 = vpop.f32.mrb[0].mxu0
        %v1422 = vadd.f32 0.0, %v1421
        %v1423 = vpop.f32.mrb[0].mxu0
        %1424 = vmatprep.mubr.f32.mxu0 0.0
        %1425 = vmatmul.mubr.f32.gmra.mrb[0].mxu0 %v1298
        %v1426 = vpop.f32.mrb[0].mxu0
        %v1427 = vadd.f32 0.0, %v1426
        %v1428 = vpop.f32.mrb[0].mxu0
        %1429 = vmatprep.mubr.f32.mxu0 0.0
        %1430 = vmatmul.mubr.f32.gmra.mrb[0].mxu0 %v1301
        %v1431 = vpop.f32.mrb[0].mxu0
        %v1432 = vadd.f32 0.0, %v1431
        %v1433 = vpop.f32.mrb[0].mxu0
        %1434 = vmatprep.mubr.f32.mxu0 0.0
        %1435 = vmatmul.mubr.f32.gmra.mrb[0].mxu0 %v1304
        %v1436 = vpop.f32.mrb[0].mxu0
        %v1437 = vadd.f32 0.0, %v1436
        %v1438 = vpop.f32.mrb[0].mxu0
        %1439 = vmatprep.mubr.f32.mxu0 0.0
        %1440 = vmatmul.mubr.f32.gmra.mrb[0].mxu0 %v1307
        %v1441 = vpop.f32.mrb[0].mxu0
        %v1442 = vadd.f32 0.0, %v1441
        %v1443 = vpop.f32.mrb[0].mxu0
        %1444 = vmatprep.mubr.f32.mxu0 0.0
        %1445 = vmatmul.mubr.f32.gmra.mrb[0].mxu0 %v1310
        %v1446 = vpop.f32.mrb[0].mxu0
        %v1447 = vadd.f32 0.0, %v1446
        %v1448 = vpop.f32.mrb[0].mxu0
        %1449 = vmatprep.mubr.f32.mxu0 0.0
        %1450 = vmatmul.mubr.f32.gmra.mrb[0].mxu0 %v1313
        %v1451 = vpop.f32.mrb[0].mxu0
        %v1452 = vadd.f32 0.0, %v1451
        %v1453 = vpop.f32.mrb[0].mxu0
        %1454 = vmatprep.mubr.f32.mxu0 0.0
        %1455 = vmatmul.mubr.f32.gmra.mrb[0].mxu0 %v1316
        %v1456 = vpop.f32.mrb[0].mxu0
        %v1457 = vadd.f32 0.0, %v1456
        %v1458 = vpop.f32.mrb[0].mxu0
        %1459 = vmatprep.mubr.f32.mxu0 0.0
        %1460 = vmatmul.mubr.f32.gmra.mrb[0].mxu0 %v1319
        %v1461 = vpop.f32.mrb[0].mxu0
        %v1462 = vadd.f32 0.0, %v1461
        %v1463 = vpop.f32.mrb[0].mxu0
        %1464 = vmatprep.mubr.f32.mxu0 0.0
        %1465 = vmatmul.mubr.f32.gmra.mrb[0].mxu0 %v1322
        %v1466 = vpop.f32.mrb[0].mxu0
        %v1467 = vadd.f32 0.0, %v1466
        %v1468 = vpop.f32.mrb[0].mxu0
        %1469 = vmatprep.mubr.f32.mxu0 0.0
        %1470 = vmatmul.mubr.f32.gmra.mrb[0].mxu0 %v1325
        %v1471 = vpop.f32.mrb[0].mxu0
        %v1472 = vadd.f32 0.0, %v1471
        %v1473 = vpop.f32.mrb[0].mxu0
        %1474 = vdwg.mxu0
        %v1475 = vlaneseq
        %v1476 = vshrl.u32 %v1475, 7
        %v1477 = vsub.s32 2, %v1476
        %v1478 = vrot.slane %v276, %v1477
        %1479 = vset.pattern.permute.xlu0 2
        %1480 = vperm.xlu0 %1479, %v277
        %v1481 = vpop.permute.xlu0 %1480
        %1483 = vset.pattern.permute.xlu0 2
        %1484 = vperm.xlu0 %1483, %v278
        %v1485 = vpop.permute.xlu0 %1484
        %vm1487 = vcmp.ge.f32.partialorder %v1478, %v1481
        %vm1488 = vcmp.ge.f32.partialorder %v1478, %v1485
        %vm1489 = vcmp.lt.f32.partialorder %v1478, %v1481
        %vm1490 = vcmp.lt.f32.partialorder %v1478, %v1485
        %v1491 = vsel %vm1489, 1, 0
        %v1492 = vsel %vm1490, 1, 0
        %v1493 = vrot.slane %v1491, 1
        %v1494 = vrot.slane %v1492, 1
        %v1495 = vsel %vm315, %v1493, %v1494
        %vm1496 = vcmp.ne.s32.totalorder %v1495, 0
        %vm1497 = vcmp.ne.s32.totalorder %v1494, 0
        %vm1498 = vmand %vm1487, %vm1496
        %vm1499 = vmand %vm1488, %vm1497
        %v1500 = vsel %vm1498, 1, 0
        %v1501 = vsel %vm1499, 1, 0
        %v1502 = vcvt.s32.f32 %v1500
        %v1503 = vcvt.s32.f32 %v1501
        %v1504 = vsub.f32 %v1478, %v1481
        %v1505 = vsub.f32 %v1478, %v1485
        %1506 = vset.pattern.permute.xlu0 2
        %1507 = vperm.xlu0 %1506, %v336
        %v1508 = vpop.permute.xlu0 %1507
        %1509 = vset.pattern.permute.xlu0 2
        %1510 = vperm.xlu0 %1509, %v338
        %v1511 = vpop.permute.xlu0 %1510
        %v1512 = vrot.slane %v1508, 1
        %v1513 = vrot.slane %v1511, 1
        %v1514 = vsel %vm315, %v1512, %v1513
        %v1517 = vmul.f32 %v1504, %v1514
        %v1518 = vmul.f32 %v1505, %v1513
        %v1519 = vsub.f32 %v1481, %v1478
        %v1520 = vsub.f32 %v1485, %v1478
        %v1523 = vmul.f32 %v1519, %v1508
        %v1524 = vmul.f32 %v1520, %v1511
        %v1525 = vmul.f32 %v1517, %v1502
        %v1526 = vmul.f32 %v1518, %v1503
        %v1529 = vrot.slane %v1502, 7
        %v1530 = vrot.slane %v1503, 7
        %v1531 = vsel %vm327, %v1529, %v1530
        %v1534 = vmul.f32 %v1523, %v1529
        %v1535 = vmul.f32 %v1524, %v1531
        %v1538 = vrot.slane %v1534, 2
        %v1539 = vrot.slane %v1535, 2
        %v1540 = vsel %vm375, %v1538, %v1539
        %v1543 = vadd.f32 %v1525, %v1540
        %v1544 = vadd.f32 %v1526, %v1539
        %1545 = vset.pattern.permute.xlu0 2
        %1546 = vperm.xlu0 %1545, %v392
        %v1547 = vpop.permute.xlu0 %1546
        %1548 = vset.pattern.permute.xlu0 2
        %1549 = vperm.xlu0 %1548, %v394
        %v1550 = vpop.permute.xlu0 %1549
        %v1551 = vrot.slane %v1547, 2
        %v1552 = vrot.slane %v1550, 2
        %v1553 = vsel %vm375, %v1551, %v1552
        %v1556 = vmul.f32 %v1504, %v1553
        %v1557 = vmul.f32 %v1505, %v1552
        %v1560 = vmul.f32 %v1519, %v1547
        %v1561 = vmul.f32 %v1520, %v1550
        %v1562 = vmul.f32 %v1556, %v1543
        %v1563 = vmul.f32 %v1557, %v1544
        %v1566 = vrot.slane %v1543, 6
        %v1567 = vrot.slane %v1544, 6
        %v1568 = vsel %vm383, %v1566, %v1567
        %v1571 = vmul.f32 %v1560, %v1566
        %v1572 = vmul.f32 %v1561, %v1568
        %v1575 = vrot.slane %v1571, 3
        %v1576 = vrot.slane %v1572, 3
        %v1577 = vsel %vm427, %v1575, %v1576
        %v1580 = vadd.f32 %v1562, %v1577
        %v1581 = vadd.f32 %v1563, %v1576
        %1582 = vset.pattern.permute.xlu0 2
        %1583 = vperm.xlu0 %1582, %v440
        %v1584 = vpop.permute.xlu0 %1583
        %1585 = vset.pattern.permute.xlu0 2
        %1586 = vperm.xlu0 %1585, %v442
        %v1587 = vpop.permute.xlu0 %1586
        %v1588 = vrot.slane %v1584, 3
        %v1589 = vrot.slane %v1587, 3
        %v1590 = vsel %vm427, %v1588, %v1589
        %v1592 = vmul.f32 %v1504, %v1590
        %1594 = vset.pattern.permute.xlu0 2
        %1595 = vperm.xlu0 %1594, %v449
        %v1596 = vpop.permute.xlu0 %1595
        %v1598 = vmul.f32 %v1519, %v1584
        %v1599 = vmul.f32 %v1520, %v1596
        %v1600 = vmul.f32 %v1592, %v1580
        %v1603 = vrot.slane %v1580, 5
        %v1604 = vrot.slane %v1581, 5
        %v1605 = vsel %vm443, %v1603, %v1604
        %v1608 = vmul.f32 %v1598, %v1603
        %v1609 = vmul.f32 %v1599, %v1605
        %v1612 = vrot.slane %v1608, 4
        %v1613 = vrot.slane %v1609, 4
        %v1614 = vsel %vm483, %v1612, %v1613
        %v1616 = vadd.f32 %v1600, %v1614
        %v1617 = vrot.slane %v591, 2
        %v1619 = vrot.slane %v698, 1
        %v1621 = vrot.slane %v705, 7
        %v1623 = vrot.slane %v709, 6
        %v1625 = vrot.slane %v713, 5
        %v1627 = vrot.slane %v717, 4
        %v1629 = vrot.slane %v721, 3
        %v1631 = vrot.slane %v725, 2
        %v1633 = vrot.slane %v729, 1
        %v1635 = vrot.slane %v699, 7
        %v1637 = vrot.slane %v703, 6
        %v1639 = vrot.slane %v707, 5
        %v1641 = vrot.slane %v711, 4
        %v1643 = vsel %vm327, %v1617, %v1619
        %v1644 = vsel %vm383, %v1643, %v701
        %v1645 = vsel %vm443, %v1644, %v1621
        %v1646 = vsel %vm483, %v1645, %v1623
        %v1647 = vsel %vm427, %v1646, %v1625
        %v1648 = vsel %vm375, %v1647, %v1627
        %v1649 = vsel %vm315, %v1648, %v1629
        %v1650 = vsel %vm327, %v1631, %v1633
        %v1651 = vsel %vm383, %v1650, %v695
        %v1652 = vsel %vm443, %v1651, %v1635
        %v1653 = vsel %vm483, %v1652, %v1637
        %v1654 = vsel %vm427, %v1653, %v1639
        %v1655 = vsel %vm375, %v1654, %v1641
        %v1656 = vrot.slane %v715, 2
        %v1658 = vrot.slane %v719, 1
        %v1660 = vrot.slane %v727, 7
        %v1662 = vrot.slane %v731, 6
        %v1664 = vrot.slane %v738, 5
        %v1666 = vsel %vm327, %v1656, %v1658
        %v1667 = vsel %vm383, %v1666, %v723
        %v1668 = vsel %vm443, %v1667, %v1660
        %v1669 = vsel %vm483, %v1668, %v1662
        %v1670 = vsel %vm427, %v1669, %v1664
        %v1672 = vrot.slane %v1670, 1
        %v1674 = vsel %vm315, %v1655, %v1672
        %1675 = vxpose.xlu0.b32.start [1/16] %v1616, 128
        %1676 = vxpose.xlu0.b32.cont [2/16] %v1649, 128
        %1677 = vxpose.xlu0.b32.cont [3/16] %v1674, 128
        %1678 = vxpose.xlu0.b32.cont [4/16] %v1672, 128
        %1679 = vxpose.xlu0.b32.cont [5/16] 0.0, 128
        %1680 = vxpose.xlu0.b32.cont [6/16] 0.0, 128
        %1681 = vxpose.xlu0.b32.cont [7/16] 0.0, 128
        %1682 = vxpose.xlu0.b32.cont [8/16] 0.0, 128
        %1683 = vxpose.xlu0.b32.cont [9/16] 0.0, 128
        %1684 = vxpose.xlu0.b32.cont [10/16] 0.0, 128
        %1685 = vxpose.xlu0.b32.cont [11/16] 0.0, 128
        %1686 = vxpose.xlu0.b32.cont [12/16] 0.0, 128
        %1687 = vxpose.xlu0.b32.cont [13/16] 0.0, 128
        %1688 = vxpose.xlu0.b32.cont [14/16] 0.0, 128
        %1689 = vxpose.xlu0.b32.cont [15/16] 0.0, 128
        %1690 = vxpose.xlu0.b32.end [16/16] 0.0, 128
        %v1691 = vpop.trf.xlu0
        %v1692 = vpop.trf.xlu0
        %v1693 = vpop.trf.xlu0
        %v1694 = vpop.trf.xlu0
        %v1695 = vpop.trf.xlu0
        %v1696 = vpop.trf.xlu0
        %v1697 = vpop.trf.xlu0
        %v1698 = vpop.trf.xlu0
        %v1699 = vpop.trf.xlu0
        %v1700 = vpop.trf.xlu0
        %v1701 = vpop.trf.xlu0
        %v1702 = vpop.trf.xlu0
        %v1703 = vpop.trf.xlu0
        %v1704 = vpop.trf.xlu0
        %v1705 = vpop.trf.xlu0
        %v1706 = vpop.trf.xlu0
        %v1708 = vsel %vm847, %v1691, 0
        %v1711 = vsel %vm847, %v1692, 0
        %v1714 = vsel %vm847, %v1693, 0
        %v1717 = vsel %vm847, %v1694, 0
        %v1720 = vsel %vm847, %v1695, 0
        %v1723 = vsel %vm847, %v1696, 0
        %v1726 = vsel %vm847, %v1697, 0
        %v1729 = vsel %vm847, %v1698, 0
        %v1732 = vsel %vm847, %v1699, 0
        %v1735 = vsel %vm847, %v1700, 0
        %v1738 = vsel %vm847, %v1701, 0
        %v1741 = vsel %vm847, %v1702, 0
        %v1744 = vsel %vm847, %v1703, 0
        %v1747 = vsel %vm847, %v1704, 0
        %v1750 = vsel %vm847, %v1705, 0
        %v1753 = vsel %vm847, %v1706, 0
        %v1756 = vsel %vm427, %v290, 0
        %1758 = vmatprep.subr.mxu0 0.0
        %1759 = vmatpush1.msra.mxu0 %v287
        %1760 = vmatprep.subr.mxu0 0.0
        %1761 = vmatpush1.msra.mxu0 %v288
        %1762 = vmatprep.subr.mxu0 0.0
        %1763 = vmatpush1.msra.mxu0 %v289
        %1764 = vmatprep.subr.mxu0 0.0
        %1765 = vmatpush1.msra.mxu0 %v1756
        %1766 = vmatprep.subr.mxu0 0.0
        %1767 = vmatpush1.msra.mxu0 0.0
        %1768 = vmatprep.subr.mxu0 0.0
        %1769 = vmatpush1.msra.mxu0 0.0
        %1770 = vmatprep.subr.mxu0 0.0
        %1771 = vmatpush1.msra.mxu0 0.0
        %1772 = vmatprep.subr.mxu0 0.0
        %1773 = vmatpush1.msra.mxu0 0.0
        %1774 = vmatprep.subr.mxu0 0.0
        %1775 = vmatpush1.msra.mxu0 0.0
        %1776 = vmatprep.subr.mxu0 0.0
        %1777 = vmatpush1.msra.mxu0 0.0
        %1778 = vmatprep.subr.mxu0 0.0
        %1779 = vmatpush1.msra.mxu0 0.0
        %1780 = vmatprep.subr.mxu0 0.0
        %1781 = vmatpush1.msra.mxu0 0.0
        %1782 = vmatprep.subr.mxu0 0.0
        %1783 = vmatpush1.msra.mxu0 0.0
        %1784 = vmatprep.subr.mxu0 0.0
        %1785 = vmatpush1.msra.mxu0 0.0
        %1786 = vmatprep.subr.mxu0 0.0
        %1787 = vmatpush1.msra.mxu0 0.0
        %1788 = vmatprep.subr.mxu0 0.0
        %1789 = vmatpush1.msra.mxu0 0.0
        %1790 = vmatprep.subr.mxu0 0.0
        %1791 = vmatpush1.msra.mxu0 0.0
        %1792 = vmatprep.subr.mxu0 0.0
        %1793 = vmatpush1.msra.mxu0 0.0
        %1794 = vmatprep.subr.mxu0 0.0
        %1795 = vmatpush1.msra.mxu0 0.0
        %1796 = vmatprep.subr.mxu0 0.0
        %1797 = vmatpush1.msra.mxu0 0.0
        %1798 = vmatprep.subr.mxu0 0.0
        %1799 = vmatpush1.msra.mxu0 0.0
        %1800 = vmatprep.subr.mxu0 0.0
        %1801 = vmatpush1.msra.mxu0 0.0
        %1802 = vmatprep.subr.mxu0 0.0
        %1803 = vmatpush1.msra.mxu0 0.0
        %1804 = vmatprep.subr.mxu0 0.0
        %1805 = vmatpush1.msra.mxu0 0.0
        %1806 = vmatprep.subr.mxu0 0.0
        %1807 = vmatpush1.msra.mxu0 0.0
        %1808 = vmatprep.subr.mxu0 0.0
        %1809 = vmatpush1.msra.mxu0 0.0
        %1810 = vmatprep.subr.mxu0 0.0
        %1811 = vmatpush1.msra.mxu0 0.0
        %1812 = vmatprep.subr.mxu0 0.0
        %1813 = vmatpush1.msra.mxu0 0.0
        %1814 = vmatprep.subr.mxu0 0.0
        %1815 = vmatpush1.msra.mxu0 0.0
        %1816 = vmatprep.subr.mxu0 0.0
        %1817 = vmatpush1.msra.mxu0 0.0
        %1818 = vmatprep.subr.mxu0 0.0
        %1819 = vmatpush1.msra.mxu0 0.0
        %1820 = vmatprep.subr.mxu0 0.0
        %1821 = vmatpush1.msra.mxu0 0.0
        %1822 = vmatprep.mubr.f32.mxu0 0.0
        %1823 = vmatmul.mubr.f32.gmra.mrb[0].mxu0 %v1708
        %v1824 = vpop.f32.mrb[0].mxu0
        %v1825 = vadd.f32 0.0, %v1824
        %v1826 = vpop.f32.mrb[0].mxu0
        %1827 = vmatprep.mubr.f32.mxu0 0.0
        %1828 = vmatmul.mubr.f32.gmra.mrb[0].mxu0 %v1711
        %v1829 = vpop.f32.mrb[0].mxu0
        %v1830 = vadd.f32 0.0, %v1829
        %v1831 = vpop.f32.mrb[0].mxu0
        %1832 = vmatprep.mubr.f32.mxu0 0.0
        %1833 = vmatmul.mubr.f32.gmra.mrb[0].mxu0 %v1714
        %v1834 = vpop.f32.mrb[0].mxu0
        %v1835 = vadd.f32 0.0, %v1834
        %v1836 = vpop.f32.mrb[0].mxu0
        %1837 = vmatprep.mubr.f32.mxu0 0.0
        %1838 = vmatmul.mubr.f32.gmra.mrb[0].mxu0 %v1717
        %v1839 = vpop.f32.mrb[0].mxu0
        %v1840 = vadd.f32 0.0, %v1839
        %v1841 = vpop.f32.mrb[0].mxu0
        %1842 = vmatprep.mubr.f32.mxu0 0.0
        %1843 = vmatmul.mubr.f32.gmra.mrb[0].mxu0 %v1720
        %v1844 = vpop.f32.mrb[0].mxu0
        %v1845 = vadd.f32 0.0, %v1844
        %v1846 = vpop.f32.mrb[0].mxu0
        %1847 = vmatprep.mubr.f32.mxu0 0.0
        %1848 = vmatmul.mubr.f32.gmra.mrb[0].mxu0 %v1723
        %v1849 = vpop.f32.mrb[0].mxu0
        %v1850 = vadd.f32 0.0, %v1849
        %v1851 = vpop.f32.mrb[0].mxu0
        %1852 = vmatprep.mubr.f32.mxu0 0.0
        %1853 = vmatmul.mubr.f32.gmra.mrb[0].mxu0 %v1726
        %v1854 = vpop.f32.mrb[0].mxu0
        %v1855 = vadd.f32 0.0, %v1854
        %v1856 = vpop.f32.mrb[0].mxu0
        %1857 = vmatprep.mubr.f32.mxu0 0.0
        %1858 = vmatmul.mubr.f32.gmra.mrb[0].mxu0 %v1729
        %v1859 = vpop.f32.mrb[0].mxu0
        %v1860 = vadd.f32 0.0, %v1859
        %v1861 = vpop.f32.mrb[0].mxu0
        %1862 = vmatprep.mubr.f32.mxu0 0.0
        %1863 = vmatmul.mubr.f32.gmra.mrb[0].mxu0 %v1732
        %v1864 = vpop.f32.mrb[0].mxu0
        %v1865 = vadd.f32 0.0, %v1864
        %v1866 = vpop.f32.mrb[0].mxu0
        %1867 = vmatprep.mubr.f32.mxu0 0.0
        %1868 = vmatmul.mubr.f32.gmra.mrb[0].mxu0 %v1735
        %v1869 = vpop.f32.mrb[0].mxu0
        %v1870 = vadd.f32 0.0, %v1869
        %v1871 = vpop.f32.mrb[0].mxu0
        %1872 = vmatprep.mubr.f32.mxu0 0.0
        %1873 = vmatmul.mubr.f32.gmra.mrb[0].mxu0 %v1738
        %v1874 = vpop.f32.mrb[0].mxu0
        %v1875 = vadd.f32 0.0, %v1874
        %v1876 = vpop.f32.mrb[0].mxu0
        %1877 = vmatprep.mubr.f32.mxu0 0.0
        %1878 = vmatmul.mubr.f32.gmra.mrb[0].mxu0 %v1741
        %v1879 = vpop.f32.mrb[0].mxu0
        %v1880 = vadd.f32 0.0, %v1879
        %v1881 = vpop.f32.mrb[0].mxu0
        %1882 = vmatprep.mubr.f32.mxu0 0.0
        %1883 = vmatmul.mubr.f32.gmra.mrb[0].mxu0 %v1744
        %v1884 = vpop.f32.mrb[0].mxu0
        %v1885 = vadd.f32 0.0, %v1884
        %v1886 = vpop.f32.mrb[0].mxu0
        %1887 = vmatprep.mubr.f32.mxu0 0.0
        %1888 = vmatmul.mubr.f32.gmra.mrb[0].mxu0 %v1747
        %v1889 = vpop.f32.mrb[0].mxu0
        %v1890 = vadd.f32 0.0, %v1889
        %v1891 = vpop.f32.mrb[0].mxu0
        %1892 = vmatprep.mubr.f32.mxu0 0.0
        %1893 = vmatmul.mubr.f32.gmra.mrb[0].mxu0 %v1750
        %v1894 = vpop.f32.mrb[0].mxu0
        %v1895 = vadd.f32 0.0, %v1894
        %v1896 = vpop.f32.mrb[0].mxu0
        %1897 = vmatprep.mubr.f32.mxu0 0.0
        %1898 = vmatmul.mubr.f32.gmra.mrb[0].mxu0 %v1753
        %v1899 = vpop.f32.mrb[0].mxu0
        %v1900 = vadd.f32 0.0, %v1899
        %v1901 = vpop.f32.mrb[0].mxu0
        %1902 = vdwg.mxu0
        %v1903 = vlaneseq
        %v1904 = vshrl.u32 %v1903, 7
        %v1905 = vsub.s32 3, %v1904
        %v1906 = vrot.slane %v276, %v1905
        %1907 = vset.pattern.permute.xlu0 3
        %1908 = vperm.xlu0 %1907, %v277
        %v1909 = vpop.permute.xlu0 %1908
        %1911 = vset.pattern.permute.xlu0 3
        %1912 = vperm.xlu0 %1911, %v278
        %v1913 = vpop.permute.xlu0 %1912
        %vm1915 = vcmp.ge.f32.partialorder %v1906, %v1909
        %vm1916 = vcmp.ge.f32.partialorder %v1906, %v1913
        %vm1917 = vcmp.lt.f32.partialorder %v1906, %v1909
        %vm1918 = vcmp.lt.f32.partialorder %v1906, %v1913
        %v1919 = vsel %vm1917, 1, 0
        %v1920 = vsel %vm1918, 1, 0
        %v1921 = vrot.slane %v1919, 1
        %v1922 = vrot.slane %v1920, 1
        %v1923 = vsel %vm315, %v1921, %v1922
        %vm1924 = vcmp.ne.s32.totalorder %v1923, 0
        %vm1925 = vcmp.ne.s32.totalorder %v1922, 0
        %vm1926 = vmand %vm1915, %vm1924
        %vm1927 = vmand %vm1916, %vm1925
        %v1928 = vsel %vm1926, 1, 0
        %v1929 = vsel %vm1927, 1, 0
        %v1930 = vcvt.s32.f32 %v1928
        %v1931 = vcvt.s32.f32 %v1929
        %v1932 = vsub.f32 %v1906, %v1909
        %v1933 = vsub.f32 %v1906, %v1913
        %1934 = vset.pattern.permute.xlu0 3
        %1935 = vperm.xlu0 %1934, %v336
        %v1936 = vpop.permute.xlu0 %1935
        %1937 = vset.pattern.permute.xlu0 3
        %1938 = vperm.xlu0 %1937, %v338
        %v1939 = vpop.permute.xlu0 %1938
        %v1940 = vrot.slane %v1936, 1
        %v1941 = vrot.slane %v1939, 1
        %v1942 = vsel %vm315, %v1940, %v1941
        %v1945 = vmul.f32 %v1932, %v1942
        %v1946 = vmul.f32 %v1933, %v1941
        %v1947 = vsub.f32 %v1909, %v1906
        %v1948 = vsub.f32 %v1913, %v1906
        %v1951 = vmul.f32 %v1947, %v1936
        %v1952 = vmul.f32 %v1948, %v1939
        %v1953 = vmul.f32 %v1945, %v1930
        %v1954 = vmul.f32 %v1946, %v1931
        %v1957 = vrot.slane %v1930, 7
        %v1958 = vrot.slane %v1931, 7
        %v1959 = vsel %vm327, %v1957, %v1958
        %v1962 = vmul.f32 %v1951, %v1957
        %v1963 = vmul.f32 %v1952, %v1959
        %v1966 = vrot.slane %v1962, 2
        %v1967 = vrot.slane %v1963, 2
        %v1968 = vsel %vm375, %v1966, %v1967
        %v1971 = vadd.f32 %v1953, %v1968
        %v1972 = vadd.f32 %v1954, %v1967
        %1973 = vset.pattern.permute.xlu0 3
        %1974 = vperm.xlu0 %1973, %v392
        %v1975 = vpop.permute.xlu0 %1974
        %1976 = vset.pattern.permute.xlu0 3
        %1977 = vperm.xlu0 %1976, %v394
        %v1978 = vpop.permute.xlu0 %1977
        %v1979 = vrot.slane %v1975, 2
        %v1980 = vrot.slane %v1978, 2
        %v1981 = vsel %vm375, %v1979, %v1980
        %v1984 = vmul.f32 %v1932, %v1981
        %v1985 = vmul.f32 %v1933, %v1980
        %v1988 = vmul.f32 %v1947, %v1975
        %v1989 = vmul.f32 %v1948, %v1978
        %v1990 = vmul.f32 %v1984, %v1971
        %v1991 = vmul.f32 %v1985, %v1972
        %v1994 = vrot.slane %v1971, 6
        %v1995 = vrot.slane %v1972, 6
        %v1996 = vsel %vm383, %v1994, %v1995
        %v1999 = vmul.f32 %v1988, %v1994
        %v2000 = vmul.f32 %v1989, %v1996
        %v2003 = vrot.slane %v1999, 3
        %v2004 = vrot.slane %v2000, 3
        %v2005 = vsel %vm427, %v2003, %v2004
        %v2008 = vadd.f32 %v1990, %v2005
        %v2009 = vadd.f32 %v1991, %v2004
        %2010 = vset.pattern.permute.xlu0 3
        %2011 = vperm.xlu0 %2010, %v440
        %v2012 = vpop.permute.xlu0 %2011
        %2013 = vset.pattern.permute.xlu0 3
        %2014 = vperm.xlu0 %2013, %v442
        %v2015 = vpop.permute.xlu0 %2014
        %v2016 = vrot.slane %v2012, 3
        %v2017 = vrot.slane %v2015, 3
        %v2018 = vsel %vm427, %v2016, %v2017
        %v2020 = vmul.f32 %v1932, %v2018
        %2022 = vset.pattern.permute.xlu0 3
        %2023 = vperm.xlu0 %2022, %v449
        %v2024 = vpop.permute.xlu0 %2023
        %v2026 = vmul.f32 %v1947, %v2012
        %v2027 = vmul.f32 %v1948, %v2024
        %v2028 = vmul.f32 %v2020, %v2008
        %v2031 = vrot.slane %v2008, 5
        %v2032 = vrot.slane %v2009, 5
        %v2033 = vsel %vm443, %v2031, %v2032
        %v2036 = vmul.f32 %v2026, %v2031
        %v2037 = vmul.f32 %v2027, %v2033
        %v2040 = vrot.slane %v2036, 4
        %v2041 = vrot.slane %v2037, 4
        %v2042 = vsel %vm483, %v2040, %v2041
        %v2044 = vadd.f32 %v2028, %v2042
        %v2045 = vrot.slane %v591, 3
        %v2047 = vrot.slane %v698, 2
        %v2049 = vrot.slane %v701, 1
        %v2051 = vrot.slane %v709, 7
        %v2053 = vrot.slane %v713, 6
        %v2055 = vrot.slane %v717, 5
        %v2057 = vrot.slane %v721, 4
        %v2059 = vrot.slane %v725, 3
        %v2061 = vrot.slane %v729, 2
        %v2063 = vrot.slane %v695, 1
        %v2065 = vrot.slane %v703, 7
        %v2067 = vrot.slane %v707, 6
        %v2069 = vrot.slane %v711, 5
        %v2071 = vsel %vm327, %v2045, %v2047
        %v2072 = vsel %vm383, %v2071, %v2049
        %v2073 = vsel %vm443, %v2072, %v705
        %v2074 = vsel %vm483, %v2073, %v2051
        %v2075 = vsel %vm427, %v2074, %v2053
        %v2076 = vsel %vm375, %v2075, %v2055
        %v2077 = vsel %vm315, %v2076, %v2057
        %v2078 = vsel %vm327, %v2059, %v2061
        %v2079 = vsel %vm383, %v2078, %v2063
        %v2080 = vsel %vm443, %v2079, %v699
        %v2081 = vsel %vm483, %v2080, %v2065
        %v2082 = vsel %vm427, %v2081, %v2067
        %v2083 = vsel %vm375, %v2082, %v2069
        %v2084 = vrot.slane %v715, 3
        %v2086 = vrot.slane %v719, 2
        %v2088 = vrot.slane %v723, 1
        %v2090 = vrot.slane %v731, 7
        %v2092 = vrot.slane %v738, 6
        %v2094 = vsel %vm327, %v2084, %v2086
        %v2095 = vsel %vm383, %v2094, %v2088
        %v2096 = vsel %vm443, %v2095, %v727
        %v2097 = vsel %vm483, %v2096, %v2090
        %v2098 = vsel %vm427, %v2097, %v2092
        %v2100 = vrot.slane %v2098, 1
        %v2102 = vsel %vm315, %v2083, %v2100
        %2103 = vxpose.xlu0.b32.start [1/16] %v2044, 128
        %2104 = vxpose.xlu0.b32.cont [2/16] %v2077, 128
        %2105 = vxpose.xlu0.b32.cont [3/16] %v2102, 128
        %2106 = vxpose.xlu0.b32.cont [4/16] %v2100, 128
        %2107 = vxpose.xlu0.b32.cont [5/16] 0.0, 128
        %2108 = vxpose.xlu0.b32.cont [6/16] 0.0, 128
        %2109 = vxpose.xlu0.b32.cont [7/16] 0.0, 128
        %2110 = vxpose.xlu0.b32.cont [8/16] 0.0, 128
        %2111 = vxpose.xlu0.b32.cont [9/16] 0.0, 128
        %2112 = vxpose.xlu0.b32.cont [10/16] 0.0, 128
        %2113 = vxpose.xlu0.b32.cont [11/16] 0.0, 128
        %2114 = vxpose.xlu0.b32.cont [12/16] 0.0, 128
        %2115 = vxpose.xlu0.b32.cont [13/16] 0.0, 128
        %2116 = vxpose.xlu0.b32.cont [14/16] 0.0, 128
        %2117 = vxpose.xlu0.b32.cont [15/16] 0.0, 128
        %2118 = vxpose.xlu0.b32.end [16/16] 0.0, 128
        %v2119 = vpop.trf.xlu0
        %v2120 = vpop.trf.xlu0
        %v2121 = vpop.trf.xlu0
        %v2122 = vpop.trf.xlu0
        %v2123 = vpop.trf.xlu0
        %v2124 = vpop.trf.xlu0
        %v2125 = vpop.trf.xlu0
        %v2126 = vpop.trf.xlu0
        %v2127 = vpop.trf.xlu0
        %v2128 = vpop.trf.xlu0
        %v2129 = vpop.trf.xlu0
        %v2130 = vpop.trf.xlu0
        %v2131 = vpop.trf.xlu0
        %v2132 = vpop.trf.xlu0
        %v2133 = vpop.trf.xlu0
        %v2134 = vpop.trf.xlu0
        %v2136 = vsel %vm847, %v2119, 0
        %v2139 = vsel %vm847, %v2120, 0
        %v2142 = vsel %vm847, %v2121, 0
        %v2145 = vsel %vm847, %v2122, 0
        %v2148 = vsel %vm847, %v2123, 0
        %v2151 = vsel %vm847, %v2124, 0
        %v2154 = vsel %vm847, %v2125, 0
        %v2157 = vsel %vm847, %v2126, 0
        %v2160 = vsel %vm847, %v2127, 0
        %v2163 = vsel %vm847, %v2128, 0
        %v2166 = vsel %vm847, %v2129, 0
        %v2169 = vsel %vm847, %v2130, 0
        %v2172 = vsel %vm847, %v2131, 0
        %v2175 = vsel %vm847, %v2132, 0
        %v2178 = vsel %vm847, %v2133, 0
        %v2181 = vsel %vm847, %v2134, 0
        %v2184 = vsel %vm427, %v294, 0
        %2186 = vmatprep.subr.mxu0 0.0
        %2187 = vmatpush1.msra.mxu0 %v291
        %2188 = vmatprep.subr.mxu0 0.0
        %2189 = vmatpush1.msra.mxu0 %v292
        %2190 = vmatprep.subr.mxu0 0.0
        %2191 = vmatpush1.msra.mxu0 %v293
        %2192 = vmatprep.subr.mxu0 0.0
        %2193 = vmatpush1.msra.mxu0 %v2184
        %2194 = vmatprep.subr.mxu0 0.0
        %2195 = vmatpush1.msra.mxu0 0.0
        %2196 = vmatprep.subr.mxu0 0.0
        %2197 = vmatpush1.msra.mxu0 0.0
        %2198 = vmatprep.subr.mxu0 0.0
        %2199 = vmatpush1.msra.mxu0 0.0
        %2200 = vmatprep.subr.mxu0 0.0
        %2201 = vmatpush1.msra.mxu0 0.0
        %2202 = vmatprep.subr.mxu0 0.0
        %2203 = vmatpush1.msra.mxu0 0.0
        %2204 = vmatprep.subr.mxu0 0.0
        %2205 = vmatpush1.msra.mxu0 0.0
        %2206 = vmatprep.subr.mxu0 0.0
        %2207 = vmatpush1.msra.mxu0 0.0
        %2208 = vmatprep.subr.mxu0 0.0
        %2209 = vmatpush1.msra.mxu0 0.0
        %2210 = vmatprep.subr.mxu0 0.0
        %2211 = vmatpush1.msra.mxu0 0.0
        %2212 = vmatprep.subr.mxu0 0.0
        %2213 = vmatpush1.msra.mxu0 0.0
        %2214 = vmatprep.subr.mxu0 0.0
        %2215 = vmatpush1.msra.mxu0 0.0
        %2216 = vmatprep.subr.mxu0 0.0
        %2217 = vmatpush1.msra.mxu0 0.0
        %2218 = vmatprep.subr.mxu0 0.0
        %2219 = vmatpush1.msra.mxu0 0.0
        %2220 = vmatprep.subr.mxu0 0.0
        %2221 = vmatpush1.msra.mxu0 0.0
        %2222 = vmatprep.subr.mxu0 0.0
        %2223 = vmatpush1.msra.mxu0 0.0
        %2224 = vmatprep.subr.mxu0 0.0
        %2225 = vmatpush1.msra.mxu0 0.0
        %2226 = vmatprep.subr.mxu0 0.0
        %2227 = vmatpush1.msra.mxu0 0.0
        %2228 = vmatprep.subr.mxu0 0.0
        %2229 = vmatpush1.msra.mxu0 0.0
        %2230 = vmatprep.subr.mxu0 0.0
        %2231 = vmatpush1.msra.mxu0 0.0
        %2232 = vmatprep.subr.mxu0 0.0
        %2233 = vmatpush1.msra.mxu0 0.0
        %2234 = vmatprep.subr.mxu0 0.0
        %2235 = vmatpush1.msra.mxu0 0.0
        %2236 = vmatprep.subr.mxu0 0.0
        %2237 = vmatpush1.msra.mxu0 0.0
        %2238 = vmatprep.subr.mxu0 0.0
        %2239 = vmatpush1.msra.mxu0 0.0
        %2240 = vmatprep.subr.mxu0 0.0
        %2241 = vmatpush1.msra.mxu0 0.0
        %2242 = vmatprep.subr.mxu0 0.0
        %2243 = vmatpush1.msra.mxu0 0.0
        %2244 = vmatprep.subr.mxu0 0.0
        %2245 = vmatpush1.msra.mxu0 0.0
        %2246 = vmatprep.subr.mxu0 0.0
        %2247 = vmatpush1.msra.mxu0 0.0
        %2248 = vmatprep.subr.mxu0 0.0
        %2249 = vmatpush1.msra.mxu0 0.0
        %2250 = vmatprep.mubr.f32.mxu0 0.0
        %2251 = vmatmul.mubr.f32.gmra.mrb[0].mxu0 %v2136
        %v2252 = vpop.f32.mrb[0].mxu0
        %v2253 = vadd.f32 0.0, %v2252
        %v2254 = vpop.f32.mrb[0].mxu0
        %2255 = vmatprep.mubr.f32.mxu0 0.0
        %2256 = vmatmul.mubr.f32.gmra.mrb[0].mxu0 %v2139
        %v2257 = vpop.f32.mrb[0].mxu0
        %v2258 = vadd.f32 0.0, %v2257
        %v2259 = vpop.f32.mrb[0].mxu0
        %2260 = vmatprep.mubr.f32.mxu0 0.0
        %2261 = vmatmul.mubr.f32.gmra.mrb[0].mxu0 %v2142
        %v2262 = vpop.f32.mrb[0].mxu0
        %v2263 = vadd.f32 0.0, %v2262
        %v2264 = vpop.f32.mrb[0].mxu0
        %2265 = vmatprep.mubr.f32.mxu0 0.0
        %2266 = vmatmul.mubr.f32.gmra.mrb[0].mxu0 %v2145
        %v2267 = vpop.f32.mrb[0].mxu0
        %v2268 = vadd.f32 0.0, %v2267
        %v2269 = vpop.f32.mrb[0].mxu0
        %2270 = vmatprep.mubr.f32.mxu0 0.0
        %2271 = vmatmul.mubr.f32.gmra.mrb[0].mxu0 %v2148
        %v2272 = vpop.f32.mrb[0].mxu0
        %v2273 = vadd.f32 0.0, %v2272
        %v2274 = vpop.f32.mrb[0].mxu0
        %2275 = vmatprep.mubr.f32.mxu0 0.0
        %2276 = vmatmul.mubr.f32.gmra.mrb[0].mxu0 %v2151
        %v2277 = vpop.f32.mrb[0].mxu0
        %v2278 = vadd.f32 0.0, %v2277
        %v2279 = vpop.f32.mrb[0].mxu0
        %2280 = vmatprep.mubr.f32.mxu0 0.0
        %2281 = vmatmul.mubr.f32.gmra.mrb[0].mxu0 %v2154
        %v2282 = vpop.f32.mrb[0].mxu0
        %v2283 = vadd.f32 0.0, %v2282
        %v2284 = vpop.f32.mrb[0].mxu0
        %2285 = vmatprep.mubr.f32.mxu0 0.0
        %2286 = vmatmul.mubr.f32.gmra.mrb[0].mxu0 %v2157
        %v2287 = vpop.f32.mrb[0].mxu0
        %v2288 = vadd.f32 0.0, %v2287
        %v2289 = vpop.f32.mrb[0].mxu0
        %2290 = vmatprep.mubr.f32.mxu0 0.0
        %2291 = vmatmul.mubr.f32.gmra.mrb[0].mxu0 %v2160
        %v2292 = vpop.f32.mrb[0].mxu0
        %v2293 = vadd.f32 0.0, %v2292
        %v2294 = vpop.f32.mrb[0].mxu0
        %2295 = vmatprep.mubr.f32.mxu0 0.0
        %2296 = vmatmul.mubr.f32.gmra.mrb[0].mxu0 %v2163
        %v2297 = vpop.f32.mrb[0].mxu0
        %v2298 = vadd.f32 0.0, %v2297
        %v2299 = vpop.f32.mrb[0].mxu0
        %2300 = vmatprep.mubr.f32.mxu0 0.0
        %2301 = vmatmul.mubr.f32.gmra.mrb[0].mxu0 %v2166
        %v2302 = vpop.f32.mrb[0].mxu0
        %v2303 = vadd.f32 0.0, %v2302
        %v2304 = vpop.f32.mrb[0].mxu0
        %2305 = vmatprep.mubr.f32.mxu0 0.0
        %2306 = vmatmul.mubr.f32.gmra.mrb[0].mxu0 %v2169
        %v2307 = vpop.f32.mrb[0].mxu0
        %v2308 = vadd.f32 0.0, %v2307
        %v2309 = vpop.f32.mrb[0].mxu0
        %2310 = vmatprep.mubr.f32.mxu0 0.0
        %2311 = vmatmul.mubr.f32.gmra.mrb[0].mxu0 %v2172
        %v2312 = vpop.f32.mrb[0].mxu0
        %v2313 = vadd.f32 0.0, %v2312
        %v2314 = vpop.f32.mrb[0].mxu0
        %2315 = vmatprep.mubr.f32.mxu0 0.0
        %2316 = vmatmul.mubr.f32.gmra.mrb[0].mxu0 %v2175
        %v2317 = vpop.f32.mrb[0].mxu0
        %v2318 = vadd.f32 0.0, %v2317
        %v2319 = vpop.f32.mrb[0].mxu0
        %2320 = vmatprep.mubr.f32.mxu0 0.0
        %2321 = vmatmul.mubr.f32.gmra.mrb[0].mxu0 %v2178
        %v2322 = vpop.f32.mrb[0].mxu0
        %v2323 = vadd.f32 0.0, %v2322
        %v2324 = vpop.f32.mrb[0].mxu0
        %2325 = vmatprep.mubr.f32.mxu0 0.0
        %2326 = vmatmul.mubr.f32.gmra.mrb[0].mxu0 %v2181
        %v2327 = vpop.f32.mrb[0].mxu0
        %v2328 = vadd.f32 0.0, %v2327
        %v2329 = vpop.f32.mrb[0].mxu0
        %2330 = vdwg.mxu0
        %2347 = vrot.lane.b32.xlu0 %v1397, 32
        %v2348 = vpop.permute.xlu0 %2347
        %2349 = vrot.lane.b32.xlu0 %v1402, 32
        %v2350 = vpop.permute.xlu0 %2349
        %2351 = vrot.lane.b32.xlu0 %v1407, 32
        %v2352 = vpop.permute.xlu0 %2351
        %2353 = vrot.lane.b32.xlu0 %v1412, 32
        %v2354 = vpop.permute.xlu0 %2353
        %2355 = vrot.lane.b32.xlu0 %v1417, 32
        %v2356 = vpop.permute.xlu0 %2355
        %2357 = vrot.lane.b32.xlu0 %v1422, 32
        %v2358 = vpop.permute.xlu0 %2357
        %2359 = vrot.lane.b32.xlu0 %v1427, 32
        %v2360 = vpop.permute.xlu0 %2359
        %2361 = vrot.lane.b32.xlu0 %v1432, 32
        %v2362 = vpop.permute.xlu0 %2361
        %2363 = vrot.lane.b32.xlu0 %v1437, 32
        %v2364 = vpop.permute.xlu0 %2363
        %2365 = vrot.lane.b32.xlu0 %v1442, 32
        %v2366 = vpop.permute.xlu0 %2365
        %2367 = vrot.lane.b32.xlu0 %v1447, 32
        %v2368 = vpop.permute.xlu0 %2367
        %2369 = vrot.lane.b32.xlu0 %v1452, 32
        %v2370 = vpop.permute.xlu0 %2369
        %2371 = vrot.lane.b32.xlu0 %v1457, 32
        %v2372 = vpop.permute.xlu0 %2371
        %2373 = vrot.lane.b32.xlu0 %v1462, 32
        %v2374 = vpop.permute.xlu0 %2373
        %2375 = vrot.lane.b32.xlu0 %v1467, 32
        %v2376 = vpop.permute.xlu0 %2375
        %2377 = vrot.lane.b32.xlu0 %v1472, 32
        %v2378 = vpop.permute.xlu0 %2377
        %2411 = vrot.lane.b32.xlu0 %v1825, 64
        %v2412 = vpop.permute.xlu0 %2411
        %2413 = vrot.lane.b32.xlu0 %v1830, 64
        %v2414 = vpop.permute.xlu0 %2413
        %2415 = vrot.lane.b32.xlu0 %v1835, 64
        %v2416 = vpop.permute.xlu0 %2415
        %2417 = vrot.lane.b32.xlu0 %v1840, 64
        %v2418 = vpop.permute.xlu0 %2417
        %2419 = vrot.lane.b32.xlu0 %v1845, 64
        %v2420 = vpop.permute.xlu0 %2419
        %2421 = vrot.lane.b32.xlu0 %v1850, 64
        %v2422 = vpop.permute.xlu0 %2421
        %2423 = vrot.lane.b32.xlu0 %v1855, 64
        %v2424 = vpop.permute.xlu0 %2423
        %2425 = vrot.lane.b32.xlu0 %v1860, 64
        %v2426 = vpop.permute.xlu0 %2425
        %2427 = vrot.lane.b32.xlu0 %v1865, 64
        %v2428 = vpop.permute.xlu0 %2427
        %2429 = vrot.lane.b32.xlu0 %v1870, 64
        %v2430 = vpop.permute.xlu0 %2429
        %2431 = vrot.lane.b32.xlu0 %v1875, 64
        %v2432 = vpop.permute.xlu0 %2431
        %2433 = vrot.lane.b32.xlu0 %v1880, 64
        %v2434 = vpop.permute.xlu0 %2433
        %2435 = vrot.lane.b32.xlu0 %v1885, 64
        %v2436 = vpop.permute.xlu0 %2435
        %2437 = vrot.lane.b32.xlu0 %v1890, 64
        %v2438 = vpop.permute.xlu0 %2437
        %2439 = vrot.lane.b32.xlu0 %v1895, 64
        %v2440 = vpop.permute.xlu0 %2439
        %2441 = vrot.lane.b32.xlu0 %v1900, 64
        %v2442 = vpop.permute.xlu0 %2441
        %2475 = vrot.lane.b32.xlu0 %v2253, 96
        %v2476 = vpop.permute.xlu0 %2475
        %2477 = vrot.lane.b32.xlu0 %v2258, 96
        %v2478 = vpop.permute.xlu0 %2477
        %2479 = vrot.lane.b32.xlu0 %v2263, 96
        %v2480 = vpop.permute.xlu0 %2479
        %2481 = vrot.lane.b32.xlu0 %v2268, 96
        %v2482 = vpop.permute.xlu0 %2481
        %2483 = vrot.lane.b32.xlu0 %v2273, 96
        %v2484 = vpop.permute.xlu0 %2483
        %2485 = vrot.lane.b32.xlu0 %v2278, 96
        %v2486 = vpop.permute.xlu0 %2485
        %2487 = vrot.lane.b32.xlu0 %v2283, 96
        %v2488 = vpop.permute.xlu0 %2487
        %2489 = vrot.lane.b32.xlu0 %v2288, 96
        %v2490 = vpop.permute.xlu0 %2489
        %2491 = vrot.lane.b32.xlu0 %v2293, 96
        %v2492 = vpop.permute.xlu0 %2491
        %2493 = vrot.lane.b32.xlu0 %v2298, 96
        %v2494 = vpop.permute.xlu0 %2493
        %2495 = vrot.lane.b32.xlu0 %v2303, 96
        %v2496 = vpop.permute.xlu0 %2495
        %2497 = vrot.lane.b32.xlu0 %v2308, 96
        %v2498 = vpop.permute.xlu0 %2497
        %2499 = vrot.lane.b32.xlu0 %v2313, 96
        %v2500 = vpop.permute.xlu0 %2499
        %2501 = vrot.lane.b32.xlu0 %v2318, 96
        %v2502 = vpop.permute.xlu0 %2501
        %2503 = vrot.lane.b32.xlu0 %v2323, 96
        %v2504 = vpop.permute.xlu0 %2503
        %2505 = vrot.lane.b32.xlu0 %v2328, 96
        %v2506 = vpop.permute.xlu0 %2505
        %vm2523 = vcmask 261120
        %v2524 = vsel %vm2523, %v966, %v2348
        %v2525 = vsel %vm2523, %v971, %v2350
        %v2526 = vsel %vm2523, %v976, %v2352
        %v2527 = vsel %vm2523, %v981, %v2354
        %v2528 = vsel %vm2523, %v986, %v2356
        %v2529 = vsel %vm2523, %v991, %v2358
        %v2530 = vsel %vm2523, %v996, %v2360
        %v2531 = vsel %vm2523, %v1001, %v2362
        %v2532 = vsel %vm2523, %v1006, %v2364
        %v2533 = vsel %vm2523, %v1011, %v2366
        %v2534 = vsel %vm2523, %v1016, %v2368
        %v2535 = vsel %vm2523, %v1021, %v2370
        %v2536 = vsel %vm2523, %v1026, %v2372
        %v2537 = vsel %vm2523, %v1031, %v2374
        %v2538 = vsel %vm2523, %v1036, %v2376
        %v2539 = vsel %vm2523, %v1041, %v2378
        %vm2540 = vcmask 523264
        %v2541 = vsel %vm2540, %v2524, %v2412
        %v2542 = vsel %vm2540, %v2525, %v2414
        %v2543 = vsel %vm2540, %v2526, %v2416
        %v2544 = vsel %vm2540, %v2527, %v2418
        %v2545 = vsel %vm2540, %v2528, %v2420
        %v2546 = vsel %vm2540, %v2529, %v2422
        %v2547 = vsel %vm2540, %v2530, %v2424
        %v2548 = vsel %vm2540, %v2531, %v2426
        %v2549 = vsel %vm2540, %v2532, %v2428
        %v2550 = vsel %vm2540, %v2533, %v2430
        %v2551 = vsel %vm2540, %v2534, %v2432
        %v2552 = vsel %vm2540, %v2535, %v2434
        %v2553 = vsel %vm2540, %v2536, %v2436
        %v2554 = vsel %vm2540, %v2537, %v2438
        %v2555 = vsel %vm2540, %v2538, %v2440
        %v2556 = vsel %vm2540, %v2539, %v2442
        %vm2557 = vcmask 785408
        %v2558 = vsel %vm2557, %v2541, %v2476
        %v2559 = vsel %vm2557, %v2542, %v2478
        %v2560 = vsel %vm2557, %v2543, %v2480
        %v2561 = vsel %vm2557, %v2544, %v2482
        %v2562 = vsel %vm2557, %v2545, %v2484
        %v2563 = vsel %vm2557, %v2546, %v2486
        %v2564 = vsel %vm2557, %v2547, %v2488
        %v2565 = vsel %vm2557, %v2548, %v2490
        %v2566 = vsel %vm2557, %v2549, %v2492
        %v2567 = vsel %vm2557, %v2550, %v2494
        %v2568 = vsel %vm2557, %v2551, %v2496
        %v2569 = vsel %vm2557, %v2552, %v2498
        %v2570 = vsel %vm2557, %v2553, %v2500
        %v2571 = vsel %vm2557, %v2554, %v2502
        %v2572 = vsel %vm2557, %v2555, %v2504
        %v2573 = vsel %vm2557, %v2556, %v2506
        %v2574 = vld [vmem:[%s274] sm:$0x1]
        %v2576 = vlaneseq
        %v2577 = vshrl.u32 %v2576, 7
        %v2578 = vsub.s32 0, %v2577
        %v2579 = vrot.slane %v2574, %v2578
        %v2581 = vadd.f32 %v2558, %v2579
        %v2582 = vadd.f32 %v2559, %v2579
        %v2583 = vadd.f32 %v2560, %v2579
        %v2584 = vadd.f32 %v2561, %v2579
        %v2585 = vadd.f32 %v2562, %v2579
        %v2586 = vadd.f32 %v2563, %v2579
        %v2587 = vadd.f32 %v2564, %v2579
        %v2588 = vadd.f32 %v2565, %v2579
        %v2589 = vadd.f32 %v2566, %v2579
        %v2590 = vadd.f32 %v2567, %v2579
        %v2591 = vadd.f32 %v2568, %v2579
        %v2592 = vadd.f32 %v2569, %v2579
        %v2593 = vadd.f32 %v2570, %v2579
        %v2594 = vadd.f32 %v2571, %v2579
        %v2595 = vadd.f32 %v2572, %v2579
        %v2596 = vadd.f32 %v2573, %v2579
        %2597 = vst [vmem:[%s253] sm:$0xff] %v2581
        %2598 = vst [vmem:[%s253 + $0x8] sm:$0xff] %v2582
        %2599 = vst [vmem:[%s253 + $0x10] sm:$0xff] %v2583
        %2600 = vst [vmem:[%s253 + $0x18] sm:$0xff] %v2584
        %2601 = vst [vmem:[%s253 + $0x20] sm:$0xff] %v2585
        %2602 = vst [vmem:[%s253 + $0x28] sm:$0xff] %v2586
        %2603 = vst [vmem:[%s253 + $0x30] sm:$0xff] %v2587
        %2604 = vst [vmem:[%s253 + $0x38] sm:$0xff] %v2588
        %2605 = vst [vmem:[%s253 + $0x40] sm:$0xff] %v2589
        %2606 = vst [vmem:[%s253 + $0x48] sm:$0xff] %v2590
        %2607 = vst [vmem:[%s253 + $0x50] sm:$0xff] %v2591
        %2608 = vst [vmem:[%s253 + $0x58] sm:$0xff] %v2592
        %2609 = vst [vmem:[%s253 + $0x60] sm:$0xff] %v2593
        %2610 = vst [vmem:[%s253 + $0x68] sm:$0xff] %v2594
        %2611 = vst [vmem:[%s253 + $0x70] sm:$0xff] %v2595
        %2612 = vst [vmem:[%s253 + $0x78] sm:$0xff] %v2596
        %s2613 = sand.u32 %s146, 1
        %s2614 = scalar_lea.sflag [#allocation3], %s2613
        %s2615 = sand.u32 %s146, 1
        %s2616 = smul.addr %s2615, 128
        %s2617 = scalar_lea.vmem [#allocation2], %s2616
        // Predicated region
        $region37: #{tpu_custom_call.1} parent=35 // pred_check
          %p2618 = pneg %p156
        $region38: #{tpu_custom_call.1} parent=35 // pred_check_branch
          %2620 = sbr.rel (%p2618) target = $region40
        $region39: #{tpu_custom_call.1} parent=35 // pred_region
          %s2621 = smul.u32 16, %s23
          %s2623 = ssub.s32 2048, 2048
          %2624 = vsyncadd %s2614, %s2623
          %s2625 = smul.addr %s2621, 4
          %s2626 = sadd.s32 %s22, %s2625
          %s2627 = smul.addr %s2626, 128
          %s2628 = scalar_lea.hbm %s4, %s2627
          %s2629 = sshll.u32 %s2617, 4
          %s2630 = int_to_ptr.vmem [resolvable:$true] %s2629
          %2635 = dma.vmem_to_hbm [thread:$0]  %s2630, 2048, %s2628, %s2614, 128, 512, 8
        $region40: #{tpu_custom_call.1} parent=35 // pred_fallthru
          _
      $region36: #{tpu_custom_call.1} parent=5 // pred_fallthru
        _
      %p2636 = scmp.le.s32.totalorder 2, %s13
      // Predicated region
      $region41: #{tpu_custom_call.1} parent=5 // pred_check
        %p2637 = pneg %p2636
      $region42: #{tpu_custom_call.1} parent=5 // pred_check_branch
        %2639 = sbr.rel (%p2637) target = $region44
      $region43: #{tpu_custom_call.1} parent=5 // pred_region
        %s2640 = ssub.s32 %s13, 2
        // Predicated region
        $region45: #{tpu_custom_call.1} parent=43 // pred_check
          %p2641 = pneg %p162
        $region46: #{tpu_custom_call.1} parent=43 // pred_check_branch
          %2643 = sbr.rel (%p2641) target = $region48
        $region47: #{tpu_custom_call.1} parent=43 // pred_region
          %s2644 = sand.u32 %s147, 1
          %s2645 = scalar_lea.sflag [#allocation3], %s2644
          %s2646 = sand.u32 %s147, 1
          %s2647 = smul.addr %s2646, 128
          %s2648 = scalar_lea.vmem [#allocation2], %s2647
          %2649 = dma.done %s2645, 2048
        $region48: #{tpu_custom_call.1} parent=43 // pred_fallthru
          _
      $region44: #{tpu_custom_call.1} parent=5 // pred_fallthru
        _
    $region6: #{tpu_custom_call.1} parent=1 // loop_footer
      %s17 = sadd.s32 1, %s13
    $region7: #{tpu_custom_call.1} parent=1 // loop_footer_branch
      %12 = sbr.rel target = $region3
    $region8: #{tpu_custom_call.1} parent=1 // loop_exit
      _
    %2650 = vsyncpa [#allocation3], 1
    %s2651 = scalar_lea.sflag [#allocation3], 1
    %2652 = vsyncpa %s2651, 1

</llo_original>
